<compile_context>
chip_gen: v7x
topology: tpu7x:2x2x1
jax: 0.10.0
libtpu: 0.0.40
codegen_flags: <defaults>
</compile_context>

<pallas_src>
import functools

import jax
import jax.numpy as jnp
from jax import lax
from jax.experimental import pallas as pl
from jax.experimental.pallas import tpu as pltpu

LANE = 128


def _round_up(x, m):
    return (x + m - 1) // m * m


def _vmem_limit_bytes():
    # Generation-aware scoped-VMEM budget: v5e/v6e have 128 MiB physical, v7x 64 MiB.
    try:
        cap = pltpu.get_tpu_info().vmem_capacity_bytes
        return int(min(100 * 1024 * 1024, cap * 3 // 4))
    except Exception:
        return 64 * 1024 * 1024


# --------------------------------------------------------------------------------------
# In-kernel helpers (pure value ops: unit-stride slices, concatenate, reshape).
# --------------------------------------------------------------------------------------
def _pad_hw(x, value):
    """Pad a (H, W, C) value with a 1-pixel constant border -> (H+2, W+2, C)."""
    H, W, C = x.shape
    row = jnp.full((1, W, C), value, x.dtype)
    x = jnp.concatenate([row, x, row], axis=0)
    col = jnp.full((H + 2, 1, C), value, x.dtype)
    return jnp.concatenate([col, x, col], axis=1)


def _subsample_hw(x, s):
    """x[::s, ::s, :] without strided indexing: reshape + static index per axis."""
    if s == 1:
        return x
    H, W, C = x.shape
    Ho = (H - 1) // s + 1
    Wo = (W - 1) // s + 1
    if Ho * s != H:  # pad up so the reshape trick works; padding is never selected
        x = jnp.concatenate([x, jnp.zeros((Ho * s - H, W, C), x.dtype)], axis=0)
    x = x.reshape(Ho, s, W, C)[:, 0]            # stride-s along H (outer dim, cheap)
    if Wo * s != W:
        x = jnp.concatenate([x, jnp.zeros((Ho, Wo * s - W, C), x.dtype)], axis=1)
    x = x.reshape(Ho, Wo, s, C)[:, :, 0, :]     # stride-s along W (one sublane repack)
    return x


# --------------------------------------------------------------------------------------
# Fused Block kernel: reps x (ReLU + depthwise 3x3 + pointwise 1x1 + BN)
#                     + optional MaxPool2d(3, s, 1) + optional (1x1 skip conv + BN)
#                     + residual add.  One image per grid step.
# --------------------------------------------------------------------------------------
def _block_kernel(*refs, reps, relu_flags, strides, has_skip, H, W, Ho, Wo):
    x_ref = refs[0]
    layer_refs = [refs[1 + 4 * i: 1 + 4 * (i + 1)] for i in range(reps)]
    idx = 1 + 4 * reps
    if has_skip:
        ws_ref, ssc_ref, sb_ref = refs[idx:idx + 3]
        idx += 3
    o_ref = refs[idx]

    # Block input stays resident (used by layer 0 AND by the skip path).
    x0 = x_ref[0].astype(jnp.float32)                     # (H, W, Cin_p)

    h = x0
    for i, (wd_ref, wp_ref, sc_ref, b_ref) in enumerate(layer_refs):
        cin, cout = wp_ref.shape
        if relu_flags[i]:
            h = jnp.maximum(h, 0.0)                       # ReLU hoisted out of tap loop
        hp = _pad_hw(h, 0.0)                              # conv zero-pad, in-register
        wd = wd_ref[...]                                  # (9, 1, cin), f32
        acc = jnp.zeros((H, W, cin), jnp.float32)
        for dx in range(3):                               # 3 sublane-shifted columns,
            col = hp[:, dx:dx + W, :]                     # each reused across 3 dy
            for dy in range(3):
                acc = acc + col[dy:dy + H] * wd[dy * 3 + dx]
        # Pointwise 1x1 conv on the MXU (bf16 x bf16 -> f32); BN scale/shift in f32.
        y = jnp.dot(acc.reshape(H * W, cin).astype(jnp.bfloat16), wp_ref[...],
                    preferred_element_type=jnp.float32)
        y = y * sc_ref[...] + b_ref[...]
        h = y.reshape(H, W, cout)

    if strides != 1:
        # MaxPool2d(3, strides, padding=1): separable max + one subsample.
        hp = _pad_hw(h, -jnp.inf)
        rmax = jnp.maximum(jnp.maximum(hp[:, 0:W, :], hp[:, 1:W + 1, :]),
                           hp[:, 2:W + 2, :])             # (H+2, W, C)
        cmax = jnp.maximum(jnp.maximum(rmax[0:H], rmax[1:H + 1]),
                           rmax[2:H + 2])                 # (H, W, C)
        rep = _subsample_hw(cmax, strides)                # (Ho, Wo, C)
    else:
        rep = h

    if has_skip:
        xs = _subsample_hw(x0, strides)                   # strided 1x1 conv input
        cin = ws_ref.shape[0]
        sk = jnp.dot(xs.reshape(Ho * Wo, cin).astype(jnp.bfloat16), ws_ref[...],
                     preferred_element_type=jnp.float32)
        sk = (sk * ssc_ref[...] + sb_ref[...]).reshape(Ho, Wo, ws_ref.shape[1])
    else:
        sk = x0                                           # in==out channels, stride==1

    o_ref[0] = (rep + sk).astype(o_ref.dtype)             # single aligned store


def block_forward(x_nhwc, layer_params, skip_params, *, strides):
    N, H, W, Cin_p = x_nhwc.shape
    pool = strides != 1
    Ho = (H - 1) // strides + 1 if pool else H
    Wo = (W - 1) // strides + 1 if pool else W
    has_skip = skip_params is not None
    cout_p = layer_params[-1]['wp'].shape[1]
    relu_flags = tuple(lp['relu'] for lp in layer_params)

    def const_spec(a):
        return pl.BlockSpec(a.shape, lambda n, _nd=a.ndim: (0,) * _nd)

    inputs = [x_nhwc]
    in_specs = [pl.BlockSpec((1, H, W, Cin_p), lambda n: (n, 0, 0, 0))]
    for lp in layer_params:
        for name in ('wd', 'wp', 'scale', 'bias'):
            inputs.append(lp[name])
            in_specs.append(const_spec(lp[name]))
    if has_skip:
        for name in ('ws', 'scale', 'bias'):
            inputs.append(skip_params[name])
            in_specs.append(const_spec(skip_params[name]))

    kernel = functools.partial(
        _block_kernel, reps=len(layer_params), relu_flags=relu_flags,
        strides=strides, has_skip=has_skip, H=H, W=W, Ho=Ho, Wo=Wo)

    return pl.pallas_call(
        kernel,
        out_shape=jax.ShapeDtypeStruct((N, Ho, Wo, cout_p), jnp.float32),
        grid=(N,),
        in_specs=in_specs,
        out_specs=pl.BlockSpec((1, Ho, Wo, cout_p), lambda n: (n, 0, 0, 0)),
        compiler_params=pltpu.CompilerParams(
            dimension_semantics=("parallel",),
            vmem_limit_bytes=_vmem_limit_bytes()),
    )(*inputs)


# --------------------------------------------------------------------------------------
# Block wrapper
# --------------------------------------------------------------------------------------
class BlockPallas:
    """Pallas/TPU implementation of the Xception `Block` (inference-mode BatchNorm)."""

    def __init__(self, key, in_channels, out_channels, reps, strides=1,
                 start_with_relu=True, grow_first=True):
        assert reps >= 1
        self.in_channels = in_channels
        self.out_channels = out_channels
        self.reps = reps
        self.strides = strides
        self.has_skip = (out_channels != in_channels) or (strides != 1)
        self.cin_p = _round_up(in_channels, LANE)
        self.cout_p = _round_up(out_channels, LANE)
        eps = 1e-5

        keys = jax.random.split(key, 3 * reps + 2)
        ki = iter(range(len(keys)))

        def bn_params(k, c):
            k1, k2, k3, k4 = jax.random.split(k, 4)
            gamma = 0.5 + jax.random.uniform(k1, (c,), jnp.float32)
            beta = 0.1 * jax.random.normal(k2, (c,), jnp.float32)
            mean = 0.1 * jax.random.normal(k3, (c,), jnp.float32)
            var = 0.5 + jax.random.uniform(k4, (c,), jnp.float32)
            return gamma, beta, mean, var

        self.torch_layers = []   # raw PyTorch-layout params (for the pure-JAX reference)
        self.layer_params = []   # channel-padded / bf16-matmul params for the kernel
        for i in range(reps):
            if grow_first:
                inc = in_channels if i == 0 else out_channels
                outc = out_channels
            else:
                inc = in_channels
                outc = in_channels if i < reps - 1 else out_channels
            apply_relu = start_with_relu or i > 0

            dw = 0.1 * jax.random.normal(keys[next(ki)], (inc, 1, 3, 3), jnp.float32)
            pw = 0.1 * jax.random.normal(keys[next(ki)], (outc, inc, 1, 1), jnp.float32)
            bn = bn_params(keys[next(ki)], outc)
            self.torch_layers.append(dict(dw=dw, pw=pw, bn=bn, relu=apply_relu))

            incp, outcp = _round_up(inc, LANE), _round_up(outc, LANE)
            gamma, beta, mean, var = bn
            scale = gamma / jnp.sqrt(var + eps)
            wd = jnp.transpose(dw[:, 0], (1, 2, 0)).reshape(9, 1, inc)   # (ky*3+kx, 1, c)
            wd = jnp.pad(wd, ((0, 0), (0, 0), (0, incp - inc)))
            wp = jnp.pad(pw[:, :, 0, 0].T,
                         ((0, incp - inc), (0, outcp - outc))).astype(jnp.bfloat16)
            sc = jnp.pad(scale, (0, outcp - outc)).reshape(1, outcp)      # BN in f32
            b = jnp.pad(beta - mean * scale, (0, outcp - outc)).reshape(1, outcp)
            self.layer_params.append(dict(wd=wd, wp=wp, scale=sc, b=b, bias=b,
                                          relu=apply_relu))

        if self.has_skip:
            sw = 0.1 * jax.random.normal(keys[next(ki)],
                                         (out_channels, in_channels, 1, 1), jnp.float32)
            sbn = bn_params(keys[next(ki)], out_channels)
            self.torch_skip = dict(w=sw, bn=sbn)
            g, bt, mn, vr = sbn
            ssc = g / jnp.sqrt(vr + eps)
            ws = jnp.pad(sw[:, :, 0, 0].T,
                         ((0, self.cin_p - in_channels),
                          (0, self.cout_p - out_channels))).astype(jnp.bfloat16)
            self.skip_params = dict(
                ws=ws,
                scale=jnp.pad(ssc, (0, self.cout_p - out_channels)).reshape(1, self.cout_p),
                bias=jnp.pad(bt - mn * ssc,
                             (0, self.cout_p - out_channels)).reshape(1, self.cout_p))
        else:
            self.torch_skip = None
            self.skip_params = None

        self._jit_forward = jax.jit(self._forward)

    def __call__(self, x_nchw):
        return self._jit_forward(x_nchw)

    def _forward(self, x_nchw):
        N, C, H, W = x_nchw.shape
        x = jnp.transpose(x_nchw, (0, 2, 3, 1))                      # NCHW -> NHWC
        x = jnp.pad(x, ((0, 0), (0, 0), (0, 0), (0, self.cin_p - C)))  # lane-dense pad
        y = block_forward(x, self.layer_params, self.skip_params, strides=self.strides)
        y = y[..., :self.out_channels]                               # drop channel pad
        return jnp.transpose(y, (0, 3, 1, 2))                        # back to NCHW

    # ---------------- pure-JAX reference (f32, HIGHEST precision) ----------------------
    def reference(self, x):
        prec = lax.Precision.HIGHEST
        eps = 1e-5

        def conv(h, w, stride=1, padding=0, groups=1):
            return lax.conv_general_dilated(
                h, w, (stride, stride), [(padding, padding)] * 2,
                dimension_numbers=('NCHW', 'OIHW', 'NCHW'),
                feature_group_count=groups, precision=prec)

        def bn(h, p):
            gamma, beta, mean, var = p
            s = gamma / jnp.sqrt(var + eps)
            return h * s[None, :, None, None] + (beta - mean * s)[None, :, None, None]

        h = x
        for lp in self.torch_layers:
            if lp['relu']:
                h = jnp.maximum(h, 0.0)
            h = conv(h, lp['dw'], padding=1, groups=lp['dw'].shape[0])   # depthwise 3x3
            h = conv(h, lp['pw'])                                        # pointwise 1x1
            h = bn(h, lp['bn'])
        if self.strides != 1:
            h = lax.reduce_window(h, -jnp.inf, lax.max, (1, 1, 3, 3),
                                  (1, 1, self.strides, self.strides),
                                  [(0, 0), (0, 0), (1, 1), (1, 1)])
        if self.torch_skip is not None:
            skip = bn(conv(x, self.torch_skip['w'], stride=self.strides),
                      self.torch_skip['bn'])
        else:
            skip = x
        return h + skip


# --------------------------------------------------------------------------------------
if __name__ == "__main__":
    key = jax.random.PRNGKey(0)
    k_params, k_params2, k_x = jax.random.split(key, 3)

    # 1) Xception-entry-flow style config: Block(4 -> 8, reps=2, strides=2) with skip+pool.
    block = BlockPallas(k_params, in_channels=4, out_channels=8, reps=2, strides=2,
                        start_with_relu=True, grow_first=True)
    x = jax.random.normal(k_x, (2, 4, 16, 16), jnp.float32)   # NCHW, like PyTorch
    y = jax.block_until_ready(block(x))
    assert y.shape == (2, 8, 8, 8), y.shape
    y_ref = jax.block_until_ready(block.reference(x))
    err1 = float(jnp.max(jnp.abs(y - y_ref)))
    assert jnp.allclose(y, y_ref, rtol=5e-2, atol=5e-2), f"max abs err = {err1}"

    # 2) Identity-skip config: Block(4 -> 4, reps=1, strides=1, start_with_relu=False).
    block2 = BlockPallas(k_params2, in_channels=4, out_channels=4, reps=1, strides=1,
                         start_with_relu=False, grow_first=True)
    y2 = jax.block_until_ready(block2(x))
    assert y2.shape == (2, 4, 16, 16), y2.shape
    y2_ref = jax.block_until_ready(block2.reference(x))
    err2 = float(jnp.max(jnp.abs(y2 - y2_ref)))
    assert jnp.allclose(y2, y2_ref, rtol=5e-2, atol=5e-2), f"max abs err = {err2}"

    print("KERNEL_OK")
</pallas_src>

<mosaic_0001>
module attributes {stable_mosaic.version = 11 : i64} {
  func.func @_block_kernel(%arg0: i32, %arg1: memref<1x16x16x128xf32, #tpu.memory_space<vmem>>, %arg2: memref<9x1x128xf32, #tpu.memory_space<vmem>>, %arg3: memref<128x128xbf16, #tpu.memory_space<vmem>>, %arg4: memref<1x128xf32, #tpu.memory_space<vmem>>, %arg5: memref<1x128xf32, #tpu.memory_space<vmem>>, %arg6: memref<9x1x128xf32, #tpu.memory_space<vmem>>, %arg7: memref<128x128xbf16, #tpu.memory_space<vmem>>, %arg8: memref<1x128xf32, #tpu.memory_space<vmem>>, %arg9: memref<1x128xf32, #tpu.memory_space<vmem>>, %arg10: memref<128x128xbf16, #tpu.memory_space<vmem>>, %arg11: memref<1x128xf32, #tpu.memory_space<vmem>>, %arg12: memref<1x128xf32, #tpu.memory_space<vmem>>, %arg13: memref<1x8x8x128xf32, #tpu.memory_space<vmem>>) attributes {dimension_semantics = [#tpu.dimension_semantics<parallel>], iteration_bounds = array<i64: 2>, scalar_prefetch = 0 : i64, scratch_operands = 0 : i64, tpu.core_type = #tpu.core_type<tc>, window_params = [{transform_indices = @transform_0, window_bounds = array<i64: 1, 16, 16, 128>}, {pipeline_mode = #tpu.pipeline_mode<synchronous>, transform_indices = @transform_1, window_bounds = array<i64: 9, 1, 128>}, {pipeline_mode = #tpu.pipeline_mode<synchronous>, transform_indices = @transform_2, window_bounds = array<i64: 128, 128>}, {pipeline_mode = #tpu.pipeline_mode<synchronous>, transform_indices = @transform_3, window_bounds = array<i64: 1, 128>}, {pipeline_mode = #tpu.pipeline_mode<synchronous>, transform_indices = @transform_4, window_bounds = array<i64: 1, 128>}, {pipeline_mode = #tpu.pipeline_mode<synchronous>, transform_indices = @transform_5, window_bounds = array<i64: 9, 1, 128>}, {pipeline_mode = #tpu.pipeline_mode<synchronous>, transform_indices = @transform_6, window_bounds = array<i64: 128, 128>}, {pipeline_mode = #tpu.pipeline_mode<synchronous>, transform_indices = @transform_7, window_bounds = array<i64: 1, 128>}, {pipeline_mode = #tpu.pipeline_mode<synchronous>, transform_indices = @transform_8, window_bounds = array<i64: 1, 128>}, {pipeline_mode = #tpu.pipeline_mode<synchronous>, transform_indices = @transform_9, window_bounds = array<i64: 128, 128>}, {pipeline_mode = #tpu.pipeline_mode<synchronous>, transform_indices = @transform_10, window_bounds = array<i64: 1, 128>}, {pipeline_mode = #tpu.pipeline_mode<synchronous>, transform_indices = @transform_11, window_bounds = array<i64: 1, 128>}, {transform_indices = @transform_12, window_bounds = array<i64: 1, 8, 8, 128>}]} {
    %c0 = arith.constant 0 : index
    %c0_0 = arith.constant 0 : index
    %c0_1 = arith.constant 0 : index
    %c0_2 = arith.constant 0 : index
    %0 = vector.load %arg1[%c0, %c0_0, %c0_1, %c0_2] : memref<1x16x16x128xf32, #tpu.memory_space<vmem>>, vector<1x16x16x128xf32>
    %1 = vector.shape_cast %0 : vector<1x16x16x128xf32> to vector<16x16x128xf32>
    %cst = arith.constant 0.000000e+00 : f32
    %2 = vector.broadcast %cst : f32 to vector<16x16x128xf32>
    %3 = arith.maximumf %1, %2 : vector<16x16x128xf32>
    %cst_3 = arith.constant 0.000000e+00 : f32
    %4 = vector.broadcast %cst_3 : f32 to vector<1x16x128xf32>
    %5 = tpu.concatenate %4, %3, %4 in 0 : vector<1x16x128xf32>, vector<16x16x128xf32>, vector<1x16x128xf32> -> vector<18x16x128xf32>
    %cst_4 = arith.constant 0.000000e+00 : f32
    %6 = vector.broadcast %cst_4 : f32 to vector<18x1x128xf32>
    %7 = tpu.concatenate %6, %5, %6 in 1 : vector<18x1x128xf32>, vector<18x16x128xf32>, vector<18x1x128xf32> -> vector<18x18x128xf32>
    %c0_5 = arith.constant 0 : index
    %c0_6 = arith.constant 0 : index
    %c0_7 = arith.constant 0 : index
    %8 = vector.load %arg2[%c0_5, %c0_6, %c0_7] : memref<9x1x128xf32, #tpu.memory_space<vmem>>, vector<9x1x128xf32>
    %cst_8 = arith.constant 0.000000e+00 : f32
    %9 = vector.broadcast %cst_8 : f32 to vector<16x16x128xf32>
    %10 = vector.extract_strided_slice %7 {offsets = [0, 0, 0], sizes = [18, 16, 128], strides = [1, 1, 1]} : vector<18x18x128xf32> to vector<18x16x128xf32>
    %11 = vector.extract_strided_slice %10 {offsets = [0, 0, 0], sizes = [16, 16, 128], strides = [1, 1, 1]} : vector<18x16x128xf32> to vector<16x16x128xf32>
    %12 = vector.extract_strided_slice %8 {offsets = [0, 0, 0], sizes = [1, 1, 128], strides = [1, 1, 1]} : vector<9x1x128xf32> to vector<1x1x128xf32>
    %13 = vector.shape_cast %12 : vector<1x1x128xf32> to vector<1x128xf32>
    %14 = vector.shape_cast %13 : vector<1x128xf32> to vector<1x1x128xf32>
    %15 = vector.broadcast %14 : vector<1x1x128xf32> to vector<16x16x128xf32>
    %16 = arith.mulf %11, %15 : vector<16x16x128xf32>
    %17 = arith.addf %9, %16 : vector<16x16x128xf32>
    %18 = vector.extract_strided_slice %10 {offsets = [1, 0, 0], sizes = [16, 16, 128], strides = [1, 1, 1]} : vector<18x16x128xf32> to vector<16x16x128xf32>
    %19 = vector.extract_strided_slice %8 {offsets = [3, 0, 0], sizes = [1, 1, 128], strides = [1, 1, 1]} : vector<9x1x128xf32> to vector<1x1x128xf32>
    %20 = vector.shape_cast %19 : vector<1x1x128xf32> to vector<1x128xf32>
    %21 = vector.shape_cast %20 : vector<1x128xf32> to vector<1x1x128xf32>
    %22 = vector.broadcast %21 : vector<1x1x128xf32> to vector<16x16x128xf32>
    %23 = arith.mulf %18, %22 : vector<16x16x128xf32>
    %24 = arith.addf %17, %23 : vector<16x16x128xf32>
    %25 = vector.extract_strided_slice %10 {offsets = [2, 0, 0], sizes = [16, 16, 128], strides = [1, 1, 1]} : vector<18x16x128xf32> to vector<16x16x128xf32>
    %26 = vector.extract_strided_slice %8 {offsets = [6, 0, 0], sizes = [1, 1, 128], strides = [1, 1, 1]} : vector<9x1x128xf32> to vector<1x1x128xf32>
    %27 = vector.shape_cast %26 : vector<1x1x128xf32> to vector<1x128xf32>
    %28 = vector.shape_cast %27 : vector<1x128xf32> to vector<1x1x128xf32>
    %29 = vector.broadcast %28 : vector<1x1x128xf32> to vector<16x16x128xf32>
    %30 = arith.mulf %25, %29 : vector<16x16x128xf32>
    %31 = arith.addf %24, %30 : vector<16x16x128xf32>
    %32 = vector.extract_strided_slice %7 {offsets = [0, 1, 0], sizes = [18, 16, 128], strides = [1, 1, 1]} : vector<18x18x128xf32> to vector<18x16x128xf32>
    %33 = vector.extract_strided_slice %32 {offsets = [0, 0, 0], sizes = [16, 16, 128], strides = [1, 1, 1]} : vector<18x16x128xf32> to vector<16x16x128xf32>
    %34 = vector.extract_strided_slice %8 {offsets = [1, 0, 0], sizes = [1, 1, 128], strides = [1, 1, 1]} : vector<9x1x128xf32> to vector<1x1x128xf32>
    %35 = vector.shape_cast %34 : vector<1x1x128xf32> to vector<1x128xf32>
    %36 = vector.shape_cast %35 : vector<1x128xf32> to vector<1x1x128xf32>
    %37 = vector.broadcast %36 : vector<1x1x128xf32> to vector<16x16x128xf32>
    %38 = arith.mulf %33, %37 : vector<16x16x128xf32>
    %39 = arith.addf %31, %38 : vector<16x16x128xf32>
    %40 = vector.extract_strided_slice %32 {offsets = [1, 0, 0], sizes = [16, 16, 128], strides = [1, 1, 1]} : vector<18x16x128xf32> to vector<16x16x128xf32>
    %41 = vector.extract_strided_slice %8 {offsets = [4, 0, 0], sizes = [1, 1, 128], strides = [1, 1, 1]} : vector<9x1x128xf32> to vector<1x1x128xf32>
    %42 = vector.shape_cast %41 : vector<1x1x128xf32> to vector<1x128xf32>
    %43 = vector.shape_cast %42 : vector<1x128xf32> to vector<1x1x128xf32>
    %44 = vector.broadcast %43 : vector<1x1x128xf32> to vector<16x16x128xf32>
    %45 = arith.mulf %40, %44 : vector<16x16x128xf32>
    %46 = arith.addf %39, %45 : vector<16x16x128xf32>
    %47 = vector.extract_strided_slice %32 {offsets = [2, 0, 0], sizes = [16, 16, 128], strides = [1, 1, 1]} : vector<18x16x128xf32> to vector<16x16x128xf32>
    %48 = vector.extract_strided_slice %8 {offsets = [7, 0, 0], sizes = [1, 1, 128], strides = [1, 1, 1]} : vector<9x1x128xf32> to vector<1x1x128xf32>
    %49 = vector.shape_cast %48 : vector<1x1x128xf32> to vector<1x128xf32>
    %50 = vector.shape_cast %49 : vector<1x128xf32> to vector<1x1x128xf32>
    %51 = vector.broadcast %50 : vector<1x1x128xf32> to vector<16x16x128xf32>
    %52 = arith.mulf %47, %51 : vector<16x16x128xf32>
    %53 = arith.addf %46, %52 : vector<16x16x128xf32>
    %54 = vector.extract_strided_slice %7 {offsets = [0, 2, 0], sizes = [18, 16, 128], strides = [1, 1, 1]} : vector<18x18x128xf32> to vector<18x16x128xf32>
    %55 = vector.extract_strided_slice %54 {offsets = [0, 0, 0], sizes = [16, 16, 128], strides = [1, 1, 1]} : vector<18x16x128xf32> to vector<16x16x128xf32>
    %56 = vector.extract_strided_slice %8 {offsets = [2, 0, 0], sizes = [1, 1, 128], strides = [1, 1, 1]} : vector<9x1x128xf32> to vector<1x1x128xf32>
    %57 = vector.shape_cast %56 : vector<1x1x128xf32> to vector<1x128xf32>
    %58 = vector.shape_cast %57 : vector<1x128xf32> to vector<1x1x128xf32>
    %59 = vector.broadcast %58 : vector<1x1x128xf32> to vector<16x16x128xf32>
    %60 = arith.mulf %55, %59 : vector<16x16x128xf32>
    %61 = arith.addf %53, %60 : vector<16x16x128xf32>
    %62 = vector.extract_strided_slice %54 {offsets = [1, 0, 0], sizes = [16, 16, 128], strides = [1, 1, 1]} : vector<18x16x128xf32> to vector<16x16x128xf32>
    %63 = vector.extract_strided_slice %8 {offsets = [5, 0, 0], sizes = [1, 1, 128], strides = [1, 1, 1]} : vector<9x1x128xf32> to vector<1x1x128xf32>
    %64 = vector.shape_cast %63 : vector<1x1x128xf32> to vector<1x128xf32>
    %65 = vector.shape_cast %64 : vector<1x128xf32> to vector<1x1x128xf32>
    %66 = vector.broadcast %65 : vector<1x1x128xf32> to vector<16x16x128xf32>
    %67 = arith.mulf %62, %66 : vector<16x16x128xf32>
    %68 = arith.addf %61, %67 : vector<16x16x128xf32>
    %69 = vector.extract_strided_slice %54 {offsets = [2, 0, 0], sizes = [16, 16, 128], strides = [1, 1, 1]} : vector<18x16x128xf32> to vector<16x16x128xf32>
    %70 = vector.extract_strided_slice %8 {offsets = [8, 0, 0], sizes = [1, 1, 128], strides = [1, 1, 1]} : vector<9x1x128xf32> to vector<1x1x128xf32>
    %71 = vector.shape_cast %70 : vector<1x1x128xf32> to vector<1x128xf32>
    %72 = vector.shape_cast %71 : vector<1x128xf32> to vector<1x1x128xf32>
    %73 = vector.broadcast %72 : vector<1x1x128xf32> to vector<16x16x128xf32>
    %74 = arith.mulf %69, %73 : vector<16x16x128xf32>
    %75 = arith.addf %68, %74 : vector<16x16x128xf32>
    %76 = vector.shape_cast %75 : vector<16x16x128xf32> to vector<256x128xf32>
    %77 = arith.truncf %76 : vector<256x128xf32> to vector<256x128xbf16>
    %c0_9 = arith.constant 0 : index
    %c0_10 = arith.constant 0 : index
    %78 = vector.load %arg3[%c0_9, %c0_10] : memref<128x128xbf16, #tpu.memory_space<vmem>>, vector<128x128xbf16>
    %cst_11 = arith.constant dense<0.000000e+00> : vector<256x128xf32>
    %79 = tpu.matmul %77, %78, %cst_11 {dimension_numbers = #tpu.dot_dimension_numbers<[1], [0], [0], [1], [0, 0, 1, 1], [], []>} : vector<256x128xbf16>, vector<128x128xbf16>, vector<256x128xf32> -> vector<256x128xf32>
    %c0_12 = arith.constant 0 : index
    %c0_13 = arith.constant 0 : index
    %80 = vector.load %arg4[%c0_12, %c0_13] : memref<1x128xf32, #tpu.memory_space<vmem>>, vector<1x128xf32>
    %81 = vector.broadcast %80 : vector<1x128xf32> to vector<256x128xf32>
    %82 = arith.mulf %79, %81 : vector<256x128xf32>
    %c0_14 = arith.constant 0 : index
    %c0_15 = arith.constant 0 : index
    %83 = vector.load %arg5[%c0_14, %c0_15] : memref<1x128xf32, #tpu.memory_space<vmem>>, vector<1x128xf32>
    %84 = vector.broadcast %83 : vector<1x128xf32> to vector<256x128xf32>
    %85 = arith.addf %82, %84 : vector<256x128xf32>
    %86 = vector.shape_cast %85 : vector<256x128xf32> to vector<16x16x128xf32>
    %cst_16 = arith.constant 0.000000e+00 : f32
    %87 = vector.broadcast %cst_16 : f32 to vector<16x16x128xf32>
    %88 = arith.maximumf %86, %87 : vector<16x16x128xf32>
    %cst_17 = arith.constant 0.000000e+00 : f32
    %89 = vector.broadcast %cst_17 : f32 to vector<1x16x128xf32>
    %90 = tpu.concatenate %89, %88, %89 in 0 : vector<1x16x128xf32>, vector<16x16x128xf32>, vector<1x16x128xf32> -> vector<18x16x128xf32>
    %cst_18 = arith.constant 0.000000e+00 : f32
    %91 = vector.broadcast %cst_18 : f32 to vector<18x1x128xf32>
    %92 = tpu.concatenate %91, %90, %91 in 1 : vector<18x1x128xf32>, vector<18x16x128xf32>, vector<18x1x128xf32> -> vector<18x18x128xf32>
    %c0_19 = arith.constant 0 : index
    %c0_20 = arith.constant 0 : index
    %c0_21 = arith.constant 0 : index
    %93 = vector.load %arg6[%c0_19, %c0_20, %c0_21] : memref<9x1x128xf32, #tpu.memory_space<vmem>>, vector<9x1x128xf32>
    %cst_22 = arith.constant 0.000000e+00 : f32
    %94 = vector.broadcast %cst_22 : f32 to vector<16x16x128xf32>
    %95 = vector.extract_strided_slice %92 {offsets = [0, 0, 0], sizes = [18, 16, 128], strides = [1, 1, 1]} : vector<18x18x128xf32> to vector<18x16x128xf32>
    %96 = vector.extract_strided_slice %95 {offsets = [0, 0, 0], sizes = [16, 16, 128], strides = [1, 1, 1]} : vector<18x16x128xf32> to vector<16x16x128xf32>
    %97 = vector.extract_strided_slice %93 {offsets = [0, 0, 0], sizes = [1, 1, 128], strides = [1, 1, 1]} : vector<9x1x128xf32> to vector<1x1x128xf32>
    %98 = vector.shape_cast %97 : vector<1x1x128xf32> to vector<1x128xf32>
    %99 = vector.shape_cast %98 : vector<1x128xf32> to vector<1x1x128xf32>
    %100 = vector.broadcast %99 : vector<1x1x128xf32> to vector<16x16x128xf32>
    %101 = arith.mulf %96, %100 : vector<16x16x128xf32>
    %102 = arith.addf %94, %101 : vector<16x16x128xf32>
    %103 = vector.extract_strided_slice %95 {offsets = [1, 0, 0], sizes = [16, 16, 128], strides = [1, 1, 1]} : vector<18x16x128xf32> to vector<16x16x128xf32>
    %104 = vector.extract_strided_slice %93 {offsets = [3, 0, 0], sizes = [1, 1, 128], strides = [1, 1, 1]} : vector<9x1x128xf32> to vector<1x1x128xf32>
    %105 = vector.shape_cast %104 : vector<1x1x128xf32> to vector<1x128xf32>
    %106 = vector.shape_cast %105 : vector<1x128xf32> to vector<1x1x128xf32>
    %107 = vector.broadcast %106 : vector<1x1x128xf32> to vector<16x16x128xf32>
    %108 = arith.mulf %103, %107 : vector<16x16x128xf32>
    %109 = arith.addf %102, %108 : vector<16x16x128xf32>
    %110 = vector.extract_strided_slice %95 {offsets = [2, 0, 0], sizes = [16, 16, 128], strides = [1, 1, 1]} : vector<18x16x128xf32> to vector<16x16x128xf32>
    %111 = vector.extract_strided_slice %93 {offsets = [6, 0, 0], sizes = [1, 1, 128], strides = [1, 1, 1]} : vector<9x1x128xf32> to vector<1x1x128xf32>
    %112 = vector.shape_cast %111 : vector<1x1x128xf32> to vector<1x128xf32>
    %113 = vector.shape_cast %112 : vector<1x128xf32> to vector<1x1x128xf32>
    %114 = vector.broadcast %113 : vector<1x1x128xf32> to vector<16x16x128xf32>
    %115 = arith.mulf %110, %114 : vector<16x16x128xf32>
    %116 = arith.addf %109, %115 : vector<16x16x128xf32>
    %117 = vector.extract_strided_slice %92 {offsets = [0, 1, 0], sizes = [18, 16, 128], strides = [1, 1, 1]} : vector<18x18x128xf32> to vector<18x16x128xf32>
    %118 = vector.extract_strided_slice %117 {offsets = [0, 0, 0], sizes = [16, 16, 128], strides = [1, 1, 1]} : vector<18x16x128xf32> to vector<16x16x128xf32>
    %119 = vector.extract_strided_slice %93 {offsets = [1, 0, 0], sizes = [1, 1, 128], strides = [1, 1, 1]} : vector<9x1x128xf32> to vector<1x1x128xf32>
    %120 = vector.shape_cast %119 : vector<1x1x128xf32> to vector<1x128xf32>
    %121 = vector.shape_cast %120 : vector<1x128xf32> to vector<1x1x128xf32>
    %122 = vector.broadcast %121 : vector<1x1x128xf32> to vector<16x16x128xf32>
    %123 = arith.mulf %118, %122 : vector<16x16x128xf32>
    %124 = arith.addf %116, %123 : vector<16x16x128xf32>
    %125 = vector.extract_strided_slice %117 {offsets = [1, 0, 0], sizes = [16, 16, 128], strides = [1, 1, 1]} : vector<18x16x128xf32> to vector<16x16x128xf32>
    %126 = vector.extract_strided_slice %93 {offsets = [4, 0, 0], sizes = [1, 1, 128], strides = [1, 1, 1]} : vector<9x1x128xf32> to vector<1x1x128xf32>
    %127 = vector.shape_cast %126 : vector<1x1x128xf32> to vector<1x128xf32>
    %128 = vector.shape_cast %127 : vector<1x128xf32> to vector<1x1x128xf32>
    %129 = vector.broadcast %128 : vector<1x1x128xf32> to vector<16x16x128xf32>
    %130 = arith.mulf %125, %129 : vector<16x16x128xf32>
    %131 = arith.addf %124, %130 : vector<16x16x128xf32>
    %132 = vector.extract_strided_slice %117 {offsets = [2, 0, 0], sizes = [16, 16, 128], strides = [1, 1, 1]} : vector<18x16x128xf32> to vector<16x16x128xf32>
    %133 = vector.extract_strided_slice %93 {offsets = [7, 0, 0], sizes = [1, 1, 128], strides = [1, 1, 1]} : vector<9x1x128xf32> to vector<1x1x128xf32>
    %134 = vector.shape_cast %133 : vector<1x1x128xf32> to vector<1x128xf32>
    %135 = vector.shape_cast %134 : vector<1x128xf32> to vector<1x1x128xf32>
    %136 = vector.broadcast %135 : vector<1x1x128xf32> to vector<16x16x128xf32>
    %137 = arith.mulf %132, %136 : vector<16x16x128xf32>
    %138 = arith.addf %131, %137 : vector<16x16x128xf32>
    %139 = vector.extract_strided_slice %92 {offsets = [0, 2, 0], sizes = [18, 16, 128], strides = [1, 1, 1]} : vector<18x18x128xf32> to vector<18x16x128xf32>
    %140 = vector.extract_strided_slice %139 {offsets = [0, 0, 0], sizes = [16, 16, 128], strides = [1, 1, 1]} : vector<18x16x128xf32> to vector<16x16x128xf32>
    %141 = vector.extract_strided_slice %93 {offsets = [2, 0, 0], sizes = [1, 1, 128], strides = [1, 1, 1]} : vector<9x1x128xf32> to vector<1x1x128xf32>
    %142 = vector.shape_cast %141 : vector<1x1x128xf32> to vector<1x128xf32>
    %143 = vector.shape_cast %142 : vector<1x128xf32> to vector<1x1x128xf32>
    %144 = vector.broadcast %143 : vector<1x1x128xf32> to vector<16x16x128xf32>
    %145 = arith.mulf %140, %144 : vector<16x16x128xf32>
    %146 = arith.addf %138, %145 : vector<16x16x128xf32>
    %147 = vector.extract_strided_slice %139 {offsets = [1, 0, 0], sizes = [16, 16, 128], strides = [1, 1, 1]} : vector<18x16x128xf32> to vector<16x16x128xf32>
    %148 = vector.extract_strided_slice %93 {offsets = [5, 0, 0], sizes = [1, 1, 128], strides = [1, 1, 1]} : vector<9x1x128xf32> to vector<1x1x128xf32>
    %149 = vector.shape_cast %148 : vector<1x1x128xf32> to vector<1x128xf32>
    %150 = vector.shape_cast %149 : vector<1x128xf32> to vector<1x1x128xf32>
    %151 = vector.broadcast %150 : vector<1x1x128xf32> to vector<16x16x128xf32>
    %152 = arith.mulf %147, %151 : vector<16x16x128xf32>
    %153 = arith.addf %146, %152 : vector<16x16x128xf32>
    %154 = vector.extract_strided_slice %139 {offsets = [2, 0, 0], sizes = [16, 16, 128], strides = [1, 1, 1]} : vector<18x16x128xf32> to vector<16x16x128xf32>
    %155 = vector.extract_strided_slice %93 {offsets = [8, 0, 0], sizes = [1, 1, 128], strides = [1, 1, 1]} : vector<9x1x128xf32> to vector<1x1x128xf32>
    %156 = vector.shape_cast %155 : vector<1x1x128xf32> to vector<1x128xf32>
    %157 = vector.shape_cast %156 : vector<1x128xf32> to vector<1x1x128xf32>
    %158 = vector.broadcast %157 : vector<1x1x128xf32> to vector<16x16x128xf32>
    %159 = arith.mulf %154, %158 : vector<16x16x128xf32>
    %160 = arith.addf %153, %159 : vector<16x16x128xf32>
    %161 = vector.shape_cast %160 : vector<16x16x128xf32> to vector<256x128xf32>
    %162 = arith.truncf %161 : vector<256x128xf32> to vector<256x128xbf16>
    %c0_23 = arith.constant 0 : index
    %c0_24 = arith.constant 0 : index
    %163 = vector.load %arg7[%c0_23, %c0_24] : memref<128x128xbf16, #tpu.memory_space<vmem>>, vector<128x128xbf16>
    %cst_25 = arith.constant dense<0.000000e+00> : vector<256x128xf32>
    %164 = tpu.matmul %162, %163, %cst_25 {dimension_numbers = #tpu.dot_dimension_numbers<[1], [0], [0], [1], [0, 0, 1, 1], [], []>} : vector<256x128xbf16>, vector<128x128xbf16>, vector<256x128xf32> -> vector<256x128xf32>
    %c0_26 = arith.constant 0 : index
    %c0_27 = arith.constant 0 : index
    %165 = vector.load %arg8[%c0_26, %c0_27] : memref<1x128xf32, #tpu.memory_space<vmem>>, vector<1x128xf32>
    %166 = vector.broadcast %165 : vector<1x128xf32> to vector<256x128xf32>
    %167 = arith.mulf %164, %166 : vector<256x128xf32>
    %c0_28 = arith.constant 0 : index
    %c0_29 = arith.constant 0 : index
    %168 = vector.load %arg9[%c0_28, %c0_29] : memref<1x128xf32, #tpu.memory_space<vmem>>, vector<1x128xf32>
    %169 = vector.broadcast %168 : vector<1x128xf32> to vector<256x128xf32>
    %170 = arith.addf %167, %169 : vector<256x128xf32>
    %171 = vector.shape_cast %170 : vector<256x128xf32> to vector<16x16x128xf32>
    %cst_30 = arith.constant 0xFF800000 : f32
    %172 = vector.broadcast %cst_30 : f32 to vector<1x16x128xf32>
    %173 = tpu.concatenate %172, %171, %172 in 0 : vector<1x16x128xf32>, vector<16x16x128xf32>, vector<1x16x128xf32> -> vector<18x16x128xf32>
    %cst_31 = arith.constant 0xFF800000 : f32
    %174 = vector.broadcast %cst_31 : f32 to vector<18x1x128xf32>
    %175 = tpu.concatenate %174, %173, %174 in 1 : vector<18x1x128xf32>, vector<18x16x128xf32>, vector<18x1x128xf32> -> vector<18x18x128xf32>
    %176 = vector.extract_strided_slice %175 {offsets = [0, 0, 0], sizes = [18, 16, 128], strides = [1, 1, 1]} : vector<18x18x128xf32> to vector<18x16x128xf32>
    %177 = vector.extract_strided_slice %175 {offsets = [0, 1, 0], sizes = [18, 16, 128], strides = [1, 1, 1]} : vector<18x18x128xf32> to vector<18x16x128xf32>
    %178 = arith.maximumf %176, %177 : vector<18x16x128xf32>
    %179 = vector.extract_strided_slice %175 {offsets = [0, 2, 0], sizes = [18, 16, 128], strides = [1, 1, 1]} : vector<18x18x128xf32> to vector<18x16x128xf32>
    %180 = arith.maximumf %178, %179 : vector<18x16x128xf32>
    %181 = vector.extract_strided_slice %180 {offsets = [0, 0, 0], sizes = [16, 16, 128], strides = [1, 1, 1]} : vector<18x16x128xf32> to vector<16x16x128xf32>
    %182 = vector.extract_strided_slice %180 {offsets = [1, 0, 0], sizes = [16, 16, 128], strides = [1, 1, 1]} : vector<18x16x128xf32> to vector<16x16x128xf32>
    %183 = arith.maximumf %181, %182 : vector<16x16x128xf32>
    %184 = vector.extract_strided_slice %180 {offsets = [2, 0, 0], sizes = [16, 16, 128], strides = [1, 1, 1]} : vector<18x16x128xf32> to vector<16x16x128xf32>
    %185 = arith.maximumf %183, %184 : vector<16x16x128xf32>
    %186 = vector.shape_cast %185 : vector<16x16x128xf32> to vector<8x2x16x128xf32>
    %187 = vector.extract_strided_slice %186 {offsets = [0, 0, 0, 0], sizes = [8, 1, 16, 128], strides = [1, 1, 1, 1]} : vector<8x2x16x128xf32> to vector<8x1x16x128xf32>
    %188 = vector.shape_cast %187 : vector<8x1x16x128xf32> to vector<8x16x128xf32>
    %189 = vector.shape_cast %188 : vector<8x16x128xf32> to vector<8x8x2x128xf32>
    %190 = vector.extract_strided_slice %189 {offsets = [0, 0, 0, 0], sizes = [8, 8, 1, 128], strides = [1, 1, 1, 1]} : vector<8x8x2x128xf32> to vector<8x8x1x128xf32>
    %191 = vector.shape_cast %190 : vector<8x8x1x128xf32> to vector<8x8x128xf32>
    %192 = vector.shape_cast %1 : vector<16x16x128xf32> to vector<8x2x16x128xf32>
    %193 = vector.extract_strided_slice %192 {offsets = [0, 0, 0, 0], sizes = [8, 1, 16, 128], strides = [1, 1, 1, 1]} : vector<8x2x16x128xf32> to vector<8x1x16x128xf32>
    %194 = vector.shape_cast %193 : vector<8x1x16x128xf32> to vector<8x16x128xf32>
    %195 = vector.shape_cast %194 : vector<8x16x128xf32> to vector<8x8x2x128xf32>
    %196 = vector.extract_strided_slice %195 {offsets = [0, 0, 0, 0], sizes = [8, 8, 1, 128], strides = [1, 1, 1, 1]} : vector<8x8x2x128xf32> to vector<8x8x1x128xf32>
    %197 = vector.shape_cast %196 : vector<8x8x1x128xf32> to vector<8x8x128xf32>
    %198 = vector.shape_cast %197 : vector<8x8x128xf32> to vector<64x128xf32>
    %199 = arith.truncf %198 : vector<64x128xf32> to vector<64x128xbf16>
    %c0_32 = arith.constant 0 : index
    %c0_33 = arith.constant 0 : index
    %200 = vector.load %arg10[%c0_32, %c0_33] : memref<128x128xbf16, #tpu.memory_space<vmem>>, vector<128x128xbf16>
    %cst_34 = arith.constant dense<0.000000e+00> : vector<64x128xf32>
    %201 = tpu.matmul %199, %200, %cst_34 {dimension_numbers = #tpu.dot_dimension_numbers<[1], [0], [0], [1], [0, 0, 1, 1], [], []>} : vector<64x128xbf16>, vector<128x128xbf16>, vector<64x128xf32> -> vector<64x128xf32>
    %c0_35 = arith.constant 0 : index
    %c0_36 = arith.constant 0 : index
    %202 = vector.load %arg11[%c0_35, %c0_36] : memref<1x128xf32, #tpu.memory_space<vmem>>, vector<1x128xf32>
    %203 = vector.broadcast %202 : vector<1x128xf32> to vector<64x128xf32>
    %204 = arith.mulf %201, %203 : vector<64x128xf32>
    %c0_37 = arith.constant 0 : index
    %c0_38 = arith.constant 0 : index
    %205 = vector.load %arg12[%c0_37, %c0_38] : memref<1x128xf32, #tpu.memory_space<vmem>>, vector<1x128xf32>
    %206 = vector.broadcast %205 : vector<1x128xf32> to vector<64x128xf32>
    %207 = arith.addf %204, %206 : vector<64x128xf32>
    %208 = vector.shape_cast %207 : vector<64x128xf32> to vector<8x8x128xf32>
    %209 = arith.addf %191, %208 : vector<8x8x128xf32>
    %c0_39 = arith.constant 0 : index
    %c0_40 = arith.constant 0 : index
    %c0_41 = arith.constant 0 : index
    %c0_42 = arith.constant 0 : index
    %210 = vector.load %arg13[%c0_39, %c0_40, %c0_41, %c0_42] : memref<1x8x8x128xf32, #tpu.memory_space<vmem>>, vector<1x8x8x128xf32>
    %211 = vector.shape_cast %210 : vector<1x8x8x128xf32> to vector<8x8x128xf32>
    %212 = vector.shape_cast %209 : vector<8x8x128xf32> to vector<1x8x8x128xf32>
    tpu.vector_store %arg13[%c0_39, %c0_40, %c0_41, %c0_42], %212 {strides = array<i32>} : memref<1x8x8x128xf32, #tpu.memory_space<vmem>>, vector<1x8x8x128xf32>,
    return
  }
  func.func @transform_0(%arg0: i32) -> (i32, i32, i32, i32) {
    %c0_i32 = arith.constant 0 : i32
    %c0_i32_0 = arith.constant 0 : i32
    %c0_i32_1 = arith.constant 0 : i32
    %c0_i32_2 = arith.constant 0 : i32
    return %arg0, %c0_i32, %c0_i32_0, %c0_i32_1 : i32, i32, i32, i32
  }
  func.func @transform_1(%arg0: i32) -> (i32, i32, i32) {
    %c0_i32 = arith.constant 0 : i32
    %c0_i32_0 = arith.constant 0 : i32
    %c0_i32_1 = arith.constant 0 : i32
    %c0_i32_2 = arith.constant 0 : i32
    return %c0_i32, %c0_i32_0, %c0_i32_1 : i32, i32, i32
  }
  func.func @transform_2(%arg0: i32) -> (i32, i32) {
    %c0_i32 = arith.constant 0 : i32
    %c0_i32_0 = arith.constant 0 : i32
    %c0_i32_1 = arith.constant 0 : i32
    return %c0_i32, %c0_i32_0 : i32, i32
  }
  func.func @transform_3(%arg0: i32) -> (i32, i32) {
    %c0_i32 = arith.constant 0 : i32
    %c0_i32_0 = arith.constant 0 : i32
    %c0_i32_1 = arith.constant 0 : i32
    return %c0_i32, %c0_i32_0 : i32, i32
  }
  func.func @transform_4(%arg0: i32) -> (i32, i32) {
    %c0_i32 = arith.constant 0 : i32
    %c0_i32_0 = arith.constant 0 : i32
    %c0_i32_1 = arith.constant 0 : i32
    return %c0_i32, %c0_i32_0 : i32, i32
  }
  func.func @transform_5(%arg0: i32) -> (i32, i32, i32) {
    %c0_i32 = arith.constant 0 : i32
    %c0_i32_0 = arith.constant 0 : i32
    %c0_i32_1 = arith.constant 0 : i32
    %c0_i32_2 = arith.constant 0 : i32
    return %c0_i32, %c0_i32_0, %c0_i32_1 : i32, i32, i32
  }
  func.func @transform_6(%arg0: i32) -> (i32, i32) {
    %c0_i32 = arith.constant 0 : i32
    %c0_i32_0 = arith.constant 0 : i32
    %c0_i32_1 = arith.constant 0 : i32
    return %c0_i32, %c0_i32_0 : i32, i32
  }
  func.func @transform_7(%arg0: i32) -> (i32, i32) {
    %c0_i32 = arith.constant 0 : i32
    %c0_i32_0 = arith.constant 0 : i32
    %c0_i32_1 = arith.constant 0 : i32
    return %c0_i32, %c0_i32_0 : i32, i32
  }
  func.func @transform_8(%arg0: i32) -> (i32, i32) {
    %c0_i32 = arith.constant 0 : i32
    %c0_i32_0 = arith.constant 0 : i32
    %c0_i32_1 = arith.constant 0 : i32
    return %c0_i32, %c0_i32_0 : i32, i32
  }
  func.func @transform_9(%arg0: i32) -> (i32, i32) {
    %c0_i32 = arith.constant 0 : i32
    %c0_i32_0 = arith.constant 0 : i32
    %c0_i32_1 = arith.constant 0 : i32
    return %c0_i32, %c0_i32_0 : i32, i32
  }
  func.func @transform_10(%arg0: i32) -> (i32, i32) {
    %c0_i32 = arith.constant 0 : i32
    %c0_i32_0 = arith.constant 0 : i32
    %c0_i32_1 = arith.constant 0 : i32
    return %c0_i32, %c0_i32_0 : i32, i32
  }
  func.func @transform_11(%arg0: i32) -> (i32, i32) {
    %c0_i32 = arith.constant 0 : i32
    %c0_i32_0 = arith.constant 0 : i32
    %c0_i32_1 = arith.constant 0 : i32
    return %c0_i32, %c0_i32_0 : i32, i32
  }
  func.func @transform_12(%arg0: i32) -> (i32, i32, i32, i32) {
    %c0_i32 = arith.constant 0 : i32
    %c0_i32_0 = arith.constant 0 : i32
    %c0_i32_1 = arith.constant 0 : i32
    %c0_i32_2 = arith.constant 0 : i32
    return %arg0, %c0_i32, %c0_i32_0, %c0_i32_1 : i32, i32, i32, i32
  }
}

</mosaic_0001>

<llo_original>
// kernel: _forward.1
$region0: #{_forward.1}
  #allocation0 [shape = 'u32[]', space=smem, size = 0x4, offset = 0x4, fixed_abs, tag = 'smem constant byte address 0x4 - core index']
  #allocation1 [shape = 'u32[144,128]{1,0:T(1,128)}', space=vmem, size = 0x12000, scoped, tag = 'internal scratch']
  %s0 = inlined_call_operand.hbm [shape: f32[2,16,16,128], index: 0, kind: input, shape index: {}]
  %s1 = inlined_call_operand.hbm [shape: f32[9,1,128], index: 1, kind: input, shape index: {}]
  %s2 = inlined_call_operand.hbm [shape: bf16[128,128], index: 2, kind: input, shape index: {}]
  %s3 = inlined_call_operand.hbm [shape: f32[1,128], index: 3, kind: input, shape index: {}]
  %s4 = inlined_call_operand.hbm [shape: f32[1,128], index: 4, kind: input, shape index: {}]
  %s5 = inlined_call_operand.hbm [shape: f32[9,1,128], index: 5, kind: input, shape index: {}]
  %s6 = inlined_call_operand.hbm [shape: bf16[128,128], index: 6, kind: input, shape index: {}]
  %s7 = inlined_call_operand.hbm [shape: f32[1,128], index: 7, kind: input, shape index: {}]
  %s8 = inlined_call_operand.hbm [shape: f32[1,128], index: 8, kind: input, shape index: {}]
  %s9 = inlined_call_operand.hbm [shape: bf16[128,128], index: 9, kind: input, shape index: {}]
  %s10 = inlined_call_operand.hbm [shape: f32[1,128], index: 10, kind: input, shape index: {}]
  %s11 = inlined_call_operand.hbm [shape: f32[1,128], index: 11, kind: input, shape index: {}]
  %s12 = inlined_call_operand.hbm [shape: f32[2,8,8,128], index: 12, kind: output, shape index: {}]
  %s13 = sld [smem:[#allocation0]]
  $region129: #{_forward.1} parent=0
    _
  %s15 = ssub.s32 1, %s13
  %s16 = scalar_select 0, %s15, %s13
  $region1: #{_forward.1} parent=0
    #allocation2 [shape = 'u8[262144]{0}', space=vmem, size = 0x40000, scoped, tag = 'input window, operand 0']
    #allocation3 [shape = 's32[2]{0}', space=sflag, size = 0x8, scoped, tag = 'scoped memory for _forward.1']
    #allocation4 [shape = 's32[2]{0}', space=sflag, size = 0x8, scoped, tag = 'scoped memory for _forward.1']
    #allocation5 [shape = 'u8[4608]{0}', space=vmem, size = 0x1400, scoped, tag = 'input window, operand 1, single buffered']
    #allocation6 [shape = 's32[1]{0}', space=sflag, size = 0x4, scoped, tag = 'scoped memory for _forward.1']
    #allocation7 [shape = 'u8[32768]{0}', space=vmem, size = 0x8000, scoped, tag = 'input window, operand 2, single buffered']
    #allocation8 [shape = 'u8[512]{0}', space=vmem, size = 0x400, scoped, tag = 'input window, operand 3, single buffered']
    #allocation9 [shape = 's32[1]{0}', space=sflag, size = 0x4, scoped, tag = 'scoped memory for _forward.1']
    #allocation10 [shape = 'u8[512]{0}', space=vmem, size = 0x400, scoped, tag = 'input window, operand 4, single buffered']
    #allocation11 [shape = 'u8[4608]{0}', space=vmem, size = 0x1400, scoped, tag = 'input window, operand 5, single buffered']
    #allocation12 [shape = 's32[1]{0}', space=sflag, size = 0x4, scoped, tag = 'scoped memory for _forward.1']
    #allocation13 [shape = 'u8[32768]{0}', space=vmem, size = 0x8000, scoped, tag = 'input window, operand 6, single buffered']
    #allocation14 [shape = 'u8[512]{0}', space=vmem, size = 0x400, scoped, tag = 'input window, operand 7, single buffered']
    #allocation15 [shape = 's32[1]{0}', space=sflag, size = 0x4, scoped, tag = 'scoped memory for _forward.1']
    #allocation16 [shape = 'u8[512]{0}', space=vmem, size = 0x400, scoped, tag = 'input window, operand 8, single buffered']
    #allocation17 [shape = 'u8[32768]{0}', space=vmem, size = 0x8000, scoped, tag = 'input window, operand 9, single buffered']
    #allocation18 [shape = 's32[1]{0}', space=sflag, size = 0x4, scoped, tag = 'scoped memory for _forward.1']
    #allocation19 [shape = 'u8[512]{0}', space=vmem, size = 0x400, scoped, tag = 'input window, operand 10, single buffered']
    #allocation20 [shape = 'u8[512]{0}', space=vmem, size = 0x400, scoped, tag = 'input window, operand 11, single buffered']
    #allocation21 [shape = 's32[1]{0}', space=sflag, size = 0x4, scoped, tag = 'scoped memory for _forward.1']
    #allocation22 [shape = 'u8[65536]{0}', space=vmem, size = 0x10000, scoped, tag = 'output window, operand 0']
    %17 = vsyncpa [#allocation3], 0
    %s18 = scalar_lea.sflag [#allocation3], 1
    %19 = vsyncpa %s18, 0
    %20 = vsyncpa [#allocation6], 0
    %21 = vsyncpa [#allocation9], 0
    %22 = vsyncpa [#allocation12], 0
    %23 = vsyncpa [#allocation15], 0
    %24 = vsyncpa [#allocation18], 0
    %25 = vsyncpa [#allocation21], 0
    %26 = vsyncpa [#allocation4], 0
    %s27 = scalar_lea.sflag [#allocation4], 1
    %28 = vsyncpa %s27, 0
    loop: start=0, step=1, limit=4
    $region2: #{_forward.1} parent=1 // loop_pre_header
      _
    $region3: #{_forward.1} parent=1 // loop_header
      %s30 = sphi 0, %s34
      %p31 = scmp.ge.s32.totalorder %s30, 4
      %s40 = sphi 0, %s42
      %s43 = sphi 0, %s40
      %s44 = sphi 0, %s43
      %s60 = sphi 0, %s44
      %s64 = sphi 0, %s64
      %s66 = sphi 0, %s64
      %s67 = sphi 0, %s66
      %s81 = sphi 0, %s67
      %s85 = sphi 0, %s85
      %s87 = sphi 0, %s85
      %s88 = sphi 0, %s87
      %s102 = sphi 0, %s88
      %s106 = sphi 0, %s106
      %s108 = sphi 0, %s106
      %s109 = sphi 0, %s108
      %s123 = sphi 0, %s109
      %s127 = sphi 0, %s127
      %s129 = sphi 0, %s127
      %s130 = sphi 0, %s129
      %s144 = sphi 0, %s130
      %s148 = sphi 0, %s148
      %s150 = sphi 0, %s148
      %s151 = sphi 0, %s150
      %s165 = sphi 0, %s151
      %s169 = sphi 0, %s169
      %s171 = sphi 0, %s169
      %s172 = sphi 0, %s171
      %s186 = sphi 0, %s172
      %s190 = sphi 0, %s190
      %s192 = sphi 0, %s190
      %s193 = sphi 0, %s192
      %s207 = sphi 0, %s193
      %s211 = sphi 0, %s211
      %s213 = sphi 0, %s211
      %s214 = sphi 0, %s213
      %s228 = sphi 0, %s214
      %s232 = sphi 0, %s232
      %s234 = sphi 0, %s232
      %s235 = sphi 0, %s234
      %s249 = sphi 0, %s235
      %s253 = sphi 0, %s253
      %s255 = sphi 0, %s253
      %s256 = sphi 0, %s255
      %s270 = sphi 0, %s256
      %s274 = sphi 0, %s274
      %s276 = sphi 0, %s274
      %s277 = sphi 0, %s276
      %s291 = sphi 0, %s277
      %s297 = sphi 0, %s299
      %s300 = sphi 0, %s297
      %s301 = sphi 0, %s300
      %s317 = sphi 0, %s301
    $region4: #{_forward.1} parent=1 // loop_header_branch
      %33 = sbr.rel (%p31) target = $region8
    $region5: #{_forward.1} parent=1 // loop_body
      %s35 = ssub.s32 %s30, 1
      %s36 = ssub.s32 %s30, 2
      %s37 = sadd.s32 %s30, 1
      %s38 = ssub.s32 %s30, %s37
      %p39 = scmp.eq.s32.totalorder %s38, 0
      %s41 = sadd.s32 %s40, 1
      %s42 = scalar_select %p39, %s40, %s41
      %p45 = pneg %p39
      %p46 = scmp.eq.s32.totalorder %s30, 1
      %p47 = por %p45, %p46
      %p48 = scmp.ne.s32.totalorder %s40, %s43
      %p49 = scmp.eq.s32.totalorder %s30, 0
      %p50 = por %p48, %p49
      %p51 = scmp.ne.s32.totalorder %s40, %s43
      %p52 = scmp.eq.s32.totalorder %s35, 1
      %p53 = por %p51, %p52
      %p54 = scmp.ne.s32.totalorder %s43, %s44
      %p55 = scmp.eq.s32.totalorder %s35, 0
      %p56 = por %p54, %p55
      %p57 = scmp.ne.s32.totalorder %s43, %s44
      %p58 = scmp.eq.s32.totalorder %s36, 1
      %p59 = por %p57, %p58
      %p61 = scmp.ne.s32.totalorder %s44, %s60
      %p62 = scmp.eq.s32.totalorder %s36, 0
      %p63 = por %p61, %p62
      %s65 = sadd.s32 %s64, 1
      %p68 = scmp.eq.s32.totalorder %s30, 1
      %p69 = scmp.ne.s32.totalorder %s64, %s66
      %p70 = scmp.eq.s32.totalorder %s30, 0
      %p71 = por %p69, %p70
      %p72 = scmp.ne.s32.totalorder %s64, %s66
      %p73 = scmp.eq.s32.totalorder %s35, 1
      %p74 = por %p72, %p73
      %p75 = scmp.ne.s32.totalorder %s66, %s67
      %p76 = scmp.eq.s32.totalorder %s35, 0
      %p77 = por %p75, %p76
      %p78 = scmp.ne.s32.totalorder %s66, %s67
      %p79 = scmp.eq.s32.totalorder %s36, 1
      %p80 = por %p78, %p79
      %p82 = scmp.ne.s32.totalorder %s67, %s81
      %p83 = scmp.eq.s32.totalorder %s36, 0
      %p84 = por %p82, %p83
      %s86 = sadd.s32 %s85, 1
      %p89 = scmp.eq.s32.totalorder %s30, 1
      %p90 = scmp.ne.s32.totalorder %s85, %s87
      %p91 = scmp.eq.s32.totalorder %s30, 0
      %p92 = por %p90, %p91
      %p93 = scmp.ne.s32.totalorder %s85, %s87
      %p94 = scmp.eq.s32.totalorder %s35, 1
      %p95 = por %p93, %p94
      %p96 = scmp.ne.s32.totalorder %s87, %s88
      %p97 = scmp.eq.s32.totalorder %s35, 0
      %p98 = por %p96, %p97
      %p99 = scmp.ne.s32.totalorder %s87, %s88
      %p100 = scmp.eq.s32.totalorder %s36, 1
      %p101 = por %p99, %p100
      %p103 = scmp.ne.s32.totalorder %s88, %s102
      %p104 = scmp.eq.s32.totalorder %s36, 0
      %p105 = por %p103, %p104
      %s107 = sadd.s32 %s106, 1
      %p110 = scmp.eq.s32.totalorder %s30, 1
      %p111 = scmp.ne.s32.totalorder %s106, %s108
      %p112 = scmp.eq.s32.totalorder %s30, 0
      %p113 = por %p111, %p112
      %p114 = scmp.ne.s32.totalorder %s106, %s108
      %p115 = scmp.eq.s32.totalorder %s35, 1
      %p116 = por %p114, %p115
      %p117 = scmp.ne.s32.totalorder %s108, %s109
      %p118 = scmp.eq.s32.totalorder %s35, 0
      %p119 = por %p117, %p118
      %p120 = scmp.ne.s32.totalorder %s108, %s109
      %p121 = scmp.eq.s32.totalorder %s36, 1
      %p122 = por %p120, %p121
      %p124 = scmp.ne.s32.totalorder %s109, %s123
      %p125 = scmp.eq.s32.totalorder %s36, 0
      %p126 = por %p124, %p125
      %s128 = sadd.s32 %s127, 1
      %p131 = scmp.eq.s32.totalorder %s30, 1
      %p132 = scmp.ne.s32.totalorder %s127, %s129
      %p133 = scmp.eq.s32.totalorder %s30, 0
      %p134 = por %p132, %p133
      %p135 = scmp.ne.s32.totalorder %s127, %s129
      %p136 = scmp.eq.s32.totalorder %s35, 1
      %p137 = por %p135, %p136
      %p138 = scmp.ne.s32.totalorder %s129, %s130
      %p139 = scmp.eq.s32.totalorder %s35, 0
      %p140 = por %p138, %p139
      %p141 = scmp.ne.s32.totalorder %s129, %s130
      %p142 = scmp.eq.s32.totalorder %s36, 1
      %p143 = por %p141, %p142
      %p145 = scmp.ne.s32.totalorder %s130, %s144
      %p146 = scmp.eq.s32.totalorder %s36, 0
      %p147 = por %p145, %p146
      %s149 = sadd.s32 %s148, 1
      %p152 = scmp.eq.s32.totalorder %s30, 1
      %p153 = scmp.ne.s32.totalorder %s148, %s150
      %p154 = scmp.eq.s32.totalorder %s30, 0
      %p155 = por %p153, %p154
      %p156 = scmp.ne.s32.totalorder %s148, %s150
      %p157 = scmp.eq.s32.totalorder %s35, 1
      %p158 = por %p156, %p157
      %p159 = scmp.ne.s32.totalorder %s150, %s151
      %p160 = scmp.eq.s32.totalorder %s35, 0
      %p161 = por %p159, %p160
      %p162 = scmp.ne.s32.totalorder %s150, %s151
      %p163 = scmp.eq.s32.totalorder %s36, 1
      %p164 = por %p162, %p163
      %p166 = scmp.ne.s32.totalorder %s151, %s165
      %p167 = scmp.eq.s32.totalorder %s36, 0
      %p168 = por %p166, %p167
      %s170 = sadd.s32 %s169, 1
      %p173 = scmp.eq.s32.totalorder %s30, 1
      %p174 = scmp.ne.s32.totalorder %s169, %s171
      %p175 = scmp.eq.s32.totalorder %s30, 0
      %p176 = por %p174, %p175
      %p177 = scmp.ne.s32.totalorder %s169, %s171
      %p178 = scmp.eq.s32.totalorder %s35, 1
      %p179 = por %p177, %p178
      %p180 = scmp.ne.s32.totalorder %s171, %s172
      %p181 = scmp.eq.s32.totalorder %s35, 0
      %p182 = por %p180, %p181
      %p183 = scmp.ne.s32.totalorder %s171, %s172
      %p184 = scmp.eq.s32.totalorder %s36, 1
      %p185 = por %p183, %p184
      %p187 = scmp.ne.s32.totalorder %s172, %s186
      %p188 = scmp.eq.s32.totalorder %s36, 0
      %p189 = por %p187, %p188
      %s191 = sadd.s32 %s190, 1
      %p194 = scmp.eq.s32.totalorder %s30, 1
      %p195 = scmp.ne.s32.totalorder %s190, %s192
      %p196 = scmp.eq.s32.totalorder %s30, 0
      %p197 = por %p195, %p196
      %p198 = scmp.ne.s32.totalorder %s190, %s192
      %p199 = scmp.eq.s32.totalorder %s35, 1
      %p200 = por %p198, %p199
      %p201 = scmp.ne.s32.totalorder %s192, %s193
      %p202 = scmp.eq.s32.totalorder %s35, 0
      %p203 = por %p201, %p202
      %p204 = scmp.ne.s32.totalorder %s192, %s193
      %p205 = scmp.eq.s32.totalorder %s36, 1
      %p206 = por %p204, %p205
      %p208 = scmp.ne.s32.totalorder %s193, %s207
      %p209 = scmp.eq.s32.totalorder %s36, 0
      %p210 = por %p208, %p209
      %s212 = sadd.s32 %s211, 1
      %p215 = scmp.eq.s32.totalorder %s30, 1
      %p216 = scmp.ne.s32.totalorder %s211, %s213
      %p217 = scmp.eq.s32.totalorder %s30, 0
      %p218 = por %p216, %p217
      %p219 = scmp.ne.s32.totalorder %s211, %s213
      %p220 = scmp.eq.s32.totalorder %s35, 1
      %p221 = por %p219, %p220
      %p222 = scmp.ne.s32.totalorder %s213, %s214
      %p223 = scmp.eq.s32.totalorder %s35, 0
      %p224 = por %p222, %p223
      %p225 = scmp.ne.s32.totalorder %s213, %s214
      %p226 = scmp.eq.s32.totalorder %s36, 1
      %p227 = por %p225, %p226
      %p229 = scmp.ne.s32.totalorder %s214, %s228
      %p230 = scmp.eq.s32.totalorder %s36, 0
      %p231 = por %p229, %p230
      %s233 = sadd.s32 %s232, 1
      %p236 = scmp.eq.s32.totalorder %s30, 1
      %p237 = scmp.ne.s32.totalorder %s232, %s234
      %p238 = scmp.eq.s32.totalorder %s30, 0
      %p239 = por %p237, %p238
      %p240 = scmp.ne.s32.totalorder %s232, %s234
      %p241 = scmp.eq.s32.totalorder %s35, 1
      %p242 = por %p240, %p241
      %p243 = scmp.ne.s32.totalorder %s234, %s235
      %p244 = scmp.eq.s32.totalorder %s35, 0
      %p245 = por %p243, %p244
      %p246 = scmp.ne.s32.totalorder %s234, %s235
      %p247 = scmp.eq.s32.totalorder %s36, 1
      %p248 = por %p246, %p247
      %p250 = scmp.ne.s32.totalorder %s235, %s249
      %p251 = scmp.eq.s32.totalorder %s36, 0
      %p252 = por %p250, %p251
      %s254 = sadd.s32 %s253, 1
      %p257 = scmp.eq.s32.totalorder %s30, 1
      %p258 = scmp.ne.s32.totalorder %s253, %s255
      %p259 = scmp.eq.s32.totalorder %s30, 0
      %p260 = por %p258, %p259
      %p261 = scmp.ne.s32.totalorder %s253, %s255
      %p262 = scmp.eq.s32.totalorder %s35, 1
      %p263 = por %p261, %p262
      %p264 = scmp.ne.s32.totalorder %s255, %s256
      %p265 = scmp.eq.s32.totalorder %s35, 0
      %p266 = por %p264, %p265
      %p267 = scmp.ne.s32.totalorder %s255, %s256
      %p268 = scmp.eq.s32.totalorder %s36, 1
      %p269 = por %p267, %p268
      %p271 = scmp.ne.s32.totalorder %s256, %s270
      %p272 = scmp.eq.s32.totalorder %s36, 0
      %p273 = por %p271, %p272
      %s275 = sadd.s32 %s274, 1
      %p278 = scmp.eq.s32.totalorder %s30, 1
      %p279 = scmp.ne.s32.totalorder %s274, %s276
      %p280 = scmp.eq.s32.totalorder %s30, 0
      %p281 = por %p279, %p280
      %p282 = scmp.ne.s32.totalorder %s274, %s276
      %p283 = scmp.eq.s32.totalorder %s35, 1
      %p284 = por %p282, %p283
      %p285 = scmp.ne.s32.totalorder %s276, %s277
      %p286 = scmp.eq.s32.totalorder %s35, 0
      %p287 = por %p285, %p286
      %p288 = scmp.ne.s32.totalorder %s276, %s277
      %p289 = scmp.eq.s32.totalorder %s36, 1
      %p290 = por %p288, %p289
      %p292 = scmp.ne.s32.totalorder %s277, %s291
      %p293 = scmp.eq.s32.totalorder %s36, 0
      %p294 = por %p292, %p293
      %s295 = ssub.s32 %s30, %s37
      %p296 = scmp.eq.s32.totalorder %s295, 0
      %s298 = sadd.s32 %s297, 1
      %s299 = scalar_select %p296, %s297, %s298
      %p302 = pneg %p296
      %p303 = scmp.eq.s32.totalorder %s30, 1
      %p304 = por %p302, %p303
      %p305 = scmp.ne.s32.totalorder %s297, %s300
      %p306 = scmp.eq.s32.totalorder %s30, 0
      %p307 = por %p305, %p306
      %p308 = scmp.ne.s32.totalorder %s297, %s300
      %p309 = scmp.eq.s32.totalorder %s35, 1
      %p310 = por %p308, %p309
      %p311 = scmp.ne.s32.totalorder %s300, %s301
      %p312 = scmp.eq.s32.totalorder %s35, 0
      %p313 = por %p311, %p312
      %p314 = scmp.ne.s32.totalorder %s300, %s301
      %p315 = scmp.eq.s32.totalorder %s36, 1
      %p316 = por %p314, %p315
      %p318 = scmp.ne.s32.totalorder %s301, %s317
      %p319 = scmp.eq.s32.totalorder %s36, 0
      %p320 = por %p318, %p319
      %p321 = scmp.le.s32.totalorder 1, %s30
      %p322 = scmp.lt.s32.totalorder %s30, 3
      %p323 = pnand %p321, %p322
      %p324 = pneg %p323
      // Predicated region
      $region9: #{_forward.1} parent=5 // pred_check
        _
      $region10: #{_forward.1} parent=5 // pred_check_branch
        %326 = sbr.rel (%p323) target = $region12
      $region11: #{_forward.1} parent=5 // pred_region
        %s327 = ssub.s32 %s30, 1
        // Predicated region
        $region13: #{_forward.1} parent=11 // pred_check
          %p328 = pneg %p77
        $region14: #{_forward.1} parent=11 // pred_check_branch
          %330 = sbr.rel (%p328) target = $region16
        $region15: #{_forward.1} parent=11 // pred_region
          %s332 = ssub.s32 144, 144
          %333 = vsyncadd [#allocation6], %s332
          %s334 = sshll.u32 [#allocation5], 4
          %s335 = int_to_ptr.vmem [resolvable:$true] %s334
          %340 = dma.hbm_to_vmem [thread:$0]  %s1, 144, %s335, [#allocation6], 16, 16, 1
        $region16: #{_forward.1} parent=11 // pred_fallthru
          _
        // Predicated region
        $region17: #{_forward.1} parent=11 // pred_check
          %p341 = pneg %p98
        $region18: #{_forward.1} parent=11 // pred_check_branch
          %343 = sbr.rel (%p341) target = $region20
        $region19: #{_forward.1} parent=11 // pred_region
          %s345 = ssub.s32 1024, 1024
          %346 = vsyncadd [#allocation6], %s345
          %s347 = sshll.u32 [#allocation7], 4
          %s348 = int_to_ptr.vmem [resolvable:$true] %s347
          %353 = dma.hbm_to_vmem [thread:$0]  %s2, 1024, %s348, [#allocation6], 64, 64, 4
        $region20: #{_forward.1} parent=11 // pred_fallthru
          _
        // Predicated region
        $region21: #{_forward.1} parent=11 // pred_check
          %p354 = pneg %p119
        $region22: #{_forward.1} parent=11 // pred_check_branch
          %356 = sbr.rel (%p354) target = $region24
        $region23: #{_forward.1} parent=11 // pred_region
          %s358 = ssub.s32 16, 16
          %359 = vsyncadd [#allocation9], %s358
          %s361 = sshll.u32 [#allocation8], 4
          %s362 = int_to_ptr.vmem [resolvable:$true] %s361
          %364 = dma.hbm_to_vmem [thread:$0]  %s3, 16, %s362, [#allocation9]
        $region24: #{_forward.1} parent=11 // pred_fallthru
          _
        // Predicated region
        $region25: #{_forward.1} parent=11 // pred_check
          %p365 = pneg %p140
        $region26: #{_forward.1} parent=11 // pred_check_branch
          %367 = sbr.rel (%p365) target = $region28
        $region27: #{_forward.1} parent=11 // pred_region
          %s369 = ssub.s32 16, 16
          %370 = vsyncadd [#allocation9], %s369
          %s372 = sshll.u32 [#allocation10], 4
          %s373 = int_to_ptr.vmem [resolvable:$true] %s372
          %375 = dma.hbm_to_vmem [thread:$0]  %s4, 16, %s373, [#allocation9]
        $region28: #{_forward.1} parent=11 // pred_fallthru
          _
        // Predicated region
        $region29: #{_forward.1} parent=11 // pred_check
          %p376 = pneg %p161
        $region30: #{_forward.1} parent=11 // pred_check_branch
          %378 = sbr.rel (%p376) target = $region32
        $region31: #{_forward.1} parent=11 // pred_region
          %s380 = ssub.s32 144, 144
          %381 = vsyncadd [#allocation12], %s380
          %s382 = sshll.u32 [#allocation11], 4
          %s383 = int_to_ptr.vmem [resolvable:$true] %s382
          %388 = dma.hbm_to_vmem [thread:$0]  %s5, 144, %s383, [#allocation12], 16, 16, 1
        $region32: #{_forward.1} parent=11 // pred_fallthru
          _
        // Predicated region
        $region33: #{_forward.1} parent=11 // pred_check
          %p389 = pneg %p182
        $region34: #{_forward.1} parent=11 // pred_check_branch
          %391 = sbr.rel (%p389) target = $region36
        $region35: #{_forward.1} parent=11 // pred_region
          %s393 = ssub.s32 1024, 1024
          %394 = vsyncadd [#allocation12], %s393
          %s395 = sshll.u32 [#allocation13], 4
          %s396 = int_to_ptr.vmem [resolvable:$true] %s395
          %401 = dma.hbm_to_vmem [thread:$0]  %s6, 1024, %s396, [#allocation12], 64, 64, 4
        $region36: #{_forward.1} parent=11 // pred_fallthru
          _
        // Predicated region
        $region37: #{_forward.1} parent=11 // pred_check
          %p402 = pneg %p203
        $region38: #{_forward.1} parent=11 // pred_check_branch
          %404 = sbr.rel (%p402) target = $region40
        $region39: #{_forward.1} parent=11 // pred_region
          %s406 = ssub.s32 16, 16
          %407 = vsyncadd [#allocation15], %s406
          %s409 = sshll.u32 [#allocation14], 4
          %s410 = int_to_ptr.vmem [resolvable:$true] %s409
          %412 = dma.hbm_to_vmem [thread:$0]  %s7, 16, %s410, [#allocation15]
        $region40: #{_forward.1} parent=11 // pred_fallthru
          _
        // Predicated region
        $region41: #{_forward.1} parent=11 // pred_check
          %p413 = pneg %p224
        $region42: #{_forward.1} parent=11 // pred_check_branch
          %415 = sbr.rel (%p413) target = $region44
        $region43: #{_forward.1} parent=11 // pred_region
          %s417 = ssub.s32 16, 16
          %418 = vsyncadd [#allocation15], %s417
          %s420 = sshll.u32 [#allocation16], 4
          %s421 = int_to_ptr.vmem [resolvable:$true] %s420
          %423 = dma.hbm_to_vmem [thread:$0]  %s8, 16, %s421, [#allocation15]
        $region44: #{_forward.1} parent=11 // pred_fallthru
          _
        // Predicated region
        $region45: #{_forward.1} parent=11 // pred_check
          %p424 = pneg %p245
        $region46: #{_forward.1} parent=11 // pred_check_branch
          %426 = sbr.rel (%p424) target = $region48
        $region47: #{_forward.1} parent=11 // pred_region
          %s428 = ssub.s32 1024, 1024
          %429 = vsyncadd [#allocation18], %s428
          %s430 = sshll.u32 [#allocation17], 4
          %s431 = int_to_ptr.vmem [resolvable:$true] %s430
          %436 = dma.hbm_to_vmem [thread:$0]  %s9, 1024, %s431, [#allocation18], 64, 64, 4
        $region48: #{_forward.1} parent=11 // pred_fallthru
          _
        // Predicated region
        $region49: #{_forward.1} parent=11 // pred_check
          %p437 = pneg %p266
        $region50: #{_forward.1} parent=11 // pred_check_branch
          %439 = sbr.rel (%p437) target = $region52
        $region51: #{_forward.1} parent=11 // pred_region
          %s441 = ssub.s32 16, 16
          %442 = vsyncadd [#allocation18], %s441
          %s444 = sshll.u32 [#allocation19], 4
          %s445 = int_to_ptr.vmem [resolvable:$true] %s444
          %447 = dma.hbm_to_vmem [thread:$0]  %s10, 16, %s445, [#allocation18]
        $region52: #{_forward.1} parent=11 // pred_fallthru
          _
        // Predicated region
        $region53: #{_forward.1} parent=11 // pred_check
          %p448 = pneg %p287
        $region54: #{_forward.1} parent=11 // pred_check_branch
          %450 = sbr.rel (%p448) target = $region56
        $region55: #{_forward.1} parent=11 // pred_region
          %s452 = ssub.s32 16, 16
          %453 = vsyncadd [#allocation21], %s452
          %s455 = sshll.u32 [#allocation20], 4
          %s456 = int_to_ptr.vmem [resolvable:$true] %s455
          %458 = dma.hbm_to_vmem [thread:$0]  %s11, 16, %s456, [#allocation21]
        $region56: #{_forward.1} parent=11 // pred_fallthru
          _
      $region12: #{_forward.1} parent=5 // pred_fallthru
        _
      %p459 = scmp.lt.s32.totalorder %s30, 2
      // Predicated region
      $region57: #{_forward.1} parent=5 // pred_check
        %p460 = pneg %p459
      $region58: #{_forward.1} parent=5 // pred_check_branch
        %462 = sbr.rel (%p460) target = $region60
      $region59: #{_forward.1} parent=5 // pred_region
        // Predicated region
        $region61: #{_forward.1} parent=59 // pred_check
          %p463 = pneg %p50
        $region62: #{_forward.1} parent=59 // pred_check_branch
          %465 = sbr.rel (%p463) target = $region64
        $region63: #{_forward.1} parent=59 // pred_region
          %s466 = sand.u32 %s40, 1
          %s467 = scalar_lea.sflag [#allocation3], %s466
          %s468 = sand.u32 %s40, 1
          %s469 = smul.addr %s468, 256
          %s470 = scalar_lea.vmem [#allocation2], %s469
          %s472 = ssub.s32 4096, 4096
          %473 = vsyncadd %s467, %s472
          %s474 = smul.addr %s30, 32
          %s475 = smul.addr %s474, 128
          %s476 = scalar_lea.hbm %s0, %s475
          %s477 = sshll.u32 %s470, 4
          %s478 = int_to_ptr.vmem [resolvable:$true] %s477
          %483 = dma.hbm_to_vmem [thread:$0]  %s476, 4096, %s478, %s467, 128, 128, 8
        $region64: #{_forward.1} parent=59 // pred_fallthru
          _
      $region60: #{_forward.1} parent=5 // pred_fallthru
        _
      %p484 = scmp.le.s32.totalorder 1, %s30
      %p485 = scmp.lt.s32.totalorder %s30, 3
      %p486 = pnand %p484, %p485
      %p487 = pneg %p486
      // Predicated region
      $region65: #{_forward.1} parent=5 // pred_check
        _
      $region66: #{_forward.1} parent=5 // pred_check_branch
        %489 = sbr.rel (%p486) target = $region68
      $region67: #{_forward.1} parent=5 // pred_region
        %s490 = ssub.s32 %s30, 1
        %s491 = sand.u32 %s43, 1
        %s492 = scalar_lea.sflag [#allocation3], %s491
        %s493 = sand.u32 %s43, 1
        %s494 = smul.addr %s493, 256
        %s495 = scalar_lea.vmem [#allocation2], %s494
        // Predicated region
        $region69: #{_forward.1} parent=67 // pred_check
          %p496 = pneg %p56
        $region70: #{_forward.1} parent=67 // pred_check_branch
          %498 = sbr.rel (%p496) target = $region72
        $region71: #{_forward.1} parent=67 // pred_region
          %499 = dma.done %s492, 4096
        $region72: #{_forward.1} parent=67 // pred_fallthru
          _
        // Predicated region
        $region73: #{_forward.1} parent=67 // pred_check
          %p500 = pneg %p77
        $region74: #{_forward.1} parent=67 // pred_check_branch
          %502 = sbr.rel (%p500) target = $region76
        $region75: #{_forward.1} parent=67 // pred_region
          %503 = dma.done [#allocation6], 144
        $region76: #{_forward.1} parent=67 // pred_fallthru
          _
        // Predicated region
        $region77: #{_forward.1} parent=67 // pred_check
          %p504 = pneg %p98
        $region78: #{_forward.1} parent=67 // pred_check_branch
          %506 = sbr.rel (%p504) target = $region80
        $region79: #{_forward.1} parent=67 // pred_region
          %507 = dma.done [#allocation6], 1024
        $region80: #{_forward.1} parent=67 // pred_fallthru
          _
        // Predicated region
        $region81: #{_forward.1} parent=67 // pred_check
          %p508 = pneg %p119
        $region82: #{_forward.1} parent=67 // pred_check_branch
          %510 = sbr.rel (%p508) target = $region84
        $region83: #{_forward.1} parent=67 // pred_region
          %511 = dma.done [#allocation9], 16
        $region84: #{_forward.1} parent=67 // pred_fallthru
          _
        // Predicated region
        $region85: #{_forward.1} parent=67 // pred_check
          %p512 = pneg %p140
        $region86: #{_forward.1} parent=67 // pred_check_branch
          %514 = sbr.rel (%p512) target = $region88
        $region87: #{_forward.1} parent=67 // pred_region
          %515 = dma.done [#allocation9], 16
        $region88: #{_forward.1} parent=67 // pred_fallthru
          _
        // Predicated region
        $region89: #{_forward.1} parent=67 // pred_check
          %p516 = pneg %p161
        $region90: #{_forward.1} parent=67 // pred_check_branch
          %518 = sbr.rel (%p516) target = $region92
        $region91: #{_forward.1} parent=67 // pred_region
          %519 = dma.done [#allocation12], 144
        $region92: #{_forward.1} parent=67 // pred_fallthru
          _
        // Predicated region
        $region93: #{_forward.1} parent=67 // pred_check
          %p520 = pneg %p182
        $region94: #{_forward.1} parent=67 // pred_check_branch
          %522 = sbr.rel (%p520) target = $region96
        $region95: #{_forward.1} parent=67 // pred_region
          %523 = dma.done [#allocation12], 1024
        $region96: #{_forward.1} parent=67 // pred_fallthru
          _
        // Predicated region
        $region97: #{_forward.1} parent=67 // pred_check
          %p524 = pneg %p203
        $region98: #{_forward.1} parent=67 // pred_check_branch
          %526 = sbr.rel (%p524) target = $region100
        $region99: #{_forward.1} parent=67 // pred_region
          %527 = dma.done [#allocation15], 16
        $region100: #{_forward.1} parent=67 // pred_fallthru
          _
        // Predicated region
        $region101: #{_forward.1} parent=67 // pred_check
          %p528 = pneg %p224
        $region102: #{_forward.1} parent=67 // pred_check_branch
          %530 = sbr.rel (%p528) target = $region104
        $region103: #{_forward.1} parent=67 // pred_region
          %531 = dma.done [#allocation15], 16
        $region104: #{_forward.1} parent=67 // pred_fallthru
          _
        // Predicated region
        $region105: #{_forward.1} parent=67 // pred_check
          %p532 = pneg %p245
        $region106: #{_forward.1} parent=67 // pred_check_branch
          %534 = sbr.rel (%p532) target = $region108
        $region107: #{_forward.1} parent=67 // pred_region
          %535 = dma.done [#allocation18], 1024
        $region108: #{_forward.1} parent=67 // pred_fallthru
          _
        // Predicated region
        $region109: #{_forward.1} parent=67 // pred_check
          %p536 = pneg %p266
        $region110: #{_forward.1} parent=67 // pred_check_branch
          %538 = sbr.rel (%p536) target = $region112
        $region111: #{_forward.1} parent=67 // pred_region
          %539 = dma.done [#allocation18], 16
        $region112: #{_forward.1} parent=67 // pred_fallthru
          _
        // Predicated region
        $region113: #{_forward.1} parent=67 // pred_check
          %p540 = pneg %p287
        $region114: #{_forward.1} parent=67 // pred_check_branch
          %542 = sbr.rel (%p540) target = $region116
        $region115: #{_forward.1} parent=67 // pred_region
          %543 = dma.done [#allocation21], 16
        $region116: #{_forward.1} parent=67 // pred_fallthru
          _
        %s544 = sand.u32 %s43, 1
        %s545 = scalar_lea.sflag [#allocation3], %s544
        %s546 = sand.u32 %s43, 1
        %s547 = smul.addr %s546, 256
        %s548 = scalar_lea.vmem [#allocation2], %s547
        %p549 = pneg %p56
        %p550 = pneg %p53
        %p551 = pneg %p77
        %p552 = pneg %p74
        %p553 = pneg %p98
        %p554 = pneg %p95
        %p555 = pneg %p119
        %p556 = pneg %p116
        %p557 = pneg %p140
        %p558 = pneg %p137
        %p559 = pneg %p161
        %p560 = pneg %p158
        %p561 = pneg %p182
        %p562 = pneg %p179
        %p563 = pneg %p203
        %p564 = pneg %p200
        %p565 = pneg %p224
        %p566 = pneg %p221
        %p567 = pneg %p245
        %p568 = pneg %p242
        %p569 = pneg %p266
        %p570 = pneg %p263
        %p571 = pneg %p287
        %p572 = pneg %p284
        %p573 = pneg %p313
        %p574 = pneg %p310
        %s575 = sand.u32 %s300, 1
        %s576 = scalar_lea.sflag [#allocation4], %s575
        %s577 = sand.u32 %s300, 1
        %s578 = smul.addr %s577, 64
        %s579 = scalar_lea.vmem [#allocation22], %s578
        %v581 = vld [vmem:[%s495] sm:$0xff]
        %v582 = vld [vmem:[%s495 + $0x8] sm:$0xff]
        %v583 = vld [vmem:[%s495 + $0x10] sm:$0xff]
        %v584 = vld [vmem:[%s495 + $0x18] sm:$0xff]
        %v585 = vld [vmem:[%s495 + $0x20] sm:$0xff]
        %v586 = vld [vmem:[%s495 + $0x28] sm:$0xff]
        %v587 = vld [vmem:[%s495 + $0x30] sm:$0xff]
        %v588 = vld [vmem:[%s495 + $0x38] sm:$0xff]
        %v589 = vld [vmem:[%s495 + $0x40] sm:$0xff]
        %v590 = vld [vmem:[%s495 + $0x48] sm:$0xff]
        %v591 = vld [vmem:[%s495 + $0x50] sm:$0xff]
        %v592 = vld [vmem:[%s495 + $0x58] sm:$0xff]
        %v593 = vld [vmem:[%s495 + $0x60] sm:$0xff]
        %v594 = vld [vmem:[%s495 + $0x68] sm:$0xff]
        %v595 = vld [vmem:[%s495 + $0x70] sm:$0xff]
        %v596 = vld [vmem:[%s495 + $0x78] sm:$0xff]
        %v597 = vld [vmem:[%s495 + $0x80] sm:$0xff]
        %v598 = vld [vmem:[%s495 + $0x88] sm:$0xff]
        %v599 = vld [vmem:[%s495 + $0x90] sm:$0xff]
        %v600 = vld [vmem:[%s495 + $0x98] sm:$0xff]
        %v601 = vld [vmem:[%s495 + $0xa0] sm:$0xff]
        %v602 = vld [vmem:[%s495 + $0xa8] sm:$0xff]
        %v603 = vld [vmem:[%s495 + $0xb0] sm:$0xff]
        %v604 = vld [vmem:[%s495 + $0xb8] sm:$0xff]
        %v605 = vld [vmem:[%s495 + $0xc0] sm:$0xff]
        %v606 = vld [vmem:[%s495 + $0xc8] sm:$0xff]
        %v607 = vld [vmem:[%s495 + $0xd0] sm:$0xff]
        %v608 = vld [vmem:[%s495 + $0xd8] sm:$0xff]
        %v609 = vld [vmem:[%s495 + $0xe0] sm:$0xff]
        %v610 = vld [vmem:[%s495 + $0xe8] sm:$0xff]
        %v611 = vld [vmem:[%s495 + $0xf0] sm:$0xff]
        %v612 = vld [vmem:[%s495 + $0xf8] sm:$0xff]
        %v613 = vmax.f32 %v581, 0.0
        %v614 = vmax.f32 %v582, 0.0
        %v615 = vmax.f32 %v583, 0.0
        %v616 = vmax.f32 %v584, 0.0
        %v617 = vmax.f32 %v585, 0.0
        %v618 = vmax.f32 %v586, 0.0
        %v619 = vmax.f32 %v587, 0.0
        %v620 = vmax.f32 %v588, 0.0
        %v621 = vmax.f32 %v589, 0.0
        %v622 = vmax.f32 %v590, 0.0
        %v623 = vmax.f32 %v591, 0.0
        %v624 = vmax.f32 %v592, 0.0
        %v625 = vmax.f32 %v593, 0.0
        %v626 = vmax.f32 %v594, 0.0
        %v627 = vmax.f32 %v595, 0.0
        %v628 = vmax.f32 %v596, 0.0
        %v629 = vmax.f32 %v597, 0.0
        %v630 = vmax.f32 %v598, 0.0
        %v631 = vmax.f32 %v599, 0.0
        %v632 = vmax.f32 %v600, 0.0
        %v633 = vmax.f32 %v601, 0.0
        %v634 = vmax.f32 %v602, 0.0
        %v635 = vmax.f32 %v603, 0.0
        %v636 = vmax.f32 %v604, 0.0
        %v637 = vmax.f32 %v605, 0.0
        %v638 = vmax.f32 %v606, 0.0
        %v639 = vmax.f32 %v607, 0.0
        %v640 = vmax.f32 %v608, 0.0
        %v641 = vmax.f32 %v609, 0.0
        %v642 = vmax.f32 %v610, 0.0
        %v643 = vmax.f32 %v611, 0.0
        %v644 = vmax.f32 %v612, 0.0
        %vm678 = vcmask 1040384
        %v679 = vrot.slane 0.0, 7
        %v680 = vsel %vm678, %v679, %v679
        %v681 = vrot.slane %v613, 7
        %v682 = vrot.slane %v614, 7
        %v683 = vsel %vm678, %v681, %v682
        %v684 = vrot.slane %v615, 7
        %v685 = vrot.slane %v616, 7
        %v686 = vsel %vm678, %v684, %v685
        %v687 = vrot.slane %v617, 7
        %v688 = vrot.slane %v618, 7
        %v689 = vsel %vm678, %v687, %v688
        %v690 = vrot.slane %v619, 7
        %v691 = vrot.slane %v620, 7
        %v692 = vsel %vm678, %v690, %v691
        %v693 = vrot.slane %v621, 7
        %v694 = vrot.slane %v622, 7
        %v695 = vsel %vm678, %v693, %v694
        %v696 = vrot.slane %v623, 7
        %v697 = vrot.slane %v624, 7
        %v698 = vsel %vm678, %v696, %v697
        %v699 = vrot.slane %v625, 7
        %v700 = vrot.slane %v626, 7
        %v701 = vsel %vm678, %v699, %v700
        %v702 = vrot.slane %v627, 7
        %v703 = vrot.slane %v628, 7
        %v704 = vsel %vm678, %v702, %v703
        %v705 = vrot.slane %v629, 7
        %v706 = vrot.slane %v630, 7
        %v707 = vsel %vm678, %v705, %v706
        %v708 = vrot.slane %v631, 7
        %v709 = vrot.slane %v632, 7
        %v710 = vsel %vm678, %v708, %v709
        %v711 = vrot.slane %v633, 7
        %v712 = vrot.slane %v634, 7
        %v713 = vsel %vm678, %v711, %v712
        %v714 = vrot.slane %v635, 7
        %v715 = vrot.slane %v636, 7
        %v716 = vsel %vm678, %v714, %v715
        %v717 = vrot.slane %v637, 7
        %v718 = vrot.slane %v638, 7
        %v719 = vsel %vm678, %v717, %v718
        %v720 = vrot.slane %v639, 7
        %v721 = vrot.slane %v640, 7
        %v722 = vsel %vm678, %v720, %v721
        %v723 = vrot.slane %v641, 7
        %v724 = vrot.slane %v642, 7
        %v725 = vsel %vm678, %v723, %v724
        %v726 = vrot.slane %v643, 7
        %v727 = vrot.slane %v644, 7
        %v728 = vsel %vm678, %v726, %v727
        %v779 = vsel %vm678, 0.0, %v679
        %v780 = vsel %vm678, 0.0, %v681
        %v781 = vsel %vm678, 0.0, %v684
        %v782 = vsel %vm678, 0.0, %v687
        %v783 = vsel %vm678, 0.0, %v690
        %v784 = vsel %vm678, 0.0, %v693
        %v785 = vsel %vm678, 0.0, %v696
        %v786 = vsel %vm678, 0.0, %v699
        %v787 = vsel %vm678, 0.0, %v702
        %v788 = vsel %vm678, 0.0, %v705
        %v789 = vsel %vm678, 0.0, %v708
        %v790 = vsel %vm678, 0.0, %v711
        %v791 = vsel %vm678, 0.0, %v714
        %v792 = vsel %vm678, 0.0, %v717
        %v793 = vsel %vm678, 0.0, %v720
        %v794 = vsel %vm678, 0.0, %v723
        %v795 = vsel %vm678, 0.0, %v726
        %v796 = vsel %vm678, %v679, 0.0
        %v797 = vsel %vm678, %v682, 0.0
        %v798 = vsel %vm678, %v685, 0.0
        %v799 = vsel %vm678, %v688, 0.0
        %v800 = vsel %vm678, %v691, 0.0
        %v801 = vsel %vm678, %v694, 0.0
        %v802 = vsel %vm678, %v697, 0.0
        %v803 = vsel %vm678, %v700, 0.0
        %v804 = vsel %vm678, %v703, 0.0
        %v805 = vsel %vm678, %v706, 0.0
        %v806 = vsel %vm678, %v709, 0.0
        %v807 = vsel %vm678, %v712, 0.0
        %v808 = vsel %vm678, %v715, 0.0
        %v809 = vsel %vm678, %v718, 0.0
        %v810 = vsel %vm678, %v721, 0.0
        %v811 = vsel %vm678, %v724, 0.0
        %v812 = vsel %vm678, %v727, 0.0
        %v813 = vld [vmem:[#allocation5] sm:$0x1]
        %v814 = vld [vmem:[#allocation5 + $0x1] sm:$0x1]
        %v815 = vld [vmem:[#allocation5 + $0x2] sm:$0x1]
        %v816 = vld [vmem:[#allocation5 + $0x3] sm:$0x1]
        %v817 = vld [vmem:[#allocation5 + $0x4] sm:$0x1]
        %v818 = vld [vmem:[#allocation5 + $0x5] sm:$0x1]
        %v819 = vld [vmem:[#allocation5 + $0x6] sm:$0x1]
        %v820 = vld [vmem:[#allocation5 + $0x7] sm:$0x1]
        %v821 = vld [vmem:[#allocation5 + $0x8] sm:$0x1]
        %v823 = vlaneseq
        %v824 = vshrl.u32 %v823, 7
        %v825 = vsub.s32 0, %v824
        %v826 = vrot.slane %v813, %v825
        %v828 = vmul.f32 %v779, %v826
        %v829 = vmul.f32 %v680, %v826
        %v830 = vmul.f32 %v780, %v826
        %v831 = vmul.f32 %v683, %v826
        %v832 = vmul.f32 %v781, %v826
        %v833 = vmul.f32 %v686, %v826
        %v834 = vmul.f32 %v782, %v826
        %v835 = vmul.f32 %v689, %v826
        %v836 = vmul.f32 %v783, %v826
        %v837 = vmul.f32 %v692, %v826
        %v838 = vmul.f32 %v784, %v826
        %v839 = vmul.f32 %v695, %v826
        %v840 = vmul.f32 %v785, %v826
        %v841 = vmul.f32 %v698, %v826
        %v842 = vmul.f32 %v786, %v826
        %v843 = vmul.f32 %v701, %v826
        %v844 = vmul.f32 %v787, %v826
        %v845 = vmul.f32 %v704, %v826
        %v846 = vmul.f32 %v788, %v826
        %v847 = vmul.f32 %v707, %v826
        %v848 = vmul.f32 %v789, %v826
        %v849 = vmul.f32 %v710, %v826
        %v850 = vmul.f32 %v790, %v826
        %v851 = vmul.f32 %v713, %v826
        %v852 = vmul.f32 %v791, %v826
        %v853 = vmul.f32 %v716, %v826
        %v854 = vmul.f32 %v792, %v826
        %v855 = vmul.f32 %v719, %v826
        %v856 = vmul.f32 %v793, %v826
        %v857 = vmul.f32 %v722, %v826
        %v858 = vmul.f32 %v794, %v826
        %v859 = vmul.f32 %v725, %v826
        %v860 = vadd.f32 %v828, 0.0
        %v861 = vadd.f32 %v829, 0.0
        %v862 = vadd.f32 %v830, 0.0
        %v863 = vadd.f32 %v831, 0.0
        %v864 = vadd.f32 %v832, 0.0
        %v865 = vadd.f32 %v833, 0.0
        %v866 = vadd.f32 %v834, 0.0
        %v867 = vadd.f32 %v835, 0.0
        %v868 = vadd.f32 %v836, 0.0
        %v869 = vadd.f32 %v837, 0.0
        %v870 = vadd.f32 %v838, 0.0
        %v871 = vadd.f32 %v839, 0.0
        %v872 = vadd.f32 %v840, 0.0
        %v873 = vadd.f32 %v841, 0.0
        %v874 = vadd.f32 %v842, 0.0
        %v875 = vadd.f32 %v843, 0.0
        %v876 = vadd.f32 %v844, 0.0
        %v877 = vadd.f32 %v845, 0.0
        %v878 = vadd.f32 %v846, 0.0
        %v879 = vadd.f32 %v847, 0.0
        %v880 = vadd.f32 %v848, 0.0
        %v881 = vadd.f32 %v849, 0.0
        %v882 = vadd.f32 %v850, 0.0
        %v883 = vadd.f32 %v851, 0.0
        %v884 = vadd.f32 %v852, 0.0
        %v885 = vadd.f32 %v853, 0.0
        %v886 = vadd.f32 %v854, 0.0
        %v887 = vadd.f32 %v855, 0.0
        %v888 = vadd.f32 %v856, 0.0
        %v889 = vadd.f32 %v857, 0.0
        %v890 = vadd.f32 %v858, 0.0
        %v891 = vadd.f32 %v859, 0.0
        %v893 = vlaneseq
        %v894 = vshrl.u32 %v893, 7
        %v895 = vsub.s32 0, %v894
        %v896 = vrot.slane %v816, %v895
        %v898 = vmul.f32 %v780, %v896
        %v899 = vmul.f32 %v683, %v896
        %v900 = vmul.f32 %v781, %v896
        %v901 = vmul.f32 %v686, %v896
        %v902 = vmul.f32 %v782, %v896
        %v903 = vmul.f32 %v689, %v896
        %v904 = vmul.f32 %v783, %v896
        %v905 = vmul.f32 %v692, %v896
        %v906 = vmul.f32 %v784, %v896
        %v907 = vmul.f32 %v695, %v896
        %v908 = vmul.f32 %v785, %v896
        %v909 = vmul.f32 %v698, %v896
        %v910 = vmul.f32 %v786, %v896
        %v911 = vmul.f32 %v701, %v896
        %v912 = vmul.f32 %v787, %v896
        %v913 = vmul.f32 %v704, %v896
        %v914 = vmul.f32 %v788, %v896
        %v915 = vmul.f32 %v707, %v896
        %v916 = vmul.f32 %v789, %v896
        %v917 = vmul.f32 %v710, %v896
        %v918 = vmul.f32 %v790, %v896
        %v919 = vmul.f32 %v713, %v896
        %v920 = vmul.f32 %v791, %v896
        %v921 = vmul.f32 %v716, %v896
        %v922 = vmul.f32 %v792, %v896
        %v923 = vmul.f32 %v719, %v896
        %v924 = vmul.f32 %v793, %v896
        %v925 = vmul.f32 %v722, %v896
        %v926 = vmul.f32 %v794, %v896
        %v927 = vmul.f32 %v725, %v896
        %v928 = vmul.f32 %v795, %v896
        %v929 = vmul.f32 %v728, %v896
        %v930 = vadd.f32 %v860, %v898
        %v931 = vadd.f32 %v861, %v899
        %v932 = vadd.f32 %v862, %v900
        %v933 = vadd.f32 %v863, %v901
        %v934 = vadd.f32 %v864, %v902
        %v935 = vadd.f32 %v865, %v903
        %v936 = vadd.f32 %v866, %v904
        %v937 = vadd.f32 %v867, %v905
        %v938 = vadd.f32 %v868, %v906
        %v939 = vadd.f32 %v869, %v907
        %v940 = vadd.f32 %v870, %v908
        %v941 = vadd.f32 %v871, %v909
        %v942 = vadd.f32 %v872, %v910
        %v943 = vadd.f32 %v873, %v911
        %v944 = vadd.f32 %v874, %v912
        %v945 = vadd.f32 %v875, %v913
        %v946 = vadd.f32 %v876, %v914
        %v947 = vadd.f32 %v877, %v915
        %v948 = vadd.f32 %v878, %v916
        %v949 = vadd.f32 %v879, %v917
        %v950 = vadd.f32 %v880, %v918
        %v951 = vadd.f32 %v881, %v919
        %v952 = vadd.f32 %v882, %v920
        %v953 = vadd.f32 %v883, %v921
        %v954 = vadd.f32 %v884, %v922
        %v955 = vadd.f32 %v885, %v923
        %v956 = vadd.f32 %v886, %v924
        %v957 = vadd.f32 %v887, %v925
        %v958 = vadd.f32 %v888, %v926
        %v959 = vadd.f32 %v889, %v927
        %v960 = vadd.f32 %v890, %v928
        %v961 = vadd.f32 %v891, %v929
        %v963 = vlaneseq
        %v964 = vshrl.u32 %v963, 7
        %v965 = vsub.s32 0, %v964
        %v966 = vrot.slane %v819, %v965
        %v968 = vmul.f32 %v781, %v966
        %v969 = vmul.f32 %v686, %v966
        %v970 = vmul.f32 %v782, %v966
        %v971 = vmul.f32 %v689, %v966
        %v972 = vmul.f32 %v783, %v966
        %v973 = vmul.f32 %v692, %v966
        %v974 = vmul.f32 %v784, %v966
        %v975 = vmul.f32 %v695, %v966
        %v976 = vmul.f32 %v785, %v966
        %v977 = vmul.f32 %v698, %v966
        %v978 = vmul.f32 %v786, %v966
        %v979 = vmul.f32 %v701, %v966
        %v980 = vmul.f32 %v787, %v966
        %v981 = vmul.f32 %v704, %v966
        %v982 = vmul.f32 %v788, %v966
        %v983 = vmul.f32 %v707, %v966
        %v984 = vmul.f32 %v789, %v966
        %v985 = vmul.f32 %v710, %v966
        %v986 = vmul.f32 %v790, %v966
        %v987 = vmul.f32 %v713, %v966
        %v988 = vmul.f32 %v791, %v966
        %v989 = vmul.f32 %v716, %v966
        %v990 = vmul.f32 %v792, %v966
        %v991 = vmul.f32 %v719, %v966
        %v992 = vmul.f32 %v793, %v966
        %v993 = vmul.f32 %v722, %v966
        %v994 = vmul.f32 %v794, %v966
        %v995 = vmul.f32 %v725, %v966
        %v996 = vmul.f32 %v795, %v966
        %v997 = vmul.f32 %v728, %v966
        %v998 = vmul.f32 %v779, %v966
        %v999 = vmul.f32 %v680, %v966
        %v1000 = vadd.f32 %v930, %v968
        %v1001 = vadd.f32 %v931, %v969
        %v1002 = vadd.f32 %v932, %v970
        %v1003 = vadd.f32 %v933, %v971
        %v1004 = vadd.f32 %v934, %v972
        %v1005 = vadd.f32 %v935, %v973
        %v1006 = vadd.f32 %v936, %v974
        %v1007 = vadd.f32 %v937, %v975
        %v1008 = vadd.f32 %v938, %v976
        %v1009 = vadd.f32 %v939, %v977
        %v1010 = vadd.f32 %v940, %v978
        %v1011 = vadd.f32 %v941, %v979
        %v1012 = vadd.f32 %v942, %v980
        %v1013 = vadd.f32 %v943, %v981
        %v1014 = vadd.f32 %v944, %v982
        %v1015 = vadd.f32 %v945, %v983
        %v1016 = vadd.f32 %v946, %v984
        %v1017 = vadd.f32 %v947, %v985
        %v1018 = vadd.f32 %v948, %v986
        %v1019 = vadd.f32 %v949, %v987
        %v1020 = vadd.f32 %v950, %v988
        %v1021 = vadd.f32 %v951, %v989
        %v1022 = vadd.f32 %v952, %v990
        %v1023 = vadd.f32 %v953, %v991
        %v1024 = vadd.f32 %v954, %v992
        %v1025 = vadd.f32 %v955, %v993
        %v1026 = vadd.f32 %v956, %v994
        %v1027 = vadd.f32 %v957, %v995
        %v1028 = vadd.f32 %v958, %v996
        %v1029 = vadd.f32 %v959, %v997
        %v1030 = vadd.f32 %v960, %v998
        %v1031 = vadd.f32 %v961, %v999
        %v1033 = vlaneseq
        %v1034 = vshrl.u32 %v1033, 7
        %v1035 = vsub.s32 0, %v1034
        %v1036 = vrot.slane %v814, %v1035
        %v1038 = vmul.f32 %v779, %v1036
        %v1039 = vmul.f32 %v680, %v1036
        %v1040 = vmul.f32 %v796, %v1036
        %v1041 = vmul.f32 %v780, %v1036
        %v1042 = vmul.f32 %v683, %v1036
        %v1043 = vmul.f32 %v797, %v1036
        %v1044 = vmul.f32 %v781, %v1036
        %v1045 = vmul.f32 %v686, %v1036
        %v1046 = vmul.f32 %v798, %v1036
        %v1047 = vmul.f32 %v782, %v1036
        %v1048 = vmul.f32 %v689, %v1036
        %v1049 = vmul.f32 %v799, %v1036
        %v1050 = vmul.f32 %v783, %v1036
        %v1051 = vmul.f32 %v692, %v1036
        %v1052 = vmul.f32 %v800, %v1036
        %v1053 = vmul.f32 %v784, %v1036
        %v1054 = vmul.f32 %v695, %v1036
        %v1055 = vmul.f32 %v801, %v1036
        %v1056 = vmul.f32 %v785, %v1036
        %v1057 = vmul.f32 %v698, %v1036
        %v1058 = vmul.f32 %v802, %v1036
        %v1059 = vmul.f32 %v786, %v1036
        %v1060 = vmul.f32 %v701, %v1036
        %v1061 = vmul.f32 %v803, %v1036
        %v1062 = vmul.f32 %v787, %v1036
        %v1063 = vmul.f32 %v704, %v1036
        %v1064 = vmul.f32 %v804, %v1036
        %v1065 = vmul.f32 %v788, %v1036
        %v1066 = vmul.f32 %v707, %v1036
        %v1067 = vmul.f32 %v805, %v1036
        %v1068 = vmul.f32 %v789, %v1036
        %v1069 = vmul.f32 %v710, %v1036
        %v1070 = vmul.f32 %v806, %v1036
        %v1071 = vmul.f32 %v790, %v1036
        %v1072 = vmul.f32 %v713, %v1036
        %v1073 = vmul.f32 %v807, %v1036
        %v1074 = vmul.f32 %v791, %v1036
        %v1075 = vmul.f32 %v716, %v1036
        %v1076 = vmul.f32 %v808, %v1036
        %v1077 = vmul.f32 %v792, %v1036
        %v1078 = vmul.f32 %v719, %v1036
        %v1079 = vmul.f32 %v809, %v1036
        %v1080 = vmul.f32 %v793, %v1036
        %v1081 = vmul.f32 %v722, %v1036
        %v1082 = vmul.f32 %v810, %v1036
        %v1083 = vmul.f32 %v794, %v1036
        %v1084 = vmul.f32 %v725, %v1036
        %v1085 = vmul.f32 %v811, %v1036
        %vm1134 = vcmask 1046528
        %v1135 = vrot.slane %v1038, 1
        %v1136 = vrot.slane %v1039, 1
        %v1137 = vsel %vm1134, %v1135, %v1136
        %v1138 = vrot.slane %v1040, 1
        %v1139 = vsel %vm1134, %v1136, %v1138
        %v1140 = vrot.slane %v1041, 1
        %v1141 = vrot.slane %v1042, 1
        %v1142 = vsel %vm1134, %v1140, %v1141
        %v1143 = vrot.slane %v1043, 1
        %v1144 = vsel %vm1134, %v1141, %v1143
        %v1145 = vrot.slane %v1044, 1
        %v1146 = vrot.slane %v1045, 1
        %v1147 = vsel %vm1134, %v1145, %v1146
        %v1148 = vrot.slane %v1046, 1
        %v1149 = vsel %vm1134, %v1146, %v1148
        %v1150 = vrot.slane %v1047, 1
        %v1151 = vrot.slane %v1048, 1
        %v1152 = vsel %vm1134, %v1150, %v1151
        %v1153 = vrot.slane %v1049, 1
        %v1154 = vsel %vm1134, %v1151, %v1153
        %v1155 = vrot.slane %v1050, 1
        %v1156 = vrot.slane %v1051, 1
        %v1157 = vsel %vm1134, %v1155, %v1156
        %v1158 = vrot.slane %v1052, 1
        %v1159 = vsel %vm1134, %v1156, %v1158
        %v1160 = vrot.slane %v1053, 1
        %v1161 = vrot.slane %v1054, 1
        %v1162 = vsel %vm1134, %v1160, %v1161
        %v1163 = vrot.slane %v1055, 1
        %v1164 = vsel %vm1134, %v1161, %v1163
        %v1165 = vrot.slane %v1056, 1
        %v1166 = vrot.slane %v1057, 1
        %v1167 = vsel %vm1134, %v1165, %v1166
        %v1168 = vrot.slane %v1058, 1
        %v1169 = vsel %vm1134, %v1166, %v1168
        %v1170 = vrot.slane %v1059, 1
        %v1171 = vrot.slane %v1060, 1
        %v1172 = vsel %vm1134, %v1170, %v1171
        %v1173 = vrot.slane %v1061, 1
        %v1174 = vsel %vm1134, %v1171, %v1173
        %v1175 = vrot.slane %v1062, 1
        %v1176 = vrot.slane %v1063, 1
        %v1177 = vsel %vm1134, %v1175, %v1176
        %v1178 = vrot.slane %v1064, 1
        %v1179 = vsel %vm1134, %v1176, %v1178
        %v1180 = vrot.slane %v1065, 1
        %v1181 = vrot.slane %v1066, 1
        %v1182 = vsel %vm1134, %v1180, %v1181
        %v1183 = vrot.slane %v1067, 1
        %v1184 = vsel %vm1134, %v1181, %v1183
        %v1185 = vrot.slane %v1068, 1
        %v1186 = vrot.slane %v1069, 1
        %v1187 = vsel %vm1134, %v1185, %v1186
        %v1188 = vrot.slane %v1070, 1
        %v1189 = vsel %vm1134, %v1186, %v1188
        %v1190 = vrot.slane %v1071, 1
        %v1191 = vrot.slane %v1072, 1
        %v1192 = vsel %vm1134, %v1190, %v1191
        %v1193 = vrot.slane %v1073, 1
        %v1194 = vsel %vm1134, %v1191, %v1193
        %v1195 = vrot.slane %v1074, 1
        %v1196 = vrot.slane %v1075, 1
        %v1197 = vsel %vm1134, %v1195, %v1196
        %v1198 = vrot.slane %v1076, 1
        %v1199 = vsel %vm1134, %v1196, %v1198
        %v1200 = vrot.slane %v1077, 1
        %v1201 = vrot.slane %v1078, 1
        %v1202 = vsel %vm1134, %v1200, %v1201
        %v1203 = vrot.slane %v1079, 1
        %v1204 = vsel %vm1134, %v1201, %v1203
        %v1205 = vrot.slane %v1080, 1
        %v1206 = vrot.slane %v1081, 1
        %v1207 = vsel %vm1134, %v1205, %v1206
        %v1208 = vrot.slane %v1082, 1
        %v1209 = vsel %vm1134, %v1206, %v1208
        %v1210 = vrot.slane %v1083, 1
        %v1211 = vrot.slane %v1084, 1
        %v1212 = vsel %vm1134, %v1210, %v1211
        %v1213 = vrot.slane %v1085, 1
        %v1214 = vsel %vm1134, %v1211, %v1213
        %v1247 = vadd.f32 %v1000, %v1137
        %v1248 = vadd.f32 %v1001, %v1139
        %v1249 = vadd.f32 %v1002, %v1142
        %v1250 = vadd.f32 %v1003, %v1144
        %v1251 = vadd.f32 %v1004, %v1147
        %v1252 = vadd.f32 %v1005, %v1149
        %v1253 = vadd.f32 %v1006, %v1152
        %v1254 = vadd.f32 %v1007, %v1154
        %v1255 = vadd.f32 %v1008, %v1157
        %v1256 = vadd.f32 %v1009, %v1159
        %v1257 = vadd.f32 %v1010, %v1162
        %v1258 = vadd.f32 %v1011, %v1164
        %v1259 = vadd.f32 %v1012, %v1167
        %v1260 = vadd.f32 %v1013, %v1169
        %v1261 = vadd.f32 %v1014, %v1172
        %v1262 = vadd.f32 %v1015, %v1174
        %v1263 = vadd.f32 %v1016, %v1177
        %v1264 = vadd.f32 %v1017, %v1179
        %v1265 = vadd.f32 %v1018, %v1182
        %v1266 = vadd.f32 %v1019, %v1184
        %v1267 = vadd.f32 %v1020, %v1187
        %v1268 = vadd.f32 %v1021, %v1189
        %v1269 = vadd.f32 %v1022, %v1192
        %v1270 = vadd.f32 %v1023, %v1194
        %v1271 = vadd.f32 %v1024, %v1197
        %v1272 = vadd.f32 %v1025, %v1199
        %v1273 = vadd.f32 %v1026, %v1202
        %v1274 = vadd.f32 %v1027, %v1204
        %v1275 = vadd.f32 %v1028, %v1207
        %v1276 = vadd.f32 %v1029, %v1209
        %v1277 = vadd.f32 %v1030, %v1212
        %v1278 = vadd.f32 %v1031, %v1214
        %v1280 = vlaneseq
        %v1281 = vshrl.u32 %v1280, 7
        %v1282 = vsub.s32 0, %v1281
        %v1283 = vrot.slane %v817, %v1282
        %v1285 = vmul.f32 %v780, %v1283
        %v1286 = vmul.f32 %v683, %v1283
        %v1287 = vmul.f32 %v797, %v1283
        %v1288 = vmul.f32 %v781, %v1283
        %v1289 = vmul.f32 %v686, %v1283
        %v1290 = vmul.f32 %v798, %v1283
        %v1291 = vmul.f32 %v782, %v1283
        %v1292 = vmul.f32 %v689, %v1283
        %v1293 = vmul.f32 %v799, %v1283
        %v1294 = vmul.f32 %v783, %v1283
        %v1295 = vmul.f32 %v692, %v1283
        %v1296 = vmul.f32 %v800, %v1283
        %v1297 = vmul.f32 %v784, %v1283
        %v1298 = vmul.f32 %v695, %v1283
        %v1299 = vmul.f32 %v801, %v1283
        %v1300 = vmul.f32 %v785, %v1283
        %v1301 = vmul.f32 %v698, %v1283
        %v1302 = vmul.f32 %v802, %v1283
        %v1303 = vmul.f32 %v786, %v1283
        %v1304 = vmul.f32 %v701, %v1283
        %v1305 = vmul.f32 %v803, %v1283
        %v1306 = vmul.f32 %v787, %v1283
        %v1307 = vmul.f32 %v704, %v1283
        %v1308 = vmul.f32 %v804, %v1283
        %v1309 = vmul.f32 %v788, %v1283
        %v1310 = vmul.f32 %v707, %v1283
        %v1311 = vmul.f32 %v805, %v1283
        %v1312 = vmul.f32 %v789, %v1283
        %v1313 = vmul.f32 %v710, %v1283
        %v1314 = vmul.f32 %v806, %v1283
        %v1315 = vmul.f32 %v790, %v1283
        %v1316 = vmul.f32 %v713, %v1283
        %v1317 = vmul.f32 %v807, %v1283
        %v1318 = vmul.f32 %v791, %v1283
        %v1319 = vmul.f32 %v716, %v1283
        %v1320 = vmul.f32 %v808, %v1283
        %v1321 = vmul.f32 %v792, %v1283
        %v1322 = vmul.f32 %v719, %v1283
        %v1323 = vmul.f32 %v809, %v1283
        %v1324 = vmul.f32 %v793, %v1283
        %v1325 = vmul.f32 %v722, %v1283
        %v1326 = vmul.f32 %v810, %v1283
        %v1327 = vmul.f32 %v794, %v1283
        %v1328 = vmul.f32 %v725, %v1283
        %v1329 = vmul.f32 %v811, %v1283
        %v1330 = vmul.f32 %v795, %v1283
        %v1331 = vmul.f32 %v728, %v1283
        %v1332 = vmul.f32 %v812, %v1283
        %v1381 = vrot.slane %v1285, 1
        %v1382 = vrot.slane %v1286, 1
        %v1383 = vsel %vm1134, %v1381, %v1382
        %v1384 = vrot.slane %v1287, 1
        %v1385 = vsel %vm1134, %v1382, %v1384
        %v1386 = vrot.slane %v1288, 1
        %v1387 = vrot.slane %v1289, 1
        %v1388 = vsel %vm1134, %v1386, %v1387
        %v1389 = vrot.slane %v1290, 1
        %v1390 = vsel %vm1134, %v1387, %v1389
        %v1391 = vrot.slane %v1291, 1
        %v1392 = vrot.slane %v1292, 1
        %v1393 = vsel %vm1134, %v1391, %v1392
        %v1394 = vrot.slane %v1293, 1
        %v1395 = vsel %vm1134, %v1392, %v1394
        %v1396 = vrot.slane %v1294, 1
        %v1397 = vrot.slane %v1295, 1
        %v1398 = vsel %vm1134, %v1396, %v1397
        %v1399 = vrot.slane %v1296, 1
        %v1400 = vsel %vm1134, %v1397, %v1399
        %v1401 = vrot.slane %v1297, 1
        %v1402 = vrot.slane %v1298, 1
        %v1403 = vsel %vm1134, %v1401, %v1402
        %v1404 = vrot.slane %v1299, 1
        %v1405 = vsel %vm1134, %v1402, %v1404
        %v1406 = vrot.slane %v1300, 1
        %v1407 = vrot.slane %v1301, 1
        %v1408 = vsel %vm1134, %v1406, %v1407
        %v1409 = vrot.slane %v1302, 1
        %v1410 = vsel %vm1134, %v1407, %v1409
        %v1411 = vrot.slane %v1303, 1
        %v1412 = vrot.slane %v1304, 1
        %v1413 = vsel %vm1134, %v1411, %v1412
        %v1414 = vrot.slane %v1305, 1
        %v1415 = vsel %vm1134, %v1412, %v1414
        %v1416 = vrot.slane %v1306, 1
        %v1417 = vrot.slane %v1307, 1
        %v1418 = vsel %vm1134, %v1416, %v1417
        %v1419 = vrot.slane %v1308, 1
        %v1420 = vsel %vm1134, %v1417, %v1419
        %v1421 = vrot.slane %v1309, 1
        %v1422 = vrot.slane %v1310, 1
        %v1423 = vsel %vm1134, %v1421, %v1422
        %v1424 = vrot.slane %v1311, 1
        %v1425 = vsel %vm1134, %v1422, %v1424
        %v1426 = vrot.slane %v1312, 1
        %v1427 = vrot.slane %v1313, 1
        %v1428 = vsel %vm1134, %v1426, %v1427
        %v1429 = vrot.slane %v1314, 1
        %v1430 = vsel %vm1134, %v1427, %v1429
        %v1431 = vrot.slane %v1315, 1
        %v1432 = vrot.slane %v1316, 1
        %v1433 = vsel %vm1134, %v1431, %v1432
        %v1434 = vrot.slane %v1317, 1
        %v1435 = vsel %vm1134, %v1432, %v1434
        %v1436 = vrot.slane %v1318, 1
        %v1437 = vrot.slane %v1319, 1
        %v1438 = vsel %vm1134, %v1436, %v1437
        %v1439 = vrot.slane %v1320, 1
        %v1440 = vsel %vm1134, %v1437, %v1439
        %v1441 = vrot.slane %v1321, 1
        %v1442 = vrot.slane %v1322, 1
        %v1443 = vsel %vm1134, %v1441, %v1442
        %v1444 = vrot.slane %v1323, 1
        %v1445 = vsel %vm1134, %v1442, %v1444
        %v1446 = vrot.slane %v1324, 1
        %v1447 = vrot.slane %v1325, 1
        %v1448 = vsel %vm1134, %v1446, %v1447
        %v1449 = vrot.slane %v1326, 1
        %v1450 = vsel %vm1134, %v1447, %v1449
        %v1451 = vrot.slane %v1327, 1
        %v1452 = vrot.slane %v1328, 1
        %v1453 = vsel %vm1134, %v1451, %v1452
        %v1454 = vrot.slane %v1329, 1
        %v1455 = vsel %vm1134, %v1452, %v1454
        %v1456 = vrot.slane %v1330, 1
        %v1457 = vrot.slane %v1331, 1
        %v1458 = vsel %vm1134, %v1456, %v1457
        %v1459 = vrot.slane %v1332, 1
        %v1460 = vsel %vm1134, %v1457, %v1459
        %v1493 = vadd.f32 %v1247, %v1383
        %v1494 = vadd.f32 %v1248, %v1385
        %v1495 = vadd.f32 %v1249, %v1388
        %v1496 = vadd.f32 %v1250, %v1390
        %v1497 = vadd.f32 %v1251, %v1393
        %v1498 = vadd.f32 %v1252, %v1395
        %v1499 = vadd.f32 %v1253, %v1398
        %v1500 = vadd.f32 %v1254, %v1400
        %v1501 = vadd.f32 %v1255, %v1403
        %v1502 = vadd.f32 %v1256, %v1405
        %v1503 = vadd.f32 %v1257, %v1408
        %v1504 = vadd.f32 %v1258, %v1410
        %v1505 = vadd.f32 %v1259, %v1413
        %v1506 = vadd.f32 %v1260, %v1415
        %v1507 = vadd.f32 %v1261, %v1418
        %v1508 = vadd.f32 %v1262, %v1420
        %v1509 = vadd.f32 %v1263, %v1423
        %v1510 = vadd.f32 %v1264, %v1425
        %v1511 = vadd.f32 %v1265, %v1428
        %v1512 = vadd.f32 %v1266, %v1430
        %v1513 = vadd.f32 %v1267, %v1433
        %v1514 = vadd.f32 %v1268, %v1435
        %v1515 = vadd.f32 %v1269, %v1438
        %v1516 = vadd.f32 %v1270, %v1440
        %v1517 = vadd.f32 %v1271, %v1443
        %v1518 = vadd.f32 %v1272, %v1445
        %v1519 = vadd.f32 %v1273, %v1448
        %v1520 = vadd.f32 %v1274, %v1450
        %v1521 = vadd.f32 %v1275, %v1453
        %v1522 = vadd.f32 %v1276, %v1455
        %v1523 = vadd.f32 %v1277, %v1458
        %v1524 = vadd.f32 %v1278, %v1460
        %v1526 = vlaneseq
        %v1527 = vshrl.u32 %v1526, 7
        %v1528 = vsub.s32 0, %v1527
        %v1529 = vrot.slane %v820, %v1528
        %v1531 = vmul.f32 %v781, %v1529
        %v1532 = vmul.f32 %v686, %v1529
        %v1533 = vmul.f32 %v798, %v1529
        %v1534 = vmul.f32 %v782, %v1529
        %v1535 = vmul.f32 %v689, %v1529
        %v1536 = vmul.f32 %v799, %v1529
        %v1537 = vmul.f32 %v783, %v1529
        %v1538 = vmul.f32 %v692, %v1529
        %v1539 = vmul.f32 %v800, %v1529
        %v1540 = vmul.f32 %v784, %v1529
        %v1541 = vmul.f32 %v695, %v1529
        %v1542 = vmul.f32 %v801, %v1529
        %v1543 = vmul.f32 %v785, %v1529
        %v1544 = vmul.f32 %v698, %v1529
        %v1545 = vmul.f32 %v802, %v1529
        %v1546 = vmul.f32 %v786, %v1529
        %v1547 = vmul.f32 %v701, %v1529
        %v1548 = vmul.f32 %v803, %v1529
        %v1549 = vmul.f32 %v787, %v1529
        %v1550 = vmul.f32 %v704, %v1529
        %v1551 = vmul.f32 %v804, %v1529
        %v1552 = vmul.f32 %v788, %v1529
        %v1553 = vmul.f32 %v707, %v1529
        %v1554 = vmul.f32 %v805, %v1529
        %v1555 = vmul.f32 %v789, %v1529
        %v1556 = vmul.f32 %v710, %v1529
        %v1557 = vmul.f32 %v806, %v1529
        %v1558 = vmul.f32 %v790, %v1529
        %v1559 = vmul.f32 %v713, %v1529
        %v1560 = vmul.f32 %v807, %v1529
        %v1561 = vmul.f32 %v791, %v1529
        %v1562 = vmul.f32 %v716, %v1529
        %v1563 = vmul.f32 %v808, %v1529
        %v1564 = vmul.f32 %v792, %v1529
        %v1565 = vmul.f32 %v719, %v1529
        %v1566 = vmul.f32 %v809, %v1529
        %v1567 = vmul.f32 %v793, %v1529
        %v1568 = vmul.f32 %v722, %v1529
        %v1569 = vmul.f32 %v810, %v1529
        %v1570 = vmul.f32 %v794, %v1529
        %v1571 = vmul.f32 %v725, %v1529
        %v1572 = vmul.f32 %v811, %v1529
        %v1573 = vmul.f32 %v795, %v1529
        %v1574 = vmul.f32 %v728, %v1529
        %v1575 = vmul.f32 %v812, %v1529
        %v1576 = vmul.f32 %v779, %v1529
        %v1577 = vmul.f32 %v680, %v1529
        %v1578 = vmul.f32 %v796, %v1529
        %v1627 = vrot.slane %v1531, 1
        %v1628 = vrot.slane %v1532, 1
        %v1629 = vsel %vm1134, %v1627, %v1628
        %v1630 = vrot.slane %v1533, 1
        %v1631 = vsel %vm1134, %v1628, %v1630
        %v1632 = vrot.slane %v1534, 1
        %v1633 = vrot.slane %v1535, 1
        %v1634 = vsel %vm1134, %v1632, %v1633
        %v1635 = vrot.slane %v1536, 1
        %v1636 = vsel %vm1134, %v1633, %v1635
        %v1637 = vrot.slane %v1537, 1
        %v1638 = vrot.slane %v1538, 1
        %v1639 = vsel %vm1134, %v1637, %v1638
        %v1640 = vrot.slane %v1539, 1
        %v1641 = vsel %vm1134, %v1638, %v1640
        %v1642 = vrot.slane %v1540, 1
        %v1643 = vrot.slane %v1541, 1
        %v1644 = vsel %vm1134, %v1642, %v1643
        %v1645 = vrot.slane %v1542, 1
        %v1646 = vsel %vm1134, %v1643, %v1645
        %v1647 = vrot.slane %v1543, 1
        %v1648 = vrot.slane %v1544, 1
        %v1649 = vsel %vm1134, %v1647, %v1648
        %v1650 = vrot.slane %v1545, 1
        %v1651 = vsel %vm1134, %v1648, %v1650
        %v1652 = vrot.slane %v1546, 1
        %v1653 = vrot.slane %v1547, 1
        %v1654 = vsel %vm1134, %v1652, %v1653
        %v1655 = vrot.slane %v1548, 1
        %v1656 = vsel %vm1134, %v1653, %v1655
        %v1657 = vrot.slane %v1549, 1
        %v1658 = vrot.slane %v1550, 1
        %v1659 = vsel %vm1134, %v1657, %v1658
        %v1660 = vrot.slane %v1551, 1
        %v1661 = vsel %vm1134, %v1658, %v1660
        %v1662 = vrot.slane %v1552, 1
        %v1663 = vrot.slane %v1553, 1
        %v1664 = vsel %vm1134, %v1662, %v1663
        %v1665 = vrot.slane %v1554, 1
        %v1666 = vsel %vm1134, %v1663, %v1665
        %v1667 = vrot.slane %v1555, 1
        %v1668 = vrot.slane %v1556, 1
        %v1669 = vsel %vm1134, %v1667, %v1668
        %v1670 = vrot.slane %v1557, 1
        %v1671 = vsel %vm1134, %v1668, %v1670
        %v1672 = vrot.slane %v1558, 1
        %v1673 = vrot.slane %v1559, 1
        %v1674 = vsel %vm1134, %v1672, %v1673
        %v1675 = vrot.slane %v1560, 1
        %v1676 = vsel %vm1134, %v1673, %v1675
        %v1677 = vrot.slane %v1561, 1
        %v1678 = vrot.slane %v1562, 1
        %v1679 = vsel %vm1134, %v1677, %v1678
        %v1680 = vrot.slane %v1563, 1
        %v1681 = vsel %vm1134, %v1678, %v1680
        %v1682 = vrot.slane %v1564, 1
        %v1683 = vrot.slane %v1565, 1
        %v1684 = vsel %vm1134, %v1682, %v1683
        %v1685 = vrot.slane %v1566, 1
        %v1686 = vsel %vm1134, %v1683, %v1685
        %v1687 = vrot.slane %v1567, 1
        %v1688 = vrot.slane %v1568, 1
        %v1689 = vsel %vm1134, %v1687, %v1688
        %v1690 = vrot.slane %v1569, 1
        %v1691 = vsel %vm1134, %v1688, %v1690
        %v1692 = vrot.slane %v1570, 1
        %v1693 = vrot.slane %v1571, 1
        %v1694 = vsel %vm1134, %v1692, %v1693
        %v1695 = vrot.slane %v1572, 1
        %v1696 = vsel %vm1134, %v1693, %v1695
        %v1697 = vrot.slane %v1573, 1
        %v1698 = vrot.slane %v1574, 1
        %v1699 = vsel %vm1134, %v1697, %v1698
        %v1700 = vrot.slane %v1575, 1
        %v1701 = vsel %vm1134, %v1698, %v1700
        %v1702 = vrot.slane %v1576, 1
        %v1703 = vrot.slane %v1577, 1
        %v1704 = vsel %vm1134, %v1702, %v1703
        %v1705 = vrot.slane %v1578, 1
        %v1706 = vsel %vm1134, %v1703, %v1705
        %v1739 = vadd.f32 %v1493, %v1629
        %v1740 = vadd.f32 %v1494, %v1631
        %v1741 = vadd.f32 %v1495, %v1634
        %v1742 = vadd.f32 %v1496, %v1636
        %v1743 = vadd.f32 %v1497, %v1639
        %v1744 = vadd.f32 %v1498, %v1641
        %v1745 = vadd.f32 %v1499, %v1644
        %v1746 = vadd.f32 %v1500, %v1646
        %v1747 = vadd.f32 %v1501, %v1649
        %v1748 = vadd.f32 %v1502, %v1651
        %v1749 = vadd.f32 %v1503, %v1654
        %v1750 = vadd.f32 %v1504, %v1656
        %v1751 = vadd.f32 %v1505, %v1659
        %v1752 = vadd.f32 %v1506, %v1661
        %v1753 = vadd.f32 %v1507, %v1664
        %v1754 = vadd.f32 %v1508, %v1666
        %v1755 = vadd.f32 %v1509, %v1669
        %v1756 = vadd.f32 %v1510, %v1671
        %v1757 = vadd.f32 %v1511, %v1674
        %v1758 = vadd.f32 %v1512, %v1676
        %v1759 = vadd.f32 %v1513, %v1679
        %v1760 = vadd.f32 %v1514, %v1681
        %v1761 = vadd.f32 %v1515, %v1684
        %v1762 = vadd.f32 %v1516, %v1686
        %v1763 = vadd.f32 %v1517, %v1689
        %v1764 = vadd.f32 %v1518, %v1691
        %v1765 = vadd.f32 %v1519, %v1694
        %v1766 = vadd.f32 %v1520, %v1696
        %v1767 = vadd.f32 %v1521, %v1699
        %v1768 = vadd.f32 %v1522, %v1701
        %v1769 = vadd.f32 %v1523, %v1704
        %v1770 = vadd.f32 %v1524, %v1706
        %v1772 = vlaneseq
        %v1773 = vshrl.u32 %v1772, 7
        %v1774 = vsub.s32 0, %v1773
        %v1775 = vrot.slane %v815, %v1774
        %v1777 = vmul.f32 %v779, %v1775
        %v1778 = vmul.f32 %v680, %v1775
        %v1779 = vmul.f32 %v796, %v1775
        %v1780 = vmul.f32 %v780, %v1775
        %v1781 = vmul.f32 %v683, %v1775
        %v1782 = vmul.f32 %v797, %v1775
        %v1783 = vmul.f32 %v781, %v1775
        %v1784 = vmul.f32 %v686, %v1775
        %v1785 = vmul.f32 %v798, %v1775
        %v1786 = vmul.f32 %v782, %v1775
        %v1787 = vmul.f32 %v689, %v1775
        %v1788 = vmul.f32 %v799, %v1775
        %v1789 = vmul.f32 %v783, %v1775
        %v1790 = vmul.f32 %v692, %v1775
        %v1791 = vmul.f32 %v800, %v1775
        %v1792 = vmul.f32 %v784, %v1775
        %v1793 = vmul.f32 %v695, %v1775
        %v1794 = vmul.f32 %v801, %v1775
        %v1795 = vmul.f32 %v785, %v1775
        %v1796 = vmul.f32 %v698, %v1775
        %v1797 = vmul.f32 %v802, %v1775
        %v1798 = vmul.f32 %v786, %v1775
        %v1799 = vmul.f32 %v701, %v1775
        %v1800 = vmul.f32 %v803, %v1775
        %v1801 = vmul.f32 %v787, %v1775
        %v1802 = vmul.f32 %v704, %v1775
        %v1803 = vmul.f32 %v804, %v1775
        %v1804 = vmul.f32 %v788, %v1775
        %v1805 = vmul.f32 %v707, %v1775
        %v1806 = vmul.f32 %v805, %v1775
        %v1807 = vmul.f32 %v789, %v1775
        %v1808 = vmul.f32 %v710, %v1775
        %v1809 = vmul.f32 %v806, %v1775
        %v1810 = vmul.f32 %v790, %v1775
        %v1811 = vmul.f32 %v713, %v1775
        %v1812 = vmul.f32 %v807, %v1775
        %v1813 = vmul.f32 %v791, %v1775
        %v1814 = vmul.f32 %v716, %v1775
        %v1815 = vmul.f32 %v808, %v1775
        %v1816 = vmul.f32 %v792, %v1775
        %v1817 = vmul.f32 %v719, %v1775
        %v1818 = vmul.f32 %v809, %v1775
        %v1819 = vmul.f32 %v793, %v1775
        %v1820 = vmul.f32 %v722, %v1775
        %v1821 = vmul.f32 %v810, %v1775
        %v1822 = vmul.f32 %v794, %v1775
        %v1823 = vmul.f32 %v725, %v1775
        %v1824 = vmul.f32 %v811, %v1775
        %vm1873 = vcmask 1045504
        %v1874 = vrot.slane %v1777, 2
        %v1875 = vrot.slane %v1778, 2
        %v1876 = vsel %vm1873, %v1874, %v1875
        %v1877 = vrot.slane %v1779, 2
        %v1878 = vsel %vm1873, %v1875, %v1877
        %v1879 = vrot.slane %v1780, 2
        %v1880 = vrot.slane %v1781, 2
        %v1881 = vsel %vm1873, %v1879, %v1880
        %v1882 = vrot.slane %v1782, 2
        %v1883 = vsel %vm1873, %v1880, %v1882
        %v1884 = vrot.slane %v1783, 2
        %v1885 = vrot.slane %v1784, 2
        %v1886 = vsel %vm1873, %v1884, %v1885
        %v1887 = vrot.slane %v1785, 2
        %v1888 = vsel %vm1873, %v1885, %v1887
        %v1889 = vrot.slane %v1786, 2
        %v1890 = vrot.slane %v1787, 2
        %v1891 = vsel %vm1873, %v1889, %v1890
        %v1892 = vrot.slane %v1788, 2
        %v1893 = vsel %vm1873, %v1890, %v1892
        %v1894 = vrot.slane %v1789, 2
        %v1895 = vrot.slane %v1790, 2
        %v1896 = vsel %vm1873, %v1894, %v1895
        %v1897 = vrot.slane %v1791, 2
        %v1898 = vsel %vm1873, %v1895, %v1897
        %v1899 = vrot.slane %v1792, 2
        %v1900 = vrot.slane %v1793, 2
        %v1901 = vsel %vm1873, %v1899, %v1900
        %v1902 = vrot.slane %v1794, 2
        %v1903 = vsel %vm1873, %v1900, %v1902
        %v1904 = vrot.slane %v1795, 2
        %v1905 = vrot.slane %v1796, 2
        %v1906 = vsel %vm1873, %v1904, %v1905
        %v1907 = vrot.slane %v1797, 2
        %v1908 = vsel %vm1873, %v1905, %v1907
        %v1909 = vrot.slane %v1798, 2
        %v1910 = vrot.slane %v1799, 2
        %v1911 = vsel %vm1873, %v1909, %v1910
        %v1912 = vrot.slane %v1800, 2
        %v1913 = vsel %vm1873, %v1910, %v1912
        %v1914 = vrot.slane %v1801, 2
        %v1915 = vrot.slane %v1802, 2
        %v1916 = vsel %vm1873, %v1914, %v1915
        %v1917 = vrot.slane %v1803, 2
        %v1918 = vsel %vm1873, %v1915, %v1917
        %v1919 = vrot.slane %v1804, 2
        %v1920 = vrot.slane %v1805, 2
        %v1921 = vsel %vm1873, %v1919, %v1920
        %v1922 = vrot.slane %v1806, 2
        %v1923 = vsel %vm1873, %v1920, %v1922
        %v1924 = vrot.slane %v1807, 2
        %v1925 = vrot.slane %v1808, 2
        %v1926 = vsel %vm1873, %v1924, %v1925
        %v1927 = vrot.slane %v1809, 2
        %v1928 = vsel %vm1873, %v1925, %v1927
        %v1929 = vrot.slane %v1810, 2
        %v1930 = vrot.slane %v1811, 2
        %v1931 = vsel %vm1873, %v1929, %v1930
        %v1932 = vrot.slane %v1812, 2
        %v1933 = vsel %vm1873, %v1930, %v1932
        %v1934 = vrot.slane %v1813, 2
        %v1935 = vrot.slane %v1814, 2
        %v1936 = vsel %vm1873, %v1934, %v1935
        %v1937 = vrot.slane %v1815, 2
        %v1938 = vsel %vm1873, %v1935, %v1937
        %v1939 = vrot.slane %v1816, 2
        %v1940 = vrot.slane %v1817, 2
        %v1941 = vsel %vm1873, %v1939, %v1940
        %v1942 = vrot.slane %v1818, 2
        %v1943 = vsel %vm1873, %v1940, %v1942
        %v1944 = vrot.slane %v1819, 2
        %v1945 = vrot.slane %v1820, 2
        %v1946 = vsel %vm1873, %v1944, %v1945
        %v1947 = vrot.slane %v1821, 2
        %v1948 = vsel %vm1873, %v1945, %v1947
        %v1949 = vrot.slane %v1822, 2
        %v1950 = vrot.slane %v1823, 2
        %v1951 = vsel %vm1873, %v1949, %v1950
        %v1952 = vrot.slane %v1824, 2
        %v1953 = vsel %vm1873, %v1950, %v1952
        %v1986 = vadd.f32 %v1739, %v1876
        %v1987 = vadd.f32 %v1740, %v1878
        %v1988 = vadd.f32 %v1741, %v1881
        %v1989 = vadd.f32 %v1742, %v1883
        %v1990 = vadd.f32 %v1743, %v1886
        %v1991 = vadd.f32 %v1744, %v1888
        %v1992 = vadd.f32 %v1745, %v1891
        %v1993 = vadd.f32 %v1746, %v1893
        %v1994 = vadd.f32 %v1747, %v1896
        %v1995 = vadd.f32 %v1748, %v1898
        %v1996 = vadd.f32 %v1749, %v1901
        %v1997 = vadd.f32 %v1750, %v1903
        %v1998 = vadd.f32 %v1751, %v1906
        %v1999 = vadd.f32 %v1752, %v1908
        %v2000 = vadd.f32 %v1753, %v1911
        %v2001 = vadd.f32 %v1754, %v1913
        %v2002 = vadd.f32 %v1755, %v1916
        %v2003 = vadd.f32 %v1756, %v1918
        %v2004 = vadd.f32 %v1757, %v1921
        %v2005 = vadd.f32 %v1758, %v1923
        %v2006 = vadd.f32 %v1759, %v1926
        %v2007 = vadd.f32 %v1760, %v1928
        %v2008 = vadd.f32 %v1761, %v1931
        %v2009 = vadd.f32 %v1762, %v1933
        %v2010 = vadd.f32 %v1763, %v1936
        %v2011 = vadd.f32 %v1764, %v1938
        %v2012 = vadd.f32 %v1765, %v1941
        %v2013 = vadd.f32 %v1766, %v1943
        %v2014 = vadd.f32 %v1767, %v1946
        %v2015 = vadd.f32 %v1768, %v1948
        %v2016 = vadd.f32 %v1769, %v1951
        %v2017 = vadd.f32 %v1770, %v1953
        %v2019 = vlaneseq
        %v2020 = vshrl.u32 %v2019, 7
        %v2021 = vsub.s32 0, %v2020
        %v2022 = vrot.slane %v818, %v2021
        %v2024 = vmul.f32 %v780, %v2022
        %v2025 = vmul.f32 %v683, %v2022
        %v2026 = vmul.f32 %v797, %v2022
        %v2027 = vmul.f32 %v781, %v2022
        %v2028 = vmul.f32 %v686, %v2022
        %v2029 = vmul.f32 %v798, %v2022
        %v2030 = vmul.f32 %v782, %v2022
        %v2031 = vmul.f32 %v689, %v2022
        %v2032 = vmul.f32 %v799, %v2022
        %v2033 = vmul.f32 %v783, %v2022
        %v2034 = vmul.f32 %v692, %v2022
        %v2035 = vmul.f32 %v800, %v2022
        %v2036 = vmul.f32 %v784, %v2022
        %v2037 = vmul.f32 %v695, %v2022
        %v2038 = vmul.f32 %v801, %v2022
        %v2039 = vmul.f32 %v785, %v2022
        %v2040 = vmul.f32 %v698, %v2022
        %v2041 = vmul.f32 %v802, %v2022
        %v2042 = vmul.f32 %v786, %v2022
        %v2043 = vmul.f32 %v701, %v2022
        %v2044 = vmul.f32 %v803, %v2022
        %v2045 = vmul.f32 %v787, %v2022
        %v2046 = vmul.f32 %v704, %v2022
        %v2047 = vmul.f32 %v804, %v2022
        %v2048 = vmul.f32 %v788, %v2022
        %v2049 = vmul.f32 %v707, %v2022
        %v2050 = vmul.f32 %v805, %v2022
        %v2051 = vmul.f32 %v789, %v2022
        %v2052 = vmul.f32 %v710, %v2022
        %v2053 = vmul.f32 %v806, %v2022
        %v2054 = vmul.f32 %v790, %v2022
        %v2055 = vmul.f32 %v713, %v2022
        %v2056 = vmul.f32 %v807, %v2022
        %v2057 = vmul.f32 %v791, %v2022
        %v2058 = vmul.f32 %v716, %v2022
        %v2059 = vmul.f32 %v808, %v2022
        %v2060 = vmul.f32 %v792, %v2022
        %v2061 = vmul.f32 %v719, %v2022
        %v2062 = vmul.f32 %v809, %v2022
        %v2063 = vmul.f32 %v793, %v2022
        %v2064 = vmul.f32 %v722, %v2022
        %v2065 = vmul.f32 %v810, %v2022
        %v2066 = vmul.f32 %v794, %v2022
        %v2067 = vmul.f32 %v725, %v2022
        %v2068 = vmul.f32 %v811, %v2022
        %v2069 = vmul.f32 %v795, %v2022
        %v2070 = vmul.f32 %v728, %v2022
        %v2071 = vmul.f32 %v812, %v2022
        %v2120 = vrot.slane %v2024, 2
        %v2121 = vrot.slane %v2025, 2
        %v2122 = vsel %vm1873, %v2120, %v2121
        %v2123 = vrot.slane %v2026, 2
        %v2124 = vsel %vm1873, %v2121, %v2123
        %v2125 = vrot.slane %v2027, 2
        %v2126 = vrot.slane %v2028, 2
        %v2127 = vsel %vm1873, %v2125, %v2126
        %v2128 = vrot.slane %v2029, 2
        %v2129 = vsel %vm1873, %v2126, %v2128
        %v2130 = vrot.slane %v2030, 2
        %v2131 = vrot.slane %v2031, 2
        %v2132 = vsel %vm1873, %v2130, %v2131
        %v2133 = vrot.slane %v2032, 2
        %v2134 = vsel %vm1873, %v2131, %v2133
        %v2135 = vrot.slane %v2033, 2
        %v2136 = vrot.slane %v2034, 2
        %v2137 = vsel %vm1873, %v2135, %v2136
        %v2138 = vrot.slane %v2035, 2
        %v2139 = vsel %vm1873, %v2136, %v2138
        %v2140 = vrot.slane %v2036, 2
        %v2141 = vrot.slane %v2037, 2
        %v2142 = vsel %vm1873, %v2140, %v2141
        %v2143 = vrot.slane %v2038, 2
        %v2144 = vsel %vm1873, %v2141, %v2143
        %v2145 = vrot.slane %v2039, 2
        %v2146 = vrot.slane %v2040, 2
        %v2147 = vsel %vm1873, %v2145, %v2146
        %v2148 = vrot.slane %v2041, 2
        %v2149 = vsel %vm1873, %v2146, %v2148
        %v2150 = vrot.slane %v2042, 2
        %v2151 = vrot.slane %v2043, 2
        %v2152 = vsel %vm1873, %v2150, %v2151
        %v2153 = vrot.slane %v2044, 2
        %v2154 = vsel %vm1873, %v2151, %v2153
        %v2155 = vrot.slane %v2045, 2
        %v2156 = vrot.slane %v2046, 2
        %v2157 = vsel %vm1873, %v2155, %v2156
        %v2158 = vrot.slane %v2047, 2
        %v2159 = vsel %vm1873, %v2156, %v2158
        %v2160 = vrot.slane %v2048, 2
        %v2161 = vrot.slane %v2049, 2
        %v2162 = vsel %vm1873, %v2160, %v2161
        %v2163 = vrot.slane %v2050, 2
        %v2164 = vsel %vm1873, %v2161, %v2163
        %v2165 = vrot.slane %v2051, 2
        %v2166 = vrot.slane %v2052, 2
        %v2167 = vsel %vm1873, %v2165, %v2166
        %v2168 = vrot.slane %v2053, 2
        %v2169 = vsel %vm1873, %v2166, %v2168
        %v2170 = vrot.slane %v2054, 2
        %v2171 = vrot.slane %v2055, 2
        %v2172 = vsel %vm1873, %v2170, %v2171
        %v2173 = vrot.slane %v2056, 2
        %v2174 = vsel %vm1873, %v2171, %v2173
        %v2175 = vrot.slane %v2057, 2
        %v2176 = vrot.slane %v2058, 2
        %v2177 = vsel %vm1873, %v2175, %v2176
        %v2178 = vrot.slane %v2059, 2
        %v2179 = vsel %vm1873, %v2176, %v2178
        %v2180 = vrot.slane %v2060, 2
        %v2181 = vrot.slane %v2061, 2
        %v2182 = vsel %vm1873, %v2180, %v2181
        %v2183 = vrot.slane %v2062, 2
        %v2184 = vsel %vm1873, %v2181, %v2183
        %v2185 = vrot.slane %v2063, 2
        %v2186 = vrot.slane %v2064, 2
        %v2187 = vsel %vm1873, %v2185, %v2186
        %v2188 = vrot.slane %v2065, 2
        %v2189 = vsel %vm1873, %v2186, %v2188
        %v2190 = vrot.slane %v2066, 2
        %v2191 = vrot.slane %v2067, 2
        %v2192 = vsel %vm1873, %v2190, %v2191
        %v2193 = vrot.slane %v2068, 2
        %v2194 = vsel %vm1873, %v2191, %v2193
        %v2195 = vrot.slane %v2069, 2
        %v2196 = vrot.slane %v2070, 2
        %v2197 = vsel %vm1873, %v2195, %v2196
        %v2198 = vrot.slane %v2071, 2
        %v2199 = vsel %vm1873, %v2196, %v2198
        %v2232 = vadd.f32 %v1986, %v2122
        %v2233 = vadd.f32 %v1987, %v2124
        %v2234 = vadd.f32 %v1988, %v2127
        %v2235 = vadd.f32 %v1989, %v2129
        %v2236 = vadd.f32 %v1990, %v2132
        %v2237 = vadd.f32 %v1991, %v2134
        %v2238 = vadd.f32 %v1992, %v2137
        %v2239 = vadd.f32 %v1993, %v2139
        %v2240 = vadd.f32 %v1994, %v2142
        %v2241 = vadd.f32 %v1995, %v2144
        %v2242 = vadd.f32 %v1996, %v2147
        %v2243 = vadd.f32 %v1997, %v2149
        %v2244 = vadd.f32 %v1998, %v2152
        %v2245 = vadd.f32 %v1999, %v2154
        %v2246 = vadd.f32 %v2000, %v2157
        %v2247 = vadd.f32 %v2001, %v2159
        %v2248 = vadd.f32 %v2002, %v2162
        %v2249 = vadd.f32 %v2003, %v2164
        %v2250 = vadd.f32 %v2004, %v2167
        %v2251 = vadd.f32 %v2005, %v2169
        %v2252 = vadd.f32 %v2006, %v2172
        %v2253 = vadd.f32 %v2007, %v2174
        %v2254 = vadd.f32 %v2008, %v2177
        %v2255 = vadd.f32 %v2009, %v2179
        %v2256 = vadd.f32 %v2010, %v2182
        %v2257 = vadd.f32 %v2011, %v2184
        %v2258 = vadd.f32 %v2012, %v2187
        %v2259 = vadd.f32 %v2013, %v2189
        %v2260 = vadd.f32 %v2014, %v2192
        %v2261 = vadd.f32 %v2015, %v2194
        %v2262 = vadd.f32 %v2016, %v2197
        %v2263 = vadd.f32 %v2017, %v2199
        %v2265 = vlaneseq
        %v2266 = vshrl.u32 %v2265, 7
        %v2267 = vsub.s32 0, %v2266
        %v2268 = vrot.slane %v821, %v2267
        %v2270 = vmul.f32 %v781, %v2268
        %v2271 = vmul.f32 %v686, %v2268
        %v2272 = vmul.f32 %v798, %v2268
        %v2273 = vmul.f32 %v782, %v2268
        %v2274 = vmul.f32 %v689, %v2268
        %v2275 = vmul.f32 %v799, %v2268
        %v2276 = vmul.f32 %v783, %v2268
        %v2277 = vmul.f32 %v692, %v2268
        %v2278 = vmul.f32 %v800, %v2268
        %v2279 = vmul.f32 %v784, %v2268
        %v2280 = vmul.f32 %v695, %v2268
        %v2281 = vmul.f32 %v801, %v2268
        %v2282 = vmul.f32 %v785, %v2268
        %v2283 = vmul.f32 %v698, %v2268
        %v2284 = vmul.f32 %v802, %v2268
        %v2285 = vmul.f32 %v786, %v2268
        %v2286 = vmul.f32 %v701, %v2268
        %v2287 = vmul.f32 %v803, %v2268
        %v2288 = vmul.f32 %v787, %v2268
        %v2289 = vmul.f32 %v704, %v2268
        %v2290 = vmul.f32 %v804, %v2268
        %v2291 = vmul.f32 %v788, %v2268
        %v2292 = vmul.f32 %v707, %v2268
        %v2293 = vmul.f32 %v805, %v2268
        %v2294 = vmul.f32 %v789, %v2268
        %v2295 = vmul.f32 %v710, %v2268
        %v2296 = vmul.f32 %v806, %v2268
        %v2297 = vmul.f32 %v790, %v2268
        %v2298 = vmul.f32 %v713, %v2268
        %v2299 = vmul.f32 %v807, %v2268
        %v2300 = vmul.f32 %v791, %v2268
        %v2301 = vmul.f32 %v716, %v2268
        %v2302 = vmul.f32 %v808, %v2268
        %v2303 = vmul.f32 %v792, %v2268
        %v2304 = vmul.f32 %v719, %v2268
        %v2305 = vmul.f32 %v809, %v2268
        %v2306 = vmul.f32 %v793, %v2268
        %v2307 = vmul.f32 %v722, %v2268
        %v2308 = vmul.f32 %v810, %v2268
        %v2309 = vmul.f32 %v794, %v2268
        %v2310 = vmul.f32 %v725, %v2268
        %v2311 = vmul.f32 %v811, %v2268
        %v2312 = vmul.f32 %v795, %v2268
        %v2313 = vmul.f32 %v728, %v2268
        %v2314 = vmul.f32 %v812, %v2268
        %v2315 = vmul.f32 %v779, %v2268
        %v2316 = vmul.f32 %v680, %v2268
        %v2317 = vmul.f32 %v796, %v2268
        %v2366 = vrot.slane %v2270, 2
        %v2367 = vrot.slane %v2271, 2
        %v2368 = vsel %vm1873, %v2366, %v2367
        %v2369 = vrot.slane %v2272, 2
        %v2370 = vsel %vm1873, %v2367, %v2369
        %v2371 = vrot.slane %v2273, 2
        %v2372 = vrot.slane %v2274, 2
        %v2373 = vsel %vm1873, %v2371, %v2372
        %v2374 = vrot.slane %v2275, 2
        %v2375 = vsel %vm1873, %v2372, %v2374
        %v2376 = vrot.slane %v2276, 2
        %v2377 = vrot.slane %v2277, 2
        %v2378 = vsel %vm1873, %v2376, %v2377
        %v2379 = vrot.slane %v2278, 2
        %v2380 = vsel %vm1873, %v2377, %v2379
        %v2381 = vrot.slane %v2279, 2
        %v2382 = vrot.slane %v2280, 2
        %v2383 = vsel %vm1873, %v2381, %v2382
        %v2384 = vrot.slane %v2281, 2
        %v2385 = vsel %vm1873, %v2382, %v2384
        %v2386 = vrot.slane %v2282, 2
        %v2387 = vrot.slane %v2283, 2
        %v2388 = vsel %vm1873, %v2386, %v2387
        %v2389 = vrot.slane %v2284, 2
        %v2390 = vsel %vm1873, %v2387, %v2389
        %v2391 = vrot.slane %v2285, 2
        %v2392 = vrot.slane %v2286, 2
        %v2393 = vsel %vm1873, %v2391, %v2392
        %v2394 = vrot.slane %v2287, 2
        %v2395 = vsel %vm1873, %v2392, %v2394
        %v2396 = vrot.slane %v2288, 2
        %v2397 = vrot.slane %v2289, 2
        %v2398 = vsel %vm1873, %v2396, %v2397
        %v2399 = vrot.slane %v2290, 2
        %v2400 = vsel %vm1873, %v2397, %v2399
        %v2401 = vrot.slane %v2291, 2
        %v2402 = vrot.slane %v2292, 2
        %v2403 = vsel %vm1873, %v2401, %v2402
        %v2404 = vrot.slane %v2293, 2
        %v2405 = vsel %vm1873, %v2402, %v2404
        %v2406 = vrot.slane %v2294, 2
        %v2407 = vrot.slane %v2295, 2
        %v2408 = vsel %vm1873, %v2406, %v2407
        %v2409 = vrot.slane %v2296, 2
        %v2410 = vsel %vm1873, %v2407, %v2409
        %v2411 = vrot.slane %v2297, 2
        %v2412 = vrot.slane %v2298, 2
        %v2413 = vsel %vm1873, %v2411, %v2412
        %v2414 = vrot.slane %v2299, 2
        %v2415 = vsel %vm1873, %v2412, %v2414
        %v2416 = vrot.slane %v2300, 2
        %v2417 = vrot.slane %v2301, 2
        %v2418 = vsel %vm1873, %v2416, %v2417
        %v2419 = vrot.slane %v2302, 2
        %v2420 = vsel %vm1873, %v2417, %v2419
        %v2421 = vrot.slane %v2303, 2
        %v2422 = vrot.slane %v2304, 2
        %v2423 = vsel %vm1873, %v2421, %v2422
        %v2424 = vrot.slane %v2305, 2
        %v2425 = vsel %vm1873, %v2422, %v2424
        %v2426 = vrot.slane %v2306, 2
        %v2427 = vrot.slane %v2307, 2
        %v2428 = vsel %vm1873, %v2426, %v2427
        %v2429 = vrot.slane %v2308, 2
        %v2430 = vsel %vm1873, %v2427, %v2429
        %v2431 = vrot.slane %v2309, 2
        %v2432 = vrot.slane %v2310, 2
        %v2433 = vsel %vm1873, %v2431, %v2432
        %v2434 = vrot.slane %v2311, 2
        %v2435 = vsel %vm1873, %v2432, %v2434
        %v2436 = vrot.slane %v2312, 2
        %v2437 = vrot.slane %v2313, 2
        %v2438 = vsel %vm1873, %v2436, %v2437
        %v2439 = vrot.slane %v2314, 2
        %v2440 = vsel %vm1873, %v2437, %v2439
        %v2441 = vrot.slane %v2315, 2
        %v2442 = vrot.slane %v2316, 2
        %v2443 = vsel %vm1873, %v2441, %v2442
        %v2444 = vrot.slane %v2317, 2
        %v2445 = vsel %vm1873, %v2442, %v2444
        %v2478 = vadd.f32 %v2232, %v2368
        %v2479 = vadd.f32 %v2233, %v2370
        %v2480 = vadd.f32 %v2234, %v2373
        %v2481 = vadd.f32 %v2235, %v2375
        %v2482 = vadd.f32 %v2236, %v2378
        %v2483 = vadd.f32 %v2237, %v2380
        %v2484 = vadd.f32 %v2238, %v2383
        %v2485 = vadd.f32 %v2239, %v2385
        %v2486 = vadd.f32 %v2240, %v2388
        %v2487 = vadd.f32 %v2241, %v2390
        %v2488 = vadd.f32 %v2242, %v2393
        %v2489 = vadd.f32 %v2243, %v2395
        %v2490 = vadd.f32 %v2244, %v2398
        %v2491 = vadd.f32 %v2245, %v2400
        %v2492 = vadd.f32 %v2246, %v2403
        %v2493 = vadd.f32 %v2247, %v2405
        %v2494 = vadd.f32 %v2248, %v2408
        %v2495 = vadd.f32 %v2249, %v2410
        %v2496 = vadd.f32 %v2250, %v2413
        %v2497 = vadd.f32 %v2251, %v2415
        %v2498 = vadd.f32 %v2252, %v2418
        %v2499 = vadd.f32 %v2253, %v2420
        %v2500 = vadd.f32 %v2254, %v2423
        %v2501 = vadd.f32 %v2255, %v2425
        %v2502 = vadd.f32 %v2256, %v2428
        %v2503 = vadd.f32 %v2257, %v2430
        %v2504 = vadd.f32 %v2258, %v2433
        %v2505 = vadd.f32 %v2259, %v2435
        %v2506 = vadd.f32 %v2260, %v2438
        %v2507 = vadd.f32 %v2261, %v2440
        %v2508 = vadd.f32 %v2262, %v2443
        %v2509 = vadd.f32 %v2263, %v2445
        %v2510 = vpack.c.bf16 %v2479, %v2478
        %v2511 = vpack.c.bf16 %v2481, %v2480
        %v2512 = vpack.c.bf16 %v2483, %v2482
        %v2513 = vpack.c.bf16 %v2485, %v2484
        %v2514 = vpack.c.bf16 %v2487, %v2486
        %v2515 = vpack.c.bf16 %v2489, %v2488
        %v2516 = vpack.c.bf16 %v2491, %v2490
        %v2517 = vpack.c.bf16 %v2493, %v2492
        %v2518 = vpack.c.bf16 %v2495, %v2494
        %v2519 = vpack.c.bf16 %v2497, %v2496
        %v2520 = vpack.c.bf16 %v2499, %v2498
        %v2521 = vpack.c.bf16 %v2501, %v2500
        %v2522 = vpack.c.bf16 %v2503, %v2502
        %v2523 = vpack.c.bf16 %v2505, %v2504
        %v2524 = vpack.c.bf16 %v2507, %v2506
        %v2525 = vpack.c.bf16 %v2509, %v2508
        %v2526 = vld [vmem:[#allocation7] sm:$0xf]
        %v2527 = vld [vmem:[#allocation7 + $0x4] sm:$0xf]
        %v2528 = vld [vmem:[#allocation7 + $0x8] sm:$0xf]
        %v2529 = vld [vmem:[#allocation7 + $0xc] sm:$0xf]
        %v2530 = vld [vmem:[#allocation7 + $0x10] sm:$0xf]
        %v2531 = vld [vmem:[#allocation7 + $0x14] sm:$0xf]
        %v2532 = vld [vmem:[#allocation7 + $0x18] sm:$0xf]
        %v2533 = vld [vmem:[#allocation7 + $0x1c] sm:$0xf]
        %v2534 = vld [vmem:[#allocation7 + $0x20] sm:$0xf]
        %v2535 = vld [vmem:[#allocation7 + $0x24] sm:$0xf]
        %v2536 = vld [vmem:[#allocation7 + $0x28] sm:$0xf]
        %v2537 = vld [vmem:[#allocation7 + $0x2c] sm:$0xf]
        %v2538 = vld [vmem:[#allocation7 + $0x30] sm:$0xf]
        %v2539 = vld [vmem:[#allocation7 + $0x34] sm:$0xf]
        %v2540 = vld [vmem:[#allocation7 + $0x38] sm:$0xf]
        %v2541 = vld [vmem:[#allocation7 + $0x3c] sm:$0xf]
        %v2558 = vunpack.c.l.b16 %v2526
        %v2559 = vunpack.c.l.b16 %v2527
        %v2560 = vunpack.c.l.b16 %v2528
        %v2561 = vunpack.c.l.b16 %v2529
        %v2562 = vunpack.c.l.b16 %v2530
        %v2563 = vunpack.c.l.b16 %v2531
        %v2564 = vunpack.c.l.b16 %v2532
        %v2565 = vunpack.c.l.b16 %v2533
        %v2566 = vunpack.c.l.b16 %v2534
        %v2567 = vunpack.c.l.b16 %v2535
        %v2568 = vunpack.c.l.b16 %v2536
        %v2569 = vunpack.c.l.b16 %v2537
        %v2570 = vunpack.c.l.b16 %v2538
        %v2571 = vunpack.c.l.b16 %v2539
        %v2572 = vunpack.c.l.b16 %v2540
        %v2573 = vunpack.c.l.b16 %v2541
        %v2574 = vpack.c.b16 %v2559, %v2558
        %v2575 = vpack.c.b16 %v2561, %v2560
        %v2576 = vpack.c.b16 %v2563, %v2562
        %v2577 = vpack.c.b16 %v2565, %v2564
        %v2578 = vpack.c.b16 %v2567, %v2566
        %v2579 = vpack.c.b16 %v2569, %v2568
        %v2580 = vpack.c.b16 %v2571, %v2570
        %v2581 = vpack.c.b16 %v2573, %v2572
        %2590 = vmatprep.subr.bf16.mxu0 0
        %2591 = vmatpush1.bf16.msra.mxu0 %v2574
        %2592 = vmatprep.subr.bf16.mxu0 0
        %2593 = vmatpush1.bf16.msra.mxu0 %v2575
        %2594 = vmatprep.subr.bf16.mxu0 0
        %2595 = vmatpush1.bf16.msra.mxu0 %v2576
        %2596 = vmatprep.subr.bf16.mxu0 0
        %2597 = vmatpush1.bf16.msra.mxu0 %v2577
        %2598 = vmatprep.subr.bf16.mxu0 0
        %2599 = vmatpush1.bf16.msra.mxu0 %v2578
        %2600 = vmatprep.subr.bf16.mxu0 0
        %2601 = vmatpush1.bf16.msra.mxu0 %v2579
        %2602 = vmatprep.subr.bf16.mxu0 0
        %2603 = vmatpush1.bf16.msra.mxu0 %v2580
        %2604 = vmatprep.subr.bf16.mxu0 0
        %2605 = vmatpush1.bf16.msra.mxu0 %v2581
        %2606 = vmatprep.subr.bf16.mxu0 0
        %2607 = vmatpush1.bf16.msra.mxu0 0
        %2608 = vmatprep.subr.bf16.mxu0 0
        %2609 = vmatpush1.bf16.msra.mxu0 0
        %2610 = vmatprep.subr.bf16.mxu0 0
        %2611 = vmatpush1.bf16.msra.mxu0 0
        %2612 = vmatprep.subr.bf16.mxu0 0
        %2613 = vmatpush1.bf16.msra.mxu0 0
        %2614 = vmatprep.subr.bf16.mxu0 0
        %2615 = vmatpush1.bf16.msra.mxu0 0
        %2616 = vmatprep.subr.bf16.mxu0 0
        %2617 = vmatpush1.bf16.msra.mxu0 0
        %2618 = vmatprep.subr.bf16.mxu0 0
        %2619 = vmatpush1.bf16.msra.mxu0 0
        %2620 = vmatprep.subr.bf16.mxu0 0
        %2621 = vmatpush1.bf16.msra.mxu0 0
        %2622 = vmatprep.mubr.bf16.mxu0 0
        %2623 = vmatmul.mubr.bf16.gmra.mrb[0].mxu0 %v2510
        %v2624 = vpop.f32.mrb[0].mxu0
        %v2625 = vadd.f32 0.0, %v2624
        %v2626 = vpop.f32.mrb[0].mxu0
        %v2627 = vpop.f32.mrb[0].mxu0
        %v2628 = vadd.f32 0.0, %v2627
        %v2629 = vpop.f32.mrb[0].mxu0
        %2630 = vmatprep.mubr.bf16.mxu0 0
        %2631 = vmatmul.mubr.bf16.gmra.mrb[0].mxu0 %v2511
        %v2632 = vpop.f32.mrb[0].mxu0
        %v2633 = vadd.f32 0.0, %v2632
        %v2634 = vpop.f32.mrb[0].mxu0
        %v2635 = vpop.f32.mrb[0].mxu0
        %v2636 = vadd.f32 0.0, %v2635
        %v2637 = vpop.f32.mrb[0].mxu0
        %2638 = vmatprep.mubr.bf16.mxu0 0
        %2639 = vmatmul.mubr.bf16.gmra.mrb[0].mxu0 %v2512
        %v2640 = vpop.f32.mrb[0].mxu0
        %v2641 = vadd.f32 0.0, %v2640
        %v2642 = vpop.f32.mrb[0].mxu0
        %v2643 = vpop.f32.mrb[0].mxu0
        %v2644 = vadd.f32 0.0, %v2643
        %v2645 = vpop.f32.mrb[0].mxu0
        %2646 = vmatprep.mubr.bf16.mxu0 0
        %2647 = vmatmul.mubr.bf16.gmra.mrb[0].mxu0 %v2513
        %v2648 = vpop.f32.mrb[0].mxu0
        %v2649 = vadd.f32 0.0, %v2648
        %v2650 = vpop.f32.mrb[0].mxu0
        %v2651 = vpop.f32.mrb[0].mxu0
        %v2652 = vadd.f32 0.0, %v2651
        %v2653 = vpop.f32.mrb[0].mxu0
        %2654 = vmatprep.mubr.bf16.mxu0 0
        %2655 = vmatmul.mubr.bf16.gmra.mrb[0].mxu0 %v2514
        %v2656 = vpop.f32.mrb[0].mxu0
        %v2657 = vadd.f32 0.0, %v2656
        %v2658 = vpop.f32.mrb[0].mxu0
        %v2659 = vpop.f32.mrb[0].mxu0
        %v2660 = vadd.f32 0.0, %v2659
        %v2661 = vpop.f32.mrb[0].mxu0
        %2662 = vmatprep.mubr.bf16.mxu0 0
        %2663 = vmatmul.mubr.bf16.gmra.mrb[0].mxu0 %v2515
        %v2664 = vpop.f32.mrb[0].mxu0
        %v2665 = vadd.f32 0.0, %v2664
        %v2666 = vpop.f32.mrb[0].mxu0
        %v2667 = vpop.f32.mrb[0].mxu0
        %v2668 = vadd.f32 0.0, %v2667
        %v2669 = vpop.f32.mrb[0].mxu0
        %2670 = vmatprep.mubr.bf16.mxu0 0
        %2671 = vmatmul.mubr.bf16.gmra.mrb[0].mxu0 %v2516
        %v2672 = vpop.f32.mrb[0].mxu0
        %v2673 = vadd.f32 0.0, %v2672
        %v2674 = vpop.f32.mrb[0].mxu0
        %v2675 = vpop.f32.mrb[0].mxu0
        %v2676 = vadd.f32 0.0, %v2675
        %v2677 = vpop.f32.mrb[0].mxu0
        %2678 = vmatprep.mubr.bf16.mxu0 0
        %2679 = vmatmul.mubr.bf16.gmra.mrb[0].mxu0 %v2517
        %v2680 = vpop.f32.mrb[0].mxu0
        %v2681 = vadd.f32 0.0, %v2680
        %v2682 = vpop.f32.mrb[0].mxu0
        %v2683 = vpop.f32.mrb[0].mxu0
        %v2684 = vadd.f32 0.0, %v2683
        %v2685 = vpop.f32.mrb[0].mxu0
        %2686 = vmatprep.mubr.bf16.mxu0 0
        %2687 = vmatmul.mubr.bf16.gmra.mrb[0].mxu0 %v2518
        %v2688 = vpop.f32.mrb[0].mxu0
        %v2689 = vadd.f32 0.0, %v2688
        %v2690 = vpop.f32.mrb[0].mxu0
        %v2691 = vpop.f32.mrb[0].mxu0
        %v2692 = vadd.f32 0.0, %v2691
        %v2693 = vpop.f32.mrb[0].mxu0
        %2694 = vmatprep.mubr.bf16.mxu0 0
        %2695 = vmatmul.mubr.bf16.gmra.mrb[0].mxu0 %v2519
        %v2696 = vpop.f32.mrb[0].mxu0
        %v2697 = vadd.f32 0.0, %v2696
        %v2698 = vpop.f32.mrb[0].mxu0
        %v2699 = vpop.f32.mrb[0].mxu0
        %v2700 = vadd.f32 0.0, %v2699
        %v2701 = vpop.f32.mrb[0].mxu0
        %2702 = vmatprep.mubr.bf16.mxu0 0
        %2703 = vmatmul.mubr.bf16.gmra.mrb[0].mxu0 %v2520
        %v2704 = vpop.f32.mrb[0].mxu0
        %v2705 = vadd.f32 0.0, %v2704
        %v2706 = vpop.f32.mrb[0].mxu0
        %v2707 = vpop.f32.mrb[0].mxu0
        %v2708 = vadd.f32 0.0, %v2707
        %v2709 = vpop.f32.mrb[0].mxu0
        %2710 = vmatprep.mubr.bf16.mxu0 0
        %2711 = vmatmul.mubr.bf16.gmra.mrb[0].mxu0 %v2521
        %v2712 = vpop.f32.mrb[0].mxu0
        %v2713 = vadd.f32 0.0, %v2712
        %v2714 = vpop.f32.mrb[0].mxu0
        %v2715 = vpop.f32.mrb[0].mxu0
        %v2716 = vadd.f32 0.0, %v2715
        %v2717 = vpop.f32.mrb[0].mxu0
        %2718 = vmatprep.mubr.bf16.mxu0 0
        %2719 = vmatmul.mubr.bf16.gmra.mrb[0].mxu0 %v2522
        %v2720 = vpop.f32.mrb[0].mxu0
        %v2721 = vadd.f32 0.0, %v2720
        %v2722 = vpop.f32.mrb[0].mxu0
        %v2723 = vpop.f32.mrb[0].mxu0
        %v2724 = vadd.f32 0.0, %v2723
        %v2725 = vpop.f32.mrb[0].mxu0
        %2726 = vmatprep.mubr.bf16.mxu0 0
        %2727 = vmatmul.mubr.bf16.gmra.mrb[0].mxu0 %v2523
        %v2728 = vpop.f32.mrb[0].mxu0
        %v2729 = vadd.f32 0.0, %v2728
        %v2730 = vpop.f32.mrb[0].mxu0
        %v2731 = vpop.f32.mrb[0].mxu0
        %v2732 = vadd.f32 0.0, %v2731
        %v2733 = vpop.f32.mrb[0].mxu0
        %2734 = vmatprep.mubr.bf16.mxu0 0
        %2735 = vmatmul.mubr.bf16.gmra.mrb[0].mxu0 %v2524
        %v2736 = vpop.f32.mrb[0].mxu0
        %v2737 = vadd.f32 0.0, %v2736
        %v2738 = vpop.f32.mrb[0].mxu0
        %v2739 = vpop.f32.mrb[0].mxu0
        %v2740 = vadd.f32 0.0, %v2739
        %v2741 = vpop.f32.mrb[0].mxu0
        %2742 = vmatprep.mubr.bf16.mxu0 0
        %2743 = vmatmul.mubr.bf16.gmra.mrb[0].mxu0 %v2525
        %v2744 = vpop.f32.mrb[0].mxu0
        %v2745 = vadd.f32 0.0, %v2744
        %v2746 = vpop.f32.mrb[0].mxu0
        %v2747 = vpop.f32.mrb[0].mxu0
        %v2748 = vadd.f32 0.0, %v2747
        %v2749 = vpop.f32.mrb[0].mxu0
        %2750 = vdwg.mxu0
        %v2751 = vld [vmem:[#allocation8] sm:$0x1]
        %v2753 = vlaneseq
        %v2754 = vshrl.u32 %v2753, 7
        %v2755 = vsub.s32 0, %v2754
        %v2756 = vrot.slane %v2751, %v2755
        %v2758 = vmul.f32 %v2625, %v2756
        %v2759 = vmul.f32 %v2628, %v2756
        %v2760 = vmul.f32 %v2633, %v2756
        %v2761 = vmul.f32 %v2636, %v2756
        %v2762 = vmul.f32 %v2641, %v2756
        %v2763 = vmul.f32 %v2644, %v2756
        %v2764 = vmul.f32 %v2649, %v2756
        %v2765 = vmul.f32 %v2652, %v2756
        %v2766 = vmul.f32 %v2657, %v2756
        %v2767 = vmul.f32 %v2660, %v2756
        %v2768 = vmul.f32 %v2665, %v2756
        %v2769 = vmul.f32 %v2668, %v2756
        %v2770 = vmul.f32 %v2673, %v2756
        %v2771 = vmul.f32 %v2676, %v2756
        %v2772 = vmul.f32 %v2681, %v2756
        %v2773 = vmul.f32 %v2684, %v2756
        %v2774 = vmul.f32 %v2689, %v2756
        %v2775 = vmul.f32 %v2692, %v2756
        %v2776 = vmul.f32 %v2697, %v2756
        %v2777 = vmul.f32 %v2700, %v2756
        %v2778 = vmul.f32 %v2705, %v2756
        %v2779 = vmul.f32 %v2708, %v2756
        %v2780 = vmul.f32 %v2713, %v2756
        %v2781 = vmul.f32 %v2716, %v2756
        %v2782 = vmul.f32 %v2721, %v2756
        %v2783 = vmul.f32 %v2724, %v2756
        %v2784 = vmul.f32 %v2729, %v2756
        %v2785 = vmul.f32 %v2732, %v2756
        %v2786 = vmul.f32 %v2737, %v2756
        %v2787 = vmul.f32 %v2740, %v2756
        %v2788 = vmul.f32 %v2745, %v2756
        %v2789 = vmul.f32 %v2748, %v2756
        %v2790 = vld [vmem:[#allocation10] sm:$0x1]
        %v2792 = vlaneseq
        %v2793 = vshrl.u32 %v2792, 7
        %v2794 = vsub.s32 0, %v2793
        %v2795 = vrot.slane %v2790, %v2794
        %v2797 = vadd.f32 %v2758, %v2795
        %v2798 = vadd.f32 %v2759, %v2795
        %v2799 = vadd.f32 %v2760, %v2795
        %v2800 = vadd.f32 %v2761, %v2795
        %v2801 = vadd.f32 %v2762, %v2795
        %v2802 = vadd.f32 %v2763, %v2795
        %v2803 = vadd.f32 %v2764, %v2795
        %v2804 = vadd.f32 %v2765, %v2795
        %v2805 = vadd.f32 %v2766, %v2795
        %v2806 = vadd.f32 %v2767, %v2795
        %v2807 = vadd.f32 %v2768, %v2795
        %v2808 = vadd.f32 %v2769, %v2795
        %v2809 = vadd.f32 %v2770, %v2795
        %v2810 = vadd.f32 %v2771, %v2795
        %v2811 = vadd.f32 %v2772, %v2795
        %v2812 = vadd.f32 %v2773, %v2795
        %v2813 = vadd.f32 %v2774, %v2795
        %v2814 = vadd.f32 %v2775, %v2795
        %v2815 = vadd.f32 %v2776, %v2795
        %v2816 = vadd.f32 %v2777, %v2795
        %v2817 = vadd.f32 %v2778, %v2795
        %v2818 = vadd.f32 %v2779, %v2795
        %v2819 = vadd.f32 %v2780, %v2795
        %v2820 = vadd.f32 %v2781, %v2795
        %v2821 = vadd.f32 %v2782, %v2795
        %v2822 = vadd.f32 %v2783, %v2795
        %v2823 = vadd.f32 %v2784, %v2795
        %v2824 = vadd.f32 %v2785, %v2795
        %v2825 = vadd.f32 %v2786, %v2795
        %v2826 = vadd.f32 %v2787, %v2795
        %v2827 = vadd.f32 %v2788, %v2795
        %v2828 = vadd.f32 %v2789, %v2795
        %v2829 = vmax.f32 %v2797, 0.0
        %v2830 = vmax.f32 %v2798, 0.0
        %v2831 = vmax.f32 %v2799, 0.0
        %v2832 = vmax.f32 %v2800, 0.0
        %v2833 = vmax.f32 %v2801, 0.0
        %v2834 = vmax.f32 %v2802, 0.0
        %v2835 = vmax.f32 %v2803, 0.0
        %v2836 = vmax.f32 %v2804, 0.0
        %v2837 = vmax.f32 %v2805, 0.0
        %v2838 = vmax.f32 %v2806, 0.0
        %v2839 = vmax.f32 %v2807, 0.0
        %v2840 = vmax.f32 %v2808, 0.0
        %v2841 = vmax.f32 %v2809, 0.0
        %v2842 = vmax.f32 %v2810, 0.0
        %v2843 = vmax.f32 %v2811, 0.0
        %v2844 = vmax.f32 %v2812, 0.0
        %v2845 = vmax.f32 %v2813, 0.0
        %v2846 = vmax.f32 %v2814, 0.0
        %v2847 = vmax.f32 %v2815, 0.0
        %v2848 = vmax.f32 %v2816, 0.0
        %v2849 = vmax.f32 %v2817, 0.0
        %v2850 = vmax.f32 %v2818, 0.0
        %v2851 = vmax.f32 %v2819, 0.0
        %v2852 = vmax.f32 %v2820, 0.0
        %v2853 = vmax.f32 %v2821, 0.0
        %v2854 = vmax.f32 %v2822, 0.0
        %v2855 = vmax.f32 %v2823, 0.0
        %v2856 = vmax.f32 %v2824, 0.0
        %v2857 = vmax.f32 %v2825, 0.0
        %v2858 = vmax.f32 %v2826, 0.0
        %v2859 = vmax.f32 %v2827, 0.0
        %v2860 = vmax.f32 %v2828, 0.0
        %v2893 = vrot.slane %v2829, 7
        %v2894 = vrot.slane %v2830, 7
        %v2895 = vsel %vm678, %v2893, %v2894
        %v2896 = vrot.slane %v2831, 7
        %v2897 = vrot.slane %v2832, 7
        %v2898 = vsel %vm678, %v2896, %v2897
        %v2899 = vrot.slane %v2833, 7
        %v2900 = vrot.slane %v2834, 7
        %v2901 = vsel %vm678, %v2899, %v2900
        %v2902 = vrot.slane %v2835, 7
        %v2903 = vrot.slane %v2836, 7
        %v2904 = vsel %vm678, %v2902, %v2903
        %v2905 = vrot.slane %v2837, 7
        %v2906 = vrot.slane %v2838, 7
        %v2907 = vsel %vm678, %v2905, %v2906
        %v2908 = vrot.slane %v2839, 7
        %v2909 = vrot.slane %v2840, 7
        %v2910 = vsel %vm678, %v2908, %v2909
        %v2911 = vrot.slane %v2841, 7
        %v2912 = vrot.slane %v2842, 7
        %v2913 = vsel %vm678, %v2911, %v2912
        %v2914 = vrot.slane %v2843, 7
        %v2915 = vrot.slane %v2844, 7
        %v2916 = vsel %vm678, %v2914, %v2915
        %v2917 = vrot.slane %v2845, 7
        %v2918 = vrot.slane %v2846, 7
        %v2919 = vsel %vm678, %v2917, %v2918
        %v2920 = vrot.slane %v2847, 7
        %v2921 = vrot.slane %v2848, 7
        %v2922 = vsel %vm678, %v2920, %v2921
        %v2923 = vrot.slane %v2849, 7
        %v2924 = vrot.slane %v2850, 7
        %v2925 = vsel %vm678, %v2923, %v2924
        %v2926 = vrot.slane %v2851, 7
        %v2927 = vrot.slane %v2852, 7
        %v2928 = vsel %vm678, %v2926, %v2927
        %v2929 = vrot.slane %v2853, 7
        %v2930 = vrot.slane %v2854, 7
        %v2931 = vsel %vm678, %v2929, %v2930
        %v2932 = vrot.slane %v2855, 7
        %v2933 = vrot.slane %v2856, 7
        %v2934 = vsel %vm678, %v2932, %v2933
        %v2935 = vrot.slane %v2857, 7
        %v2936 = vrot.slane %v2858, 7
        %v2937 = vsel %vm678, %v2935, %v2936
        %v2938 = vrot.slane %v2859, 7
        %v2939 = vrot.slane %v2860, 7
        %v2940 = vsel %vm678, %v2938, %v2939
        %v2989 = vsel %vm678, 0.0, %v2893
        %v2990 = vsel %vm678, 0.0, %v2896
        %v2991 = vsel %vm678, 0.0, %v2899
        %v2992 = vsel %vm678, 0.0, %v2902
        %v2993 = vsel %vm678, 0.0, %v2905
        %v2994 = vsel %vm678, 0.0, %v2908
        %v2995 = vsel %vm678, 0.0, %v2911
        %v2996 = vsel %vm678, 0.0, %v2914
        %v2997 = vsel %vm678, 0.0, %v2917
        %v2998 = vsel %vm678, 0.0, %v2920
        %v2999 = vsel %vm678, 0.0, %v2923
        %v3000 = vsel %vm678, 0.0, %v2926
        %v3001 = vsel %vm678, 0.0, %v2929
        %v3002 = vsel %vm678, 0.0, %v2932
        %v3003 = vsel %vm678, 0.0, %v2935
        %v3004 = vsel %vm678, 0.0, %v2938
        %v3005 = vsel %vm678, %v2894, 0.0
        %v3006 = vsel %vm678, %v2897, 0.0
        %v3007 = vsel %vm678, %v2900, 0.0
        %v3008 = vsel %vm678, %v2903, 0.0
        %v3009 = vsel %vm678, %v2906, 0.0
        %v3010 = vsel %vm678, %v2909, 0.0
        %v3011 = vsel %vm678, %v2912, 0.0
        %v3012 = vsel %vm678, %v2915, 0.0
        %v3013 = vsel %vm678, %v2918, 0.0
        %v3014 = vsel %vm678, %v2921, 0.0
        %v3015 = vsel %vm678, %v2924, 0.0
        %v3016 = vsel %vm678, %v2927, 0.0
        %v3017 = vsel %vm678, %v2930, 0.0
        %v3018 = vsel %vm678, %v2933, 0.0
        %v3019 = vsel %vm678, %v2936, 0.0
        %v3020 = vsel %vm678, %v2939, 0.0
        %v3021 = vld [vmem:[#allocation11] sm:$0x1]
        %v3022 = vld [vmem:[#allocation11 + $0x1] sm:$0x1]
        %v3023 = vld [vmem:[#allocation11 + $0x2] sm:$0x1]
        %v3024 = vld [vmem:[#allocation11 + $0x3] sm:$0x1]
        %v3025 = vld [vmem:[#allocation11 + $0x4] sm:$0x1]
        %v3026 = vld [vmem:[#allocation11 + $0x5] sm:$0x1]
        %v3027 = vld [vmem:[#allocation11 + $0x6] sm:$0x1]
        %v3028 = vld [vmem:[#allocation11 + $0x7] sm:$0x1]
        %v3029 = vld [vmem:[#allocation11 + $0x8] sm:$0x1]
        %v3031 = vlaneseq
        %v3032 = vshrl.u32 %v3031, 7
        %v3033 = vsub.s32 0, %v3032
        %v3034 = vrot.slane %v3021, %v3033
        %v3036 = vmul.f32 %v779, %v3034
        %v3037 = vmul.f32 %v680, %v3034
        %v3038 = vmul.f32 %v2989, %v3034
        %v3039 = vmul.f32 %v2895, %v3034
        %v3040 = vmul.f32 %v2990, %v3034
        %v3041 = vmul.f32 %v2898, %v3034
        %v3042 = vmul.f32 %v2991, %v3034
        %v3043 = vmul.f32 %v2901, %v3034
        %v3044 = vmul.f32 %v2992, %v3034
        %v3045 = vmul.f32 %v2904, %v3034
        %v3046 = vmul.f32 %v2993, %v3034
        %v3047 = vmul.f32 %v2907, %v3034
        %v3048 = vmul.f32 %v2994, %v3034
        %v3049 = vmul.f32 %v2910, %v3034
        %v3050 = vmul.f32 %v2995, %v3034
        %v3051 = vmul.f32 %v2913, %v3034
        %v3052 = vmul.f32 %v2996, %v3034
        %v3053 = vmul.f32 %v2916, %v3034
        %v3054 = vmul.f32 %v2997, %v3034
        %v3055 = vmul.f32 %v2919, %v3034
        %v3056 = vmul.f32 %v2998, %v3034
        %v3057 = vmul.f32 %v2922, %v3034
        %v3058 = vmul.f32 %v2999, %v3034
        %v3059 = vmul.f32 %v2925, %v3034
        %v3060 = vmul.f32 %v3000, %v3034
        %v3061 = vmul.f32 %v2928, %v3034
        %v3062 = vmul.f32 %v3001, %v3034
        %v3063 = vmul.f32 %v2931, %v3034
        %v3064 = vmul.f32 %v3002, %v3034
        %v3065 = vmul.f32 %v2934, %v3034
        %v3066 = vmul.f32 %v3003, %v3034
        %v3067 = vmul.f32 %v2937, %v3034
        %v3068 = vadd.f32 %v3036, 0.0
        %v3069 = vadd.f32 %v3037, 0.0
        %v3070 = vadd.f32 %v3038, 0.0
        %v3071 = vadd.f32 %v3039, 0.0
        %v3072 = vadd.f32 %v3040, 0.0
        %v3073 = vadd.f32 %v3041, 0.0
        %v3074 = vadd.f32 %v3042, 0.0
        %v3075 = vadd.f32 %v3043, 0.0
        %v3076 = vadd.f32 %v3044, 0.0
        %v3077 = vadd.f32 %v3045, 0.0
        %v3078 = vadd.f32 %v3046, 0.0
        %v3079 = vadd.f32 %v3047, 0.0
        %v3080 = vadd.f32 %v3048, 0.0
        %v3081 = vadd.f32 %v3049, 0.0
        %v3082 = vadd.f32 %v3050, 0.0
        %v3083 = vadd.f32 %v3051, 0.0
        %v3084 = vadd.f32 %v3052, 0.0
        %v3085 = vadd.f32 %v3053, 0.0
        %v3086 = vadd.f32 %v3054, 0.0
        %v3087 = vadd.f32 %v3055, 0.0
        %v3088 = vadd.f32 %v3056, 0.0
        %v3089 = vadd.f32 %v3057, 0.0
        %v3090 = vadd.f32 %v3058, 0.0
        %v3091 = vadd.f32 %v3059, 0.0
        %v3092 = vadd.f32 %v3060, 0.0
        %v3093 = vadd.f32 %v3061, 0.0
        %v3094 = vadd.f32 %v3062, 0.0
        %v3095 = vadd.f32 %v3063, 0.0
        %v3096 = vadd.f32 %v3064, 0.0
        %v3097 = vadd.f32 %v3065, 0.0
        %v3098 = vadd.f32 %v3066, 0.0
        %v3099 = vadd.f32 %v3067, 0.0
        %v3101 = vlaneseq
        %v3102 = vshrl.u32 %v3101, 7
        %v3103 = vsub.s32 0, %v3102
        %v3104 = vrot.slane %v3024, %v3103
        %v3106 = vmul.f32 %v2989, %v3104
        %v3107 = vmul.f32 %v2895, %v3104
        %v3108 = vmul.f32 %v2990, %v3104
        %v3109 = vmul.f32 %v2898, %v3104
        %v3110 = vmul.f32 %v2991, %v3104
        %v3111 = vmul.f32 %v2901, %v3104
        %v3112 = vmul.f32 %v2992, %v3104
        %v3113 = vmul.f32 %v2904, %v3104
        %v3114 = vmul.f32 %v2993, %v3104
        %v3115 = vmul.f32 %v2907, %v3104
        %v3116 = vmul.f32 %v2994, %v3104
        %v3117 = vmul.f32 %v2910, %v3104
        %v3118 = vmul.f32 %v2995, %v3104
        %v3119 = vmul.f32 %v2913, %v3104
        %v3120 = vmul.f32 %v2996, %v3104
        %v3121 = vmul.f32 %v2916, %v3104
        %v3122 = vmul.f32 %v2997, %v3104
        %v3123 = vmul.f32 %v2919, %v3104
        %v3124 = vmul.f32 %v2998, %v3104
        %v3125 = vmul.f32 %v2922, %v3104
        %v3126 = vmul.f32 %v2999, %v3104
        %v3127 = vmul.f32 %v2925, %v3104
        %v3128 = vmul.f32 %v3000, %v3104
        %v3129 = vmul.f32 %v2928, %v3104
        %v3130 = vmul.f32 %v3001, %v3104
        %v3131 = vmul.f32 %v2931, %v3104
        %v3132 = vmul.f32 %v3002, %v3104
        %v3133 = vmul.f32 %v2934, %v3104
        %v3134 = vmul.f32 %v3003, %v3104
        %v3135 = vmul.f32 %v2937, %v3104
        %v3136 = vmul.f32 %v3004, %v3104
        %v3137 = vmul.f32 %v2940, %v3104
        %v3138 = vadd.f32 %v3068, %v3106
        %v3139 = vadd.f32 %v3069, %v3107
        %v3140 = vadd.f32 %v3070, %v3108
        %v3141 = vadd.f32 %v3071, %v3109
        %v3142 = vadd.f32 %v3072, %v3110
        %v3143 = vadd.f32 %v3073, %v3111
        %v3144 = vadd.f32 %v3074, %v3112
        %v3145 = vadd.f32 %v3075, %v3113
        %v3146 = vadd.f32 %v3076, %v3114
        %v3147 = vadd.f32 %v3077, %v3115
        %v3148 = vadd.f32 %v3078, %v3116
        %v3149 = vadd.f32 %v3079, %v3117
        %v3150 = vadd.f32 %v3080, %v3118
        %v3151 = vadd.f32 %v3081, %v3119
        %v3152 = vadd.f32 %v3082, %v3120
        %v3153 = vadd.f32 %v3083, %v3121
        %v3154 = vadd.f32 %v3084, %v3122
        %v3155 = vadd.f32 %v3085, %v3123
        %v3156 = vadd.f32 %v3086, %v3124
        %v3157 = vadd.f32 %v3087, %v3125
        %v3158 = vadd.f32 %v3088, %v3126
        %v3159 = vadd.f32 %v3089, %v3127
        %v3160 = vadd.f32 %v3090, %v3128
        %v3161 = vadd.f32 %v3091, %v3129
        %v3162 = vadd.f32 %v3092, %v3130
        %v3163 = vadd.f32 %v3093, %v3131
        %v3164 = vadd.f32 %v3094, %v3132
        %v3165 = vadd.f32 %v3095, %v3133
        %v3166 = vadd.f32 %v3096, %v3134
        %v3167 = vadd.f32 %v3097, %v3135
        %v3168 = vadd.f32 %v3098, %v3136
        %v3169 = vadd.f32 %v3099, %v3137
        %v3171 = vlaneseq
        %v3172 = vshrl.u32 %v3171, 7
        %v3173 = vsub.s32 0, %v3172
        %v3174 = vrot.slane %v3027, %v3173
        %v3176 = vmul.f32 %v2990, %v3174
        %v3177 = vmul.f32 %v2898, %v3174
        %v3178 = vmul.f32 %v2991, %v3174
        %v3179 = vmul.f32 %v2901, %v3174
        %v3180 = vmul.f32 %v2992, %v3174
        %v3181 = vmul.f32 %v2904, %v3174
        %v3182 = vmul.f32 %v2993, %v3174
        %v3183 = vmul.f32 %v2907, %v3174
        %v3184 = vmul.f32 %v2994, %v3174
        %v3185 = vmul.f32 %v2910, %v3174
        %v3186 = vmul.f32 %v2995, %v3174
        %v3187 = vmul.f32 %v2913, %v3174
        %v3188 = vmul.f32 %v2996, %v3174
        %v3189 = vmul.f32 %v2916, %v3174
        %v3190 = vmul.f32 %v2997, %v3174
        %v3191 = vmul.f32 %v2919, %v3174
        %v3192 = vmul.f32 %v2998, %v3174
        %v3193 = vmul.f32 %v2922, %v3174
        %v3194 = vmul.f32 %v2999, %v3174
        %v3195 = vmul.f32 %v2925, %v3174
        %v3196 = vmul.f32 %v3000, %v3174
        %v3197 = vmul.f32 %v2928, %v3174
        %v3198 = vmul.f32 %v3001, %v3174
        %v3199 = vmul.f32 %v2931, %v3174
        %v3200 = vmul.f32 %v3002, %v3174
        %v3201 = vmul.f32 %v2934, %v3174
        %v3202 = vmul.f32 %v3003, %v3174
        %v3203 = vmul.f32 %v2937, %v3174
        %v3204 = vmul.f32 %v3004, %v3174
        %v3205 = vmul.f32 %v2940, %v3174
        %v3206 = vmul.f32 %v779, %v3174
        %v3207 = vmul.f32 %v680, %v3174
        %v3208 = vadd.f32 %v3138, %v3176
        %v3209 = vadd.f32 %v3139, %v3177
        %v3210 = vadd.f32 %v3140, %v3178
        %v3211 = vadd.f32 %v3141, %v3179
        %v3212 = vadd.f32 %v3142, %v3180
        %v3213 = vadd.f32 %v3143, %v3181
        %v3214 = vadd.f32 %v3144, %v3182
        %v3215 = vadd.f32 %v3145, %v3183
        %v3216 = vadd.f32 %v3146, %v3184
        %v3217 = vadd.f32 %v3147, %v3185
        %v3218 = vadd.f32 %v3148, %v3186
        %v3219 = vadd.f32 %v3149, %v3187
        %v3220 = vadd.f32 %v3150, %v3188
        %v3221 = vadd.f32 %v3151, %v3189
        %v3222 = vadd.f32 %v3152, %v3190
        %v3223 = vadd.f32 %v3153, %v3191
        %v3224 = vadd.f32 %v3154, %v3192
        %v3225 = vadd.f32 %v3155, %v3193
        %v3226 = vadd.f32 %v3156, %v3194
        %v3227 = vadd.f32 %v3157, %v3195
        %v3228 = vadd.f32 %v3158, %v3196
        %v3229 = vadd.f32 %v3159, %v3197
        %v3230 = vadd.f32 %v3160, %v3198
        %v3231 = vadd.f32 %v3161, %v3199
        %v3232 = vadd.f32 %v3162, %v3200
        %v3233 = vadd.f32 %v3163, %v3201
        %v3234 = vadd.f32 %v3164, %v3202
        %v3235 = vadd.f32 %v3165, %v3203
        %v3236 = vadd.f32 %v3166, %v3204
        %v3237 = vadd.f32 %v3167, %v3205
        %v3238 = vadd.f32 %v3168, %v3206
        %v3239 = vadd.f32 %v3169, %v3207
        %v3241 = vlaneseq
        %v3242 = vshrl.u32 %v3241, 7
        %v3243 = vsub.s32 0, %v3242
        %v3244 = vrot.slane %v3022, %v3243
        %v3246 = vmul.f32 %v779, %v3244
        %v3247 = vmul.f32 %v680, %v3244
        %v3248 = vmul.f32 %v796, %v3244
        %v3249 = vmul.f32 %v2989, %v3244
        %v3250 = vmul.f32 %v2895, %v3244
        %v3251 = vmul.f32 %v3005, %v3244
        %v3252 = vmul.f32 %v2990, %v3244
        %v3253 = vmul.f32 %v2898, %v3244
        %v3254 = vmul.f32 %v3006, %v3244
        %v3255 = vmul.f32 %v2991, %v3244
        %v3256 = vmul.f32 %v2901, %v3244
        %v3257 = vmul.f32 %v3007, %v3244
        %v3258 = vmul.f32 %v2992, %v3244
        %v3259 = vmul.f32 %v2904, %v3244
        %v3260 = vmul.f32 %v3008, %v3244
        %v3261 = vmul.f32 %v2993, %v3244
        %v3262 = vmul.f32 %v2907, %v3244
        %v3263 = vmul.f32 %v3009, %v3244
        %v3264 = vmul.f32 %v2994, %v3244
        %v3265 = vmul.f32 %v2910, %v3244
        %v3266 = vmul.f32 %v3010, %v3244
        %v3267 = vmul.f32 %v2995, %v3244
        %v3268 = vmul.f32 %v2913, %v3244
        %v3269 = vmul.f32 %v3011, %v3244
        %v3270 = vmul.f32 %v2996, %v3244
        %v3271 = vmul.f32 %v2916, %v3244
        %v3272 = vmul.f32 %v3012, %v3244
        %v3273 = vmul.f32 %v2997, %v3244
        %v3274 = vmul.f32 %v2919, %v3244
        %v3275 = vmul.f32 %v3013, %v3244
        %v3276 = vmul.f32 %v2998, %v3244
        %v3277 = vmul.f32 %v2922, %v3244
        %v3278 = vmul.f32 %v3014, %v3244
        %v3279 = vmul.f32 %v2999, %v3244
        %v3280 = vmul.f32 %v2925, %v3244
        %v3281 = vmul.f32 %v3015, %v3244
        %v3282 = vmul.f32 %v3000, %v3244
        %v3283 = vmul.f32 %v2928, %v3244
        %v3284 = vmul.f32 %v3016, %v3244
        %v3285 = vmul.f32 %v3001, %v3244
        %v3286 = vmul.f32 %v2931, %v3244
        %v3287 = vmul.f32 %v3017, %v3244
        %v3288 = vmul.f32 %v3002, %v3244
        %v3289 = vmul.f32 %v2934, %v3244
        %v3290 = vmul.f32 %v3018, %v3244
        %v3291 = vmul.f32 %v3003, %v3244
        %v3292 = vmul.f32 %v2937, %v3244
        %v3293 = vmul.f32 %v3019, %v3244
        %v3342 = vrot.slane %v3246, 1
        %v3343 = vrot.slane %v3247, 1
        %v3344 = vsel %vm1134, %v3342, %v3343
        %v3345 = vrot.slane %v3248, 1
        %v3346 = vsel %vm1134, %v3343, %v3345
        %v3347 = vrot.slane %v3249, 1
        %v3348 = vrot.slane %v3250, 1
        %v3349 = vsel %vm1134, %v3347, %v3348
        %v3350 = vrot.slane %v3251, 1
        %v3351 = vsel %vm1134, %v3348, %v3350
        %v3352 = vrot.slane %v3252, 1
        %v3353 = vrot.slane %v3253, 1
        %v3354 = vsel %vm1134, %v3352, %v3353
        %v3355 = vrot.slane %v3254, 1
        %v3356 = vsel %vm1134, %v3353, %v3355
        %v3357 = vrot.slane %v3255, 1
        %v3358 = vrot.slane %v3256, 1
        %v3359 = vsel %vm1134, %v3357, %v3358
        %v3360 = vrot.slane %v3257, 1
        %v3361 = vsel %vm1134, %v3358, %v3360
        %v3362 = vrot.slane %v3258, 1
        %v3363 = vrot.slane %v3259, 1
        %v3364 = vsel %vm1134, %v3362, %v3363
        %v3365 = vrot.slane %v3260, 1
        %v3366 = vsel %vm1134, %v3363, %v3365
        %v3367 = vrot.slane %v3261, 1
        %v3368 = vrot.slane %v3262, 1
        %v3369 = vsel %vm1134, %v3367, %v3368
        %v3370 = vrot.slane %v3263, 1
        %v3371 = vsel %vm1134, %v3368, %v3370
        %v3372 = vrot.slane %v3264, 1
        %v3373 = vrot.slane %v3265, 1
        %v3374 = vsel %vm1134, %v3372, %v3373
        %v3375 = vrot.slane %v3266, 1
        %v3376 = vsel %vm1134, %v3373, %v3375
        %v3377 = vrot.slane %v3267, 1
        %v3378 = vrot.slane %v3268, 1
        %v3379 = vsel %vm1134, %v3377, %v3378
        %v3380 = vrot.slane %v3269, 1
        %v3381 = vsel %vm1134, %v3378, %v3380
        %v3382 = vrot.slane %v3270, 1
        %v3383 = vrot.slane %v3271, 1
        %v3384 = vsel %vm1134, %v3382, %v3383
        %v3385 = vrot.slane %v3272, 1
        %v3386 = vsel %vm1134, %v3383, %v3385
        %v3387 = vrot.slane %v3273, 1
        %v3388 = vrot.slane %v3274, 1
        %v3389 = vsel %vm1134, %v3387, %v3388
        %v3390 = vrot.slane %v3275, 1
        %v3391 = vsel %vm1134, %v3388, %v3390
        %v3392 = vrot.slane %v3276, 1
        %v3393 = vrot.slane %v3277, 1
        %v3394 = vsel %vm1134, %v3392, %v3393
        %v3395 = vrot.slane %v3278, 1
        %v3396 = vsel %vm1134, %v3393, %v3395
        %v3397 = vrot.slane %v3279, 1
        %v3398 = vrot.slane %v3280, 1
        %v3399 = vsel %vm1134, %v3397, %v3398
        %v3400 = vrot.slane %v3281, 1
        %v3401 = vsel %vm1134, %v3398, %v3400
        %v3402 = vrot.slane %v3282, 1
        %v3403 = vrot.slane %v3283, 1
        %v3404 = vsel %vm1134, %v3402, %v3403
        %v3405 = vrot.slane %v3284, 1
        %v3406 = vsel %vm1134, %v3403, %v3405
        %v3407 = vrot.slane %v3285, 1
        %v3408 = vrot.slane %v3286, 1
        %v3409 = vsel %vm1134, %v3407, %v3408
        %v3410 = vrot.slane %v3287, 1
        %v3411 = vsel %vm1134, %v3408, %v3410
        %v3412 = vrot.slane %v3288, 1
        %v3413 = vrot.slane %v3289, 1
        %v3414 = vsel %vm1134, %v3412, %v3413
        %v3415 = vrot.slane %v3290, 1
        %v3416 = vsel %vm1134, %v3413, %v3415
        %v3417 = vrot.slane %v3291, 1
        %v3418 = vrot.slane %v3292, 1
        %v3419 = vsel %vm1134, %v3417, %v3418
        %v3420 = vrot.slane %v3293, 1
        %v3421 = vsel %vm1134, %v3418, %v3420
        %v3454 = vadd.f32 %v3208, %v3344
        %v3455 = vadd.f32 %v3209, %v3346
        %v3456 = vadd.f32 %v3210, %v3349
        %v3457 = vadd.f32 %v3211, %v3351
        %v3458 = vadd.f32 %v3212, %v3354
        %v3459 = vadd.f32 %v3213, %v3356
        %v3460 = vadd.f32 %v3214, %v3359
        %v3461 = vadd.f32 %v3215, %v3361
        %v3462 = vadd.f32 %v3216, %v3364
        %v3463 = vadd.f32 %v3217, %v3366
        %v3464 = vadd.f32 %v3218, %v3369
        %v3465 = vadd.f32 %v3219, %v3371
        %v3466 = vadd.f32 %v3220, %v3374
        %v3467 = vadd.f32 %v3221, %v3376
        %v3468 = vadd.f32 %v3222, %v3379
        %v3469 = vadd.f32 %v3223, %v3381
        %v3470 = vadd.f32 %v3224, %v3384
        %v3471 = vadd.f32 %v3225, %v3386
        %v3472 = vadd.f32 %v3226, %v3389
        %v3473 = vadd.f32 %v3227, %v3391
        %v3474 = vadd.f32 %v3228, %v3394
        %v3475 = vadd.f32 %v3229, %v3396
        %v3476 = vadd.f32 %v3230, %v3399
        %v3477 = vadd.f32 %v3231, %v3401
        %v3478 = vadd.f32 %v3232, %v3404
        %v3479 = vadd.f32 %v3233, %v3406
        %v3480 = vadd.f32 %v3234, %v3409
        %v3481 = vadd.f32 %v3235, %v3411
        %v3482 = vadd.f32 %v3236, %v3414
        %v3483 = vadd.f32 %v3237, %v3416
        %v3484 = vadd.f32 %v3238, %v3419
        %v3485 = vadd.f32 %v3239, %v3421
        %v3487 = vlaneseq
        %v3488 = vshrl.u32 %v3487, 7
        %v3489 = vsub.s32 0, %v3488
        %v3490 = vrot.slane %v3025, %v3489
        %v3492 = vmul.f32 %v2989, %v3490
        %v3493 = vmul.f32 %v2895, %v3490
        %v3494 = vmul.f32 %v3005, %v3490
        %v3495 = vmul.f32 %v2990, %v3490
        %v3496 = vmul.f32 %v2898, %v3490
        %v3497 = vmul.f32 %v3006, %v3490
        %v3498 = vmul.f32 %v2991, %v3490
        %v3499 = vmul.f32 %v2901, %v3490
        %v3500 = vmul.f32 %v3007, %v3490
        %v3501 = vmul.f32 %v2992, %v3490
        %v3502 = vmul.f32 %v2904, %v3490
        %v3503 = vmul.f32 %v3008, %v3490
        %v3504 = vmul.f32 %v2993, %v3490
        %v3505 = vmul.f32 %v2907, %v3490
        %v3506 = vmul.f32 %v3009, %v3490
        %v3507 = vmul.f32 %v2994, %v3490
        %v3508 = vmul.f32 %v2910, %v3490
        %v3509 = vmul.f32 %v3010, %v3490
        %v3510 = vmul.f32 %v2995, %v3490
        %v3511 = vmul.f32 %v2913, %v3490
        %v3512 = vmul.f32 %v3011, %v3490
        %v3513 = vmul.f32 %v2996, %v3490
        %v3514 = vmul.f32 %v2916, %v3490
        %v3515 = vmul.f32 %v3012, %v3490
        %v3516 = vmul.f32 %v2997, %v3490
        %v3517 = vmul.f32 %v2919, %v3490
        %v3518 = vmul.f32 %v3013, %v3490
        %v3519 = vmul.f32 %v2998, %v3490
        %v3520 = vmul.f32 %v2922, %v3490
        %v3521 = vmul.f32 %v3014, %v3490
        %v3522 = vmul.f32 %v2999, %v3490
        %v3523 = vmul.f32 %v2925, %v3490
        %v3524 = vmul.f32 %v3015, %v3490
        %v3525 = vmul.f32 %v3000, %v3490
        %v3526 = vmul.f32 %v2928, %v3490
        %v3527 = vmul.f32 %v3016, %v3490
        %v3528 = vmul.f32 %v3001, %v3490
        %v3529 = vmul.f32 %v2931, %v3490
        %v3530 = vmul.f32 %v3017, %v3490
        %v3531 = vmul.f32 %v3002, %v3490
        %v3532 = vmul.f32 %v2934, %v3490
        %v3533 = vmul.f32 %v3018, %v3490
        %v3534 = vmul.f32 %v3003, %v3490
        %v3535 = vmul.f32 %v2937, %v3490
        %v3536 = vmul.f32 %v3019, %v3490
        %v3537 = vmul.f32 %v3004, %v3490
        %v3538 = vmul.f32 %v2940, %v3490
        %v3539 = vmul.f32 %v3020, %v3490
        %v3588 = vrot.slane %v3492, 1
        %v3589 = vrot.slane %v3493, 1
        %v3590 = vsel %vm1134, %v3588, %v3589
        %v3591 = vrot.slane %v3494, 1
        %v3592 = vsel %vm1134, %v3589, %v3591
        %v3593 = vrot.slane %v3495, 1
        %v3594 = vrot.slane %v3496, 1
        %v3595 = vsel %vm1134, %v3593, %v3594
        %v3596 = vrot.slane %v3497, 1
        %v3597 = vsel %vm1134, %v3594, %v3596
        %v3598 = vrot.slane %v3498, 1
        %v3599 = vrot.slane %v3499, 1
        %v3600 = vsel %vm1134, %v3598, %v3599
        %v3601 = vrot.slane %v3500, 1
        %v3602 = vsel %vm1134, %v3599, %v3601
        %v3603 = vrot.slane %v3501, 1
        %v3604 = vrot.slane %v3502, 1
        %v3605 = vsel %vm1134, %v3603, %v3604
        %v3606 = vrot.slane %v3503, 1
        %v3607 = vsel %vm1134, %v3604, %v3606
        %v3608 = vrot.slane %v3504, 1
        %v3609 = vrot.slane %v3505, 1
        %v3610 = vsel %vm1134, %v3608, %v3609
        %v3611 = vrot.slane %v3506, 1
        %v3612 = vsel %vm1134, %v3609, %v3611
        %v3613 = vrot.slane %v3507, 1
        %v3614 = vrot.slane %v3508, 1
        %v3615 = vsel %vm1134, %v3613, %v3614
        %v3616 = vrot.slane %v3509, 1
        %v3617 = vsel %vm1134, %v3614, %v3616
        %v3618 = vrot.slane %v3510, 1
        %v3619 = vrot.slane %v3511, 1
        %v3620 = vsel %vm1134, %v3618, %v3619
        %v3621 = vrot.slane %v3512, 1
        %v3622 = vsel %vm1134, %v3619, %v3621
        %v3623 = vrot.slane %v3513, 1
        %v3624 = vrot.slane %v3514, 1
        %v3625 = vsel %vm1134, %v3623, %v3624
        %v3626 = vrot.slane %v3515, 1
        %v3627 = vsel %vm1134, %v3624, %v3626
        %v3628 = vrot.slane %v3516, 1
        %v3629 = vrot.slane %v3517, 1
        %v3630 = vsel %vm1134, %v3628, %v3629
        %v3631 = vrot.slane %v3518, 1
        %v3632 = vsel %vm1134, %v3629, %v3631
        %v3633 = vrot.slane %v3519, 1
        %v3634 = vrot.slane %v3520, 1
        %v3635 = vsel %vm1134, %v3633, %v3634
        %v3636 = vrot.slane %v3521, 1
        %v3637 = vsel %vm1134, %v3634, %v3636
        %v3638 = vrot.slane %v3522, 1
        %v3639 = vrot.slane %v3523, 1
        %v3640 = vsel %vm1134, %v3638, %v3639
        %v3641 = vrot.slane %v3524, 1
        %v3642 = vsel %vm1134, %v3639, %v3641
        %v3643 = vrot.slane %v3525, 1
        %v3644 = vrot.slane %v3526, 1
        %v3645 = vsel %vm1134, %v3643, %v3644
        %v3646 = vrot.slane %v3527, 1
        %v3647 = vsel %vm1134, %v3644, %v3646
        %v3648 = vrot.slane %v3528, 1
        %v3649 = vrot.slane %v3529, 1
        %v3650 = vsel %vm1134, %v3648, %v3649
        %v3651 = vrot.slane %v3530, 1
        %v3652 = vsel %vm1134, %v3649, %v3651
        %v3653 = vrot.slane %v3531, 1
        %v3654 = vrot.slane %v3532, 1
        %v3655 = vsel %vm1134, %v3653, %v3654
        %v3656 = vrot.slane %v3533, 1
        %v3657 = vsel %vm1134, %v3654, %v3656
        %v3658 = vrot.slane %v3534, 1
        %v3659 = vrot.slane %v3535, 1
        %v3660 = vsel %vm1134, %v3658, %v3659
        %v3661 = vrot.slane %v3536, 1
        %v3662 = vsel %vm1134, %v3659, %v3661
        %v3663 = vrot.slane %v3537, 1
        %v3664 = vrot.slane %v3538, 1
        %v3665 = vsel %vm1134, %v3663, %v3664
        %v3666 = vrot.slane %v3539, 1
        %v3667 = vsel %vm1134, %v3664, %v3666
        %v3700 = vadd.f32 %v3454, %v3590
        %v3701 = vadd.f32 %v3455, %v3592
        %v3702 = vadd.f32 %v3456, %v3595
        %v3703 = vadd.f32 %v3457, %v3597
        %v3704 = vadd.f32 %v3458, %v3600
        %v3705 = vadd.f32 %v3459, %v3602
        %v3706 = vadd.f32 %v3460, %v3605
        %v3707 = vadd.f32 %v3461, %v3607
        %v3708 = vadd.f32 %v3462, %v3610
        %v3709 = vadd.f32 %v3463, %v3612
        %v3710 = vadd.f32 %v3464, %v3615
        %v3711 = vadd.f32 %v3465, %v3617
        %v3712 = vadd.f32 %v3466, %v3620
        %v3713 = vadd.f32 %v3467, %v3622
        %v3714 = vadd.f32 %v3468, %v3625
        %v3715 = vadd.f32 %v3469, %v3627
        %v3716 = vadd.f32 %v3470, %v3630
        %v3717 = vadd.f32 %v3471, %v3632
        %v3718 = vadd.f32 %v3472, %v3635
        %v3719 = vadd.f32 %v3473, %v3637
        %v3720 = vadd.f32 %v3474, %v3640
        %v3721 = vadd.f32 %v3475, %v3642
        %v3722 = vadd.f32 %v3476, %v3645
        %v3723 = vadd.f32 %v3477, %v3647
        %v3724 = vadd.f32 %v3478, %v3650
        %v3725 = vadd.f32 %v3479, %v3652
        %v3726 = vadd.f32 %v3480, %v3655
        %v3727 = vadd.f32 %v3481, %v3657
        %v3728 = vadd.f32 %v3482, %v3660
        %v3729 = vadd.f32 %v3483, %v3662
        %v3730 = vadd.f32 %v3484, %v3665
        %v3731 = vadd.f32 %v3485, %v3667
        %v3733 = vlaneseq
        %v3734 = vshrl.u32 %v3733, 7
        %v3735 = vsub.s32 0, %v3734
        %v3736 = vrot.slane %v3028, %v3735
        %v3738 = vmul.f32 %v2990, %v3736
        %v3739 = vmul.f32 %v2898, %v3736
        %v3740 = vmul.f32 %v3006, %v3736
        %v3741 = vmul.f32 %v2991, %v3736
        %v3742 = vmul.f32 %v2901, %v3736
        %v3743 = vmul.f32 %v3007, %v3736
        %v3744 = vmul.f32 %v2992, %v3736
        %v3745 = vmul.f32 %v2904, %v3736
        %v3746 = vmul.f32 %v3008, %v3736
        %v3747 = vmul.f32 %v2993, %v3736
        %v3748 = vmul.f32 %v2907, %v3736
        %v3749 = vmul.f32 %v3009, %v3736
        %v3750 = vmul.f32 %v2994, %v3736
        %v3751 = vmul.f32 %v2910, %v3736
        %v3752 = vmul.f32 %v3010, %v3736
        %v3753 = vmul.f32 %v2995, %v3736
        %v3754 = vmul.f32 %v2913, %v3736
        %v3755 = vmul.f32 %v3011, %v3736
        %v3756 = vmul.f32 %v2996, %v3736
        %v3757 = vmul.f32 %v2916, %v3736
        %v3758 = vmul.f32 %v3012, %v3736
        %v3759 = vmul.f32 %v2997, %v3736
        %v3760 = vmul.f32 %v2919, %v3736
        %v3761 = vmul.f32 %v3013, %v3736
        %v3762 = vmul.f32 %v2998, %v3736
        %v3763 = vmul.f32 %v2922, %v3736
        %v3764 = vmul.f32 %v3014, %v3736
        %v3765 = vmul.f32 %v2999, %v3736
        %v3766 = vmul.f32 %v2925, %v3736
        %v3767 = vmul.f32 %v3015, %v3736
        %v3768 = vmul.f32 %v3000, %v3736
        %v3769 = vmul.f32 %v2928, %v3736
        %v3770 = vmul.f32 %v3016, %v3736
        %v3771 = vmul.f32 %v3001, %v3736
        %v3772 = vmul.f32 %v2931, %v3736
        %v3773 = vmul.f32 %v3017, %v3736
        %v3774 = vmul.f32 %v3002, %v3736
        %v3775 = vmul.f32 %v2934, %v3736
        %v3776 = vmul.f32 %v3018, %v3736
        %v3777 = vmul.f32 %v3003, %v3736
        %v3778 = vmul.f32 %v2937, %v3736
        %v3779 = vmul.f32 %v3019, %v3736
        %v3780 = vmul.f32 %v3004, %v3736
        %v3781 = vmul.f32 %v2940, %v3736
        %v3782 = vmul.f32 %v3020, %v3736
        %v3783 = vmul.f32 %v779, %v3736
        %v3784 = vmul.f32 %v680, %v3736
        %v3785 = vmul.f32 %v796, %v3736
        %v3834 = vrot.slane %v3738, 1
        %v3835 = vrot.slane %v3739, 1
        %v3836 = vsel %vm1134, %v3834, %v3835
        %v3837 = vrot.slane %v3740, 1
        %v3838 = vsel %vm1134, %v3835, %v3837
        %v3839 = vrot.slane %v3741, 1
        %v3840 = vrot.slane %v3742, 1
        %v3841 = vsel %vm1134, %v3839, %v3840
        %v3842 = vrot.slane %v3743, 1
        %v3843 = vsel %vm1134, %v3840, %v3842
        %v3844 = vrot.slane %v3744, 1
        %v3845 = vrot.slane %v3745, 1
        %v3846 = vsel %vm1134, %v3844, %v3845
        %v3847 = vrot.slane %v3746, 1
        %v3848 = vsel %vm1134, %v3845, %v3847
        %v3849 = vrot.slane %v3747, 1
        %v3850 = vrot.slane %v3748, 1
        %v3851 = vsel %vm1134, %v3849, %v3850
        %v3852 = vrot.slane %v3749, 1
        %v3853 = vsel %vm1134, %v3850, %v3852
        %v3854 = vrot.slane %v3750, 1
        %v3855 = vrot.slane %v3751, 1
        %v3856 = vsel %vm1134, %v3854, %v3855
        %v3857 = vrot.slane %v3752, 1
        %v3858 = vsel %vm1134, %v3855, %v3857
        %v3859 = vrot.slane %v3753, 1
        %v3860 = vrot.slane %v3754, 1
        %v3861 = vsel %vm1134, %v3859, %v3860
        %v3862 = vrot.slane %v3755, 1
        %v3863 = vsel %vm1134, %v3860, %v3862
        %v3864 = vrot.slane %v3756, 1
        %v3865 = vrot.slane %v3757, 1
        %v3866 = vsel %vm1134, %v3864, %v3865
        %v3867 = vrot.slane %v3758, 1
        %v3868 = vsel %vm1134, %v3865, %v3867
        %v3869 = vrot.slane %v3759, 1
        %v3870 = vrot.slane %v3760, 1
        %v3871 = vsel %vm1134, %v3869, %v3870
        %v3872 = vrot.slane %v3761, 1
        %v3873 = vsel %vm1134, %v3870, %v3872
        %v3874 = vrot.slane %v3762, 1
        %v3875 = vrot.slane %v3763, 1
        %v3876 = vsel %vm1134, %v3874, %v3875
        %v3877 = vrot.slane %v3764, 1
        %v3878 = vsel %vm1134, %v3875, %v3877
        %v3879 = vrot.slane %v3765, 1
        %v3880 = vrot.slane %v3766, 1
        %v3881 = vsel %vm1134, %v3879, %v3880
        %v3882 = vrot.slane %v3767, 1
        %v3883 = vsel %vm1134, %v3880, %v3882
        %v3884 = vrot.slane %v3768, 1
        %v3885 = vrot.slane %v3769, 1
        %v3886 = vsel %vm1134, %v3884, %v3885
        %v3887 = vrot.slane %v3770, 1
        %v3888 = vsel %vm1134, %v3885, %v3887
        %v3889 = vrot.slane %v3771, 1
        %v3890 = vrot.slane %v3772, 1
        %v3891 = vsel %vm1134, %v3889, %v3890
        %v3892 = vrot.slane %v3773, 1
        %v3893 = vsel %vm1134, %v3890, %v3892
        %v3894 = vrot.slane %v3774, 1
        %v3895 = vrot.slane %v3775, 1
        %v3896 = vsel %vm1134, %v3894, %v3895
        %v3897 = vrot.slane %v3776, 1
        %v3898 = vsel %vm1134, %v3895, %v3897
        %v3899 = vrot.slane %v3777, 1
        %v3900 = vrot.slane %v3778, 1
        %v3901 = vsel %vm1134, %v3899, %v3900
        %v3902 = vrot.slane %v3779, 1
        %v3903 = vsel %vm1134, %v3900, %v3902
        %v3904 = vrot.slane %v3780, 1
        %v3905 = vrot.slane %v3781, 1
        %v3906 = vsel %vm1134, %v3904, %v3905
        %v3907 = vrot.slane %v3782, 1
        %v3908 = vsel %vm1134, %v3905, %v3907
        %v3909 = vrot.slane %v3783, 1
        %v3910 = vrot.slane %v3784, 1
        %v3911 = vsel %vm1134, %v3909, %v3910
        %v3912 = vrot.slane %v3785, 1
        %v3913 = vsel %vm1134, %v3910, %v3912
        %v3946 = vadd.f32 %v3700, %v3836
        %v3947 = vadd.f32 %v3701, %v3838
        %v3948 = vadd.f32 %v3702, %v3841
        %v3949 = vadd.f32 %v3703, %v3843
        %v3950 = vadd.f32 %v3704, %v3846
        %v3951 = vadd.f32 %v3705, %v3848
        %v3952 = vadd.f32 %v3706, %v3851
        %v3953 = vadd.f32 %v3707, %v3853
        %v3954 = vadd.f32 %v3708, %v3856
        %v3955 = vadd.f32 %v3709, %v3858
        %v3956 = vadd.f32 %v3710, %v3861
        %v3957 = vadd.f32 %v3711, %v3863
        %v3958 = vadd.f32 %v3712, %v3866
        %v3959 = vadd.f32 %v3713, %v3868
        %v3960 = vadd.f32 %v3714, %v3871
        %v3961 = vadd.f32 %v3715, %v3873
        %v3962 = vadd.f32 %v3716, %v3876
        %v3963 = vadd.f32 %v3717, %v3878
        %v3964 = vadd.f32 %v3718, %v3881
        %v3965 = vadd.f32 %v3719, %v3883
        %v3966 = vadd.f32 %v3720, %v3886
        %v3967 = vadd.f32 %v3721, %v3888
        %v3968 = vadd.f32 %v3722, %v3891
        %v3969 = vadd.f32 %v3723, %v3893
        %v3970 = vadd.f32 %v3724, %v3896
        %v3971 = vadd.f32 %v3725, %v3898
        %v3972 = vadd.f32 %v3726, %v3901
        %v3973 = vadd.f32 %v3727, %v3903
        %v3974 = vadd.f32 %v3728, %v3906
        %v3975 = vadd.f32 %v3729, %v3908
        %v3976 = vadd.f32 %v3730, %v3911
        %v3977 = vadd.f32 %v3731, %v3913
        %v3979 = vlaneseq
        %v3980 = vshrl.u32 %v3979, 7
        %v3981 = vsub.s32 0, %v3980
        %v3982 = vrot.slane %v3023, %v3981
        %v3984 = vmul.f32 %v779, %v3982
        %v3985 = vmul.f32 %v680, %v3982
        %v3986 = vmul.f32 %v796, %v3982
        %v3987 = vmul.f32 %v2989, %v3982
        %v3988 = vmul.f32 %v2895, %v3982
        %v3989 = vmul.f32 %v3005, %v3982
        %v3990 = vmul.f32 %v2990, %v3982
        %v3991 = vmul.f32 %v2898, %v3982
        %v3992 = vmul.f32 %v3006, %v3982
        %v3993 = vmul.f32 %v2991, %v3982
        %v3994 = vmul.f32 %v2901, %v3982
        %v3995 = vmul.f32 %v3007, %v3982
        %v3996 = vmul.f32 %v2992, %v3982
        %v3997 = vmul.f32 %v2904, %v3982
        %v3998 = vmul.f32 %v3008, %v3982
        %v3999 = vmul.f32 %v2993, %v3982
        %v4000 = vmul.f32 %v2907, %v3982
        %v4001 = vmul.f32 %v3009, %v3982
        %v4002 = vmul.f32 %v2994, %v3982
        %v4003 = vmul.f32 %v2910, %v3982
        %v4004 = vmul.f32 %v3010, %v3982
        %v4005 = vmul.f32 %v2995, %v3982
        %v4006 = vmul.f32 %v2913, %v3982
        %v4007 = vmul.f32 %v3011, %v3982
        %v4008 = vmul.f32 %v2996, %v3982
        %v4009 = vmul.f32 %v2916, %v3982
        %v4010 = vmul.f32 %v3012, %v3982
        %v4011 = vmul.f32 %v2997, %v3982
        %v4012 = vmul.f32 %v2919, %v3982
        %v4013 = vmul.f32 %v3013, %v3982
        %v4014 = vmul.f32 %v2998, %v3982
        %v4015 = vmul.f32 %v2922, %v3982
        %v4016 = vmul.f32 %v3014, %v3982
        %v4017 = vmul.f32 %v2999, %v3982
        %v4018 = vmul.f32 %v2925, %v3982
        %v4019 = vmul.f32 %v3015, %v3982
        %v4020 = vmul.f32 %v3000, %v3982
        %v4021 = vmul.f32 %v2928, %v3982
        %v4022 = vmul.f32 %v3016, %v3982
        %v4023 = vmul.f32 %v3001, %v3982
        %v4024 = vmul.f32 %v2931, %v3982
        %v4025 = vmul.f32 %v3017, %v3982
        %v4026 = vmul.f32 %v3002, %v3982
        %v4027 = vmul.f32 %v2934, %v3982
        %v4028 = vmul.f32 %v3018, %v3982
        %v4029 = vmul.f32 %v3003, %v3982
        %v4030 = vmul.f32 %v2937, %v3982
        %v4031 = vmul.f32 %v3019, %v3982
        %v4080 = vrot.slane %v3984, 2
        %v4081 = vrot.slane %v3985, 2
        %v4082 = vsel %vm1873, %v4080, %v4081
        %v4083 = vrot.slane %v3986, 2
        %v4084 = vsel %vm1873, %v4081, %v4083
        %v4085 = vrot.slane %v3987, 2
        %v4086 = vrot.slane %v3988, 2
        %v4087 = vsel %vm1873, %v4085, %v4086
        %v4088 = vrot.slane %v3989, 2
        %v4089 = vsel %vm1873, %v4086, %v4088
        %v4090 = vrot.slane %v3990, 2
        %v4091 = vrot.slane %v3991, 2
        %v4092 = vsel %vm1873, %v4090, %v4091
        %v4093 = vrot.slane %v3992, 2
        %v4094 = vsel %vm1873, %v4091, %v4093
        %v4095 = vrot.slane %v3993, 2
        %v4096 = vrot.slane %v3994, 2
        %v4097 = vsel %vm1873, %v4095, %v4096
        %v4098 = vrot.slane %v3995, 2
        %v4099 = vsel %vm1873, %v4096, %v4098
        %v4100 = vrot.slane %v3996, 2
        %v4101 = vrot.slane %v3997, 2
        %v4102 = vsel %vm1873, %v4100, %v4101
        %v4103 = vrot.slane %v3998, 2
        %v4104 = vsel %vm1873, %v4101, %v4103
        %v4105 = vrot.slane %v3999, 2
        %v4106 = vrot.slane %v4000, 2
        %v4107 = vsel %vm1873, %v4105, %v4106
        %v4108 = vrot.slane %v4001, 2
        %v4109 = vsel %vm1873, %v4106, %v4108
        %v4110 = vrot.slane %v4002, 2
        %v4111 = vrot.slane %v4003, 2
        %v4112 = vsel %vm1873, %v4110, %v4111
        %v4113 = vrot.slane %v4004, 2
        %v4114 = vsel %vm1873, %v4111, %v4113
        %v4115 = vrot.slane %v4005, 2
        %v4116 = vrot.slane %v4006, 2
        %v4117 = vsel %vm1873, %v4115, %v4116
        %v4118 = vrot.slane %v4007, 2
        %v4119 = vsel %vm1873, %v4116, %v4118
        %v4120 = vrot.slane %v4008, 2
        %v4121 = vrot.slane %v4009, 2
        %v4122 = vsel %vm1873, %v4120, %v4121
        %v4123 = vrot.slane %v4010, 2
        %v4124 = vsel %vm1873, %v4121, %v4123
        %v4125 = vrot.slane %v4011, 2
        %v4126 = vrot.slane %v4012, 2
        %v4127 = vsel %vm1873, %v4125, %v4126
        %v4128 = vrot.slane %v4013, 2
        %v4129 = vsel %vm1873, %v4126, %v4128
        %v4130 = vrot.slane %v4014, 2
        %v4131 = vrot.slane %v4015, 2
        %v4132 = vsel %vm1873, %v4130, %v4131
        %v4133 = vrot.slane %v4016, 2
        %v4134 = vsel %vm1873, %v4131, %v4133
        %v4135 = vrot.slane %v4017, 2
        %v4136 = vrot.slane %v4018, 2
        %v4137 = vsel %vm1873, %v4135, %v4136
        %v4138 = vrot.slane %v4019, 2
        %v4139 = vsel %vm1873, %v4136, %v4138
        %v4140 = vrot.slane %v4020, 2
        %v4141 = vrot.slane %v4021, 2
        %v4142 = vsel %vm1873, %v4140, %v4141
        %v4143 = vrot.slane %v4022, 2
        %v4144 = vsel %vm1873, %v4141, %v4143
        %v4145 = vrot.slane %v4023, 2
        %v4146 = vrot.slane %v4024, 2
        %v4147 = vsel %vm1873, %v4145, %v4146
        %v4148 = vrot.slane %v4025, 2
        %v4149 = vsel %vm1873, %v4146, %v4148
        %v4150 = vrot.slane %v4026, 2
        %v4151 = vrot.slane %v4027, 2
        %v4152 = vsel %vm1873, %v4150, %v4151
        %v4153 = vrot.slane %v4028, 2
        %v4154 = vsel %vm1873, %v4151, %v4153
        %v4155 = vrot.slane %v4029, 2
        %v4156 = vrot.slane %v4030, 2
        %v4157 = vsel %vm1873, %v4155, %v4156
        %v4158 = vrot.slane %v4031, 2
        %v4159 = vsel %vm1873, %v4156, %v4158
        %v4192 = vadd.f32 %v3946, %v4082
        %v4193 = vadd.f32 %v3947, %v4084
        %v4194 = vadd.f32 %v3948, %v4087
        %v4195 = vadd.f32 %v3949, %v4089
        %v4196 = vadd.f32 %v3950, %v4092
        %v4197 = vadd.f32 %v3951, %v4094
        %v4198 = vadd.f32 %v3952, %v4097
        %v4199 = vadd.f32 %v3953, %v4099
        %v4200 = vadd.f32 %v3954, %v4102
        %v4201 = vadd.f32 %v3955, %v4104
        %v4202 = vadd.f32 %v3956, %v4107
        %v4203 = vadd.f32 %v3957, %v4109
        %v4204 = vadd.f32 %v3958, %v4112
        %v4205 = vadd.f32 %v3959, %v4114
        %v4206 = vadd.f32 %v3960, %v4117
        %v4207 = vadd.f32 %v3961, %v4119
        %v4208 = vadd.f32 %v3962, %v4122
        %v4209 = vadd.f32 %v3963, %v4124
        %v4210 = vadd.f32 %v3964, %v4127
        %v4211 = vadd.f32 %v3965, %v4129
        %v4212 = vadd.f32 %v3966, %v4132
        %v4213 = vadd.f32 %v3967, %v4134
        %v4214 = vadd.f32 %v3968, %v4137
        %v4215 = vadd.f32 %v3969, %v4139
        %v4216 = vadd.f32 %v3970, %v4142
        %v4217 = vadd.f32 %v3971, %v4144
        %v4218 = vadd.f32 %v3972, %v4147
        %v4219 = vadd.f32 %v3973, %v4149
        %v4220 = vadd.f32 %v3974, %v4152
        %v4221 = vadd.f32 %v3975, %v4154
        %v4222 = vadd.f32 %v3976, %v4157
        %v4223 = vadd.f32 %v3977, %v4159
        %v4225 = vlaneseq
        %v4226 = vshrl.u32 %v4225, 7
        %v4227 = vsub.s32 0, %v4226
        %v4228 = vrot.slane %v3026, %v4227
        %v4230 = vmul.f32 %v2989, %v4228
        %v4231 = vmul.f32 %v2895, %v4228
        %v4232 = vmul.f32 %v3005, %v4228
        %v4233 = vmul.f32 %v2990, %v4228
        %v4234 = vmul.f32 %v2898, %v4228
        %v4235 = vmul.f32 %v3006, %v4228
        %v4236 = vmul.f32 %v2991, %v4228
        %v4237 = vmul.f32 %v2901, %v4228
        %v4238 = vmul.f32 %v3007, %v4228
        %v4239 = vmul.f32 %v2992, %v4228
        %v4240 = vmul.f32 %v2904, %v4228
        %v4241 = vmul.f32 %v3008, %v4228
        %v4242 = vmul.f32 %v2993, %v4228
        %v4243 = vmul.f32 %v2907, %v4228
        %v4244 = vmul.f32 %v3009, %v4228
        %v4245 = vmul.f32 %v2994, %v4228
        %v4246 = vmul.f32 %v2910, %v4228
        %v4247 = vmul.f32 %v3010, %v4228
        %v4248 = vmul.f32 %v2995, %v4228
        %v4249 = vmul.f32 %v2913, %v4228
        %v4250 = vmul.f32 %v3011, %v4228
        %v4251 = vmul.f32 %v2996, %v4228
        %v4252 = vmul.f32 %v2916, %v4228
        %v4253 = vmul.f32 %v3012, %v4228
        %v4254 = vmul.f32 %v2997, %v4228
        %v4255 = vmul.f32 %v2919, %v4228
        %v4256 = vmul.f32 %v3013, %v4228
        %v4257 = vmul.f32 %v2998, %v4228
        %v4258 = vmul.f32 %v2922, %v4228
        %v4259 = vmul.f32 %v3014, %v4228
        %v4260 = vmul.f32 %v2999, %v4228
        %v4261 = vmul.f32 %v2925, %v4228
        %v4262 = vmul.f32 %v3015, %v4228
        %v4263 = vmul.f32 %v3000, %v4228
        %v4264 = vmul.f32 %v2928, %v4228
        %v4265 = vmul.f32 %v3016, %v4228
        %v4266 = vmul.f32 %v3001, %v4228
        %v4267 = vmul.f32 %v2931, %v4228
        %v4268 = vmul.f32 %v3017, %v4228
        %v4269 = vmul.f32 %v3002, %v4228
        %v4270 = vmul.f32 %v2934, %v4228
        %v4271 = vmul.f32 %v3018, %v4228
        %v4272 = vmul.f32 %v3003, %v4228
        %v4273 = vmul.f32 %v2937, %v4228
        %v4274 = vmul.f32 %v3019, %v4228
        %v4275 = vmul.f32 %v3004, %v4228
        %v4276 = vmul.f32 %v2940, %v4228
        %v4277 = vmul.f32 %v3020, %v4228
        %v4326 = vrot.slane %v4230, 2
        %v4327 = vrot.slane %v4231, 2
        %v4328 = vsel %vm1873, %v4326, %v4327
        %v4329 = vrot.slane %v4232, 2
        %v4330 = vsel %vm1873, %v4327, %v4329
        %v4331 = vrot.slane %v4233, 2
        %v4332 = vrot.slane %v4234, 2
        %v4333 = vsel %vm1873, %v4331, %v4332
        %v4334 = vrot.slane %v4235, 2
        %v4335 = vsel %vm1873, %v4332, %v4334
        %v4336 = vrot.slane %v4236, 2
        %v4337 = vrot.slane %v4237, 2
        %v4338 = vsel %vm1873, %v4336, %v4337
        %v4339 = vrot.slane %v4238, 2
        %v4340 = vsel %vm1873, %v4337, %v4339
        %v4341 = vrot.slane %v4239, 2
        %v4342 = vrot.slane %v4240, 2
        %v4343 = vsel %vm1873, %v4341, %v4342
        %v4344 = vrot.slane %v4241, 2
        %v4345 = vsel %vm1873, %v4342, %v4344
        %v4346 = vrot.slane %v4242, 2
        %v4347 = vrot.slane %v4243, 2
        %v4348 = vsel %vm1873, %v4346, %v4347
        %v4349 = vrot.slane %v4244, 2
        %v4350 = vsel %vm1873, %v4347, %v4349
        %v4351 = vrot.slane %v4245, 2
        %v4352 = vrot.slane %v4246, 2
        %v4353 = vsel %vm1873, %v4351, %v4352
        %v4354 = vrot.slane %v4247, 2
        %v4355 = vsel %vm1873, %v4352, %v4354
        %v4356 = vrot.slane %v4248, 2
        %v4357 = vrot.slane %v4249, 2
        %v4358 = vsel %vm1873, %v4356, %v4357
        %v4359 = vrot.slane %v4250, 2
        %v4360 = vsel %vm1873, %v4357, %v4359
        %v4361 = vrot.slane %v4251, 2
        %v4362 = vrot.slane %v4252, 2
        %v4363 = vsel %vm1873, %v4361, %v4362
        %v4364 = vrot.slane %v4253, 2
        %v4365 = vsel %vm1873, %v4362, %v4364
        %v4366 = vrot.slane %v4254, 2
        %v4367 = vrot.slane %v4255, 2
        %v4368 = vsel %vm1873, %v4366, %v4367
        %v4369 = vrot.slane %v4256, 2
        %v4370 = vsel %vm1873, %v4367, %v4369
        %v4371 = vrot.slane %v4257, 2
        %v4372 = vrot.slane %v4258, 2
        %v4373 = vsel %vm1873, %v4371, %v4372
        %v4374 = vrot.slane %v4259, 2
        %v4375 = vsel %vm1873, %v4372, %v4374
        %v4376 = vrot.slane %v4260, 2
        %v4377 = vrot.slane %v4261, 2
        %v4378 = vsel %vm1873, %v4376, %v4377
        %v4379 = vrot.slane %v4262, 2
        %v4380 = vsel %vm1873, %v4377, %v4379
        %v4381 = vrot.slane %v4263, 2
        %v4382 = vrot.slane %v4264, 2
        %v4383 = vsel %vm1873, %v4381, %v4382
        %v4384 = vrot.slane %v4265, 2
        %v4385 = vsel %vm1873, %v4382, %v4384
        %v4386 = vrot.slane %v4266, 2
        %v4387 = vrot.slane %v4267, 2
        %v4388 = vsel %vm1873, %v4386, %v4387
        %v4389 = vrot.slane %v4268, 2
        %v4390 = vsel %vm1873, %v4387, %v4389
        %v4391 = vrot.slane %v4269, 2
        %v4392 = vrot.slane %v4270, 2
        %v4393 = vsel %vm1873, %v4391, %v4392
        %v4394 = vrot.slane %v4271, 2
        %v4395 = vsel %vm1873, %v4392, %v4394
        %v4396 = vrot.slane %v4272, 2
        %v4397 = vrot.slane %v4273, 2
        %v4398 = vsel %vm1873, %v4396, %v4397
        %v4399 = vrot.slane %v4274, 2
        %v4400 = vsel %vm1873, %v4397, %v4399
        %v4401 = vrot.slane %v4275, 2
        %v4402 = vrot.slane %v4276, 2
        %v4403 = vsel %vm1873, %v4401, %v4402
        %v4404 = vrot.slane %v4277, 2
        %v4405 = vsel %vm1873, %v4402, %v4404
        %v4438 = vadd.f32 %v4192, %v4328
        %v4439 = vadd.f32 %v4193, %v4330
        %v4440 = vadd.f32 %v4194, %v4333
        %v4441 = vadd.f32 %v4195, %v4335
        %v4442 = vadd.f32 %v4196, %v4338
        %v4443 = vadd.f32 %v4197, %v4340
        %v4444 = vadd.f32 %v4198, %v4343
        %v4445 = vadd.f32 %v4199, %v4345
        %v4446 = vadd.f32 %v4200, %v4348
        %v4447 = vadd.f32 %v4201, %v4350
        %v4448 = vadd.f32 %v4202, %v4353
        %v4449 = vadd.f32 %v4203, %v4355
        %v4450 = vadd.f32 %v4204, %v4358
        %v4451 = vadd.f32 %v4205, %v4360
        %v4452 = vadd.f32 %v4206, %v4363
        %v4453 = vadd.f32 %v4207, %v4365
        %v4454 = vadd.f32 %v4208, %v4368
        %v4455 = vadd.f32 %v4209, %v4370
        %v4456 = vadd.f32 %v4210, %v4373
        %v4457 = vadd.f32 %v4211, %v4375
        %v4458 = vadd.f32 %v4212, %v4378
        %v4459 = vadd.f32 %v4213, %v4380
        %v4460 = vadd.f32 %v4214, %v4383
        %v4461 = vadd.f32 %v4215, %v4385
        %v4462 = vadd.f32 %v4216, %v4388
        %v4463 = vadd.f32 %v4217, %v4390
        %v4464 = vadd.f32 %v4218, %v4393
        %v4465 = vadd.f32 %v4219, %v4395
        %v4466 = vadd.f32 %v4220, %v4398
        %v4467 = vadd.f32 %v4221, %v4400
        %v4468 = vadd.f32 %v4222, %v4403
        %v4469 = vadd.f32 %v4223, %v4405
        %v4471 = vlaneseq
        %v4472 = vshrl.u32 %v4471, 7
        %v4473 = vsub.s32 0, %v4472
        %v4474 = vrot.slane %v3029, %v4473
        %v4476 = vmul.f32 %v2990, %v4474
        %v4477 = vmul.f32 %v2898, %v4474
        %v4478 = vmul.f32 %v3006, %v4474
        %v4479 = vmul.f32 %v2991, %v4474
        %v4480 = vmul.f32 %v2901, %v4474
        %v4481 = vmul.f32 %v3007, %v4474
        %v4482 = vmul.f32 %v2992, %v4474
        %v4483 = vmul.f32 %v2904, %v4474
        %v4484 = vmul.f32 %v3008, %v4474
        %v4485 = vmul.f32 %v2993, %v4474
        %v4486 = vmul.f32 %v2907, %v4474
        %v4487 = vmul.f32 %v3009, %v4474
        %v4488 = vmul.f32 %v2994, %v4474
        %v4489 = vmul.f32 %v2910, %v4474
        %v4490 = vmul.f32 %v3010, %v4474
        %v4491 = vmul.f32 %v2995, %v4474
        %v4492 = vmul.f32 %v2913, %v4474
        %v4493 = vmul.f32 %v3011, %v4474
        %v4494 = vmul.f32 %v2996, %v4474
        %v4495 = vmul.f32 %v2916, %v4474
        %v4496 = vmul.f32 %v3012, %v4474
        %v4497 = vmul.f32 %v2997, %v4474
        %v4498 = vmul.f32 %v2919, %v4474
        %v4499 = vmul.f32 %v3013, %v4474
        %v4500 = vmul.f32 %v2998, %v4474
        %v4501 = vmul.f32 %v2922, %v4474
        %v4502 = vmul.f32 %v3014, %v4474
        %v4503 = vmul.f32 %v2999, %v4474
        %v4504 = vmul.f32 %v2925, %v4474
        %v4505 = vmul.f32 %v3015, %v4474
        %v4506 = vmul.f32 %v3000, %v4474
        %v4507 = vmul.f32 %v2928, %v4474
        %v4508 = vmul.f32 %v3016, %v4474
        %v4509 = vmul.f32 %v3001, %v4474
        %v4510 = vmul.f32 %v2931, %v4474
        %v4511 = vmul.f32 %v3017, %v4474
        %v4512 = vmul.f32 %v3002, %v4474
        %v4513 = vmul.f32 %v2934, %v4474
        %v4514 = vmul.f32 %v3018, %v4474
        %v4515 = vmul.f32 %v3003, %v4474
        %v4516 = vmul.f32 %v2937, %v4474
        %v4517 = vmul.f32 %v3019, %v4474
        %v4518 = vmul.f32 %v3004, %v4474
        %v4519 = vmul.f32 %v2940, %v4474
        %v4520 = vmul.f32 %v3020, %v4474
        %v4521 = vmul.f32 %v779, %v4474
        %v4522 = vmul.f32 %v680, %v4474
        %v4523 = vmul.f32 %v796, %v4474
        %v4572 = vrot.slane %v4476, 2
        %v4573 = vrot.slane %v4477, 2
        %v4574 = vsel %vm1873, %v4572, %v4573
        %v4575 = vrot.slane %v4478, 2
        %v4576 = vsel %vm1873, %v4573, %v4575
        %v4577 = vrot.slane %v4479, 2
        %v4578 = vrot.slane %v4480, 2
        %v4579 = vsel %vm1873, %v4577, %v4578
        %v4580 = vrot.slane %v4481, 2
        %v4581 = vsel %vm1873, %v4578, %v4580
        %v4582 = vrot.slane %v4482, 2
        %v4583 = vrot.slane %v4483, 2
        %v4584 = vsel %vm1873, %v4582, %v4583
        %v4585 = vrot.slane %v4484, 2
        %v4586 = vsel %vm1873, %v4583, %v4585
        %v4587 = vrot.slane %v4485, 2
        %v4588 = vrot.slane %v4486, 2
        %v4589 = vsel %vm1873, %v4587, %v4588
        %v4590 = vrot.slane %v4487, 2
        %v4591 = vsel %vm1873, %v4588, %v4590
        %v4592 = vrot.slane %v4488, 2
        %v4593 = vrot.slane %v4489, 2
        %v4594 = vsel %vm1873, %v4592, %v4593
        %v4595 = vrot.slane %v4490, 2
        %v4596 = vsel %vm1873, %v4593, %v4595
        %v4597 = vrot.slane %v4491, 2
        %v4598 = vrot.slane %v4492, 2
        %v4599 = vsel %vm1873, %v4597, %v4598
        %v4600 = vrot.slane %v4493, 2
        %v4601 = vsel %vm1873, %v4598, %v4600
        %v4602 = vrot.slane %v4494, 2
        %v4603 = vrot.slane %v4495, 2
        %v4604 = vsel %vm1873, %v4602, %v4603
        %v4605 = vrot.slane %v4496, 2
        %v4606 = vsel %vm1873, %v4603, %v4605
        %v4607 = vrot.slane %v4497, 2
        %v4608 = vrot.slane %v4498, 2
        %v4609 = vsel %vm1873, %v4607, %v4608
        %v4610 = vrot.slane %v4499, 2
        %v4611 = vsel %vm1873, %v4608, %v4610
        %v4612 = vrot.slane %v4500, 2
        %v4613 = vrot.slane %v4501, 2
        %v4614 = vsel %vm1873, %v4612, %v4613
        %v4615 = vrot.slane %v4502, 2
        %v4616 = vsel %vm1873, %v4613, %v4615
        %v4617 = vrot.slane %v4503, 2
        %v4618 = vrot.slane %v4504, 2
        %v4619 = vsel %vm1873, %v4617, %v4618
        %v4620 = vrot.slane %v4505, 2
        %v4621 = vsel %vm1873, %v4618, %v4620
        %v4622 = vrot.slane %v4506, 2
        %v4623 = vrot.slane %v4507, 2
        %v4624 = vsel %vm1873, %v4622, %v4623
        %v4625 = vrot.slane %v4508, 2
        %v4626 = vsel %vm1873, %v4623, %v4625
        %v4627 = vrot.slane %v4509, 2
        %v4628 = vrot.slane %v4510, 2
        %v4629 = vsel %vm1873, %v4627, %v4628
        %v4630 = vrot.slane %v4511, 2
        %v4631 = vsel %vm1873, %v4628, %v4630
        %v4632 = vrot.slane %v4512, 2
        %v4633 = vrot.slane %v4513, 2
        %v4634 = vsel %vm1873, %v4632, %v4633
        %v4635 = vrot.slane %v4514, 2
        %v4636 = vsel %vm1873, %v4633, %v4635
        %v4637 = vrot.slane %v4515, 2
        %v4638 = vrot.slane %v4516, 2
        %v4639 = vsel %vm1873, %v4637, %v4638
        %v4640 = vrot.slane %v4517, 2
        %v4641 = vsel %vm1873, %v4638, %v4640
        %v4642 = vrot.slane %v4518, 2
        %v4643 = vrot.slane %v4519, 2
        %v4644 = vsel %vm1873, %v4642, %v4643
        %v4645 = vrot.slane %v4520, 2
        %v4646 = vsel %vm1873, %v4643, %v4645
        %v4647 = vrot.slane %v4521, 2
        %v4648 = vrot.slane %v4522, 2
        %v4649 = vsel %vm1873, %v4647, %v4648
        %v4650 = vrot.slane %v4523, 2
        %v4651 = vsel %vm1873, %v4648, %v4650
        %v4684 = vadd.f32 %v4438, %v4574
        %v4685 = vadd.f32 %v4439, %v4576
        %v4686 = vadd.f32 %v4440, %v4579
        %v4687 = vadd.f32 %v4441, %v4581
        %v4688 = vadd.f32 %v4442, %v4584
        %v4689 = vadd.f32 %v4443, %v4586
        %v4690 = vadd.f32 %v4444, %v4589
        %v4691 = vadd.f32 %v4445, %v4591
        %v4692 = vadd.f32 %v4446, %v4594
        %v4693 = vadd.f32 %v4447, %v4596
        %v4694 = vadd.f32 %v4448, %v4599
        %v4695 = vadd.f32 %v4449, %v4601
        %v4696 = vadd.f32 %v4450, %v4604
        %v4697 = vadd.f32 %v4451, %v4606
        %v4698 = vadd.f32 %v4452, %v4609
        %v4699 = vadd.f32 %v4453, %v4611
        %v4700 = vadd.f32 %v4454, %v4614
        %v4701 = vadd.f32 %v4455, %v4616
        %v4702 = vadd.f32 %v4456, %v4619
        %v4703 = vadd.f32 %v4457, %v4621
        %v4704 = vadd.f32 %v4458, %v4624
        %v4705 = vadd.f32 %v4459, %v4626
        %v4706 = vadd.f32 %v4460, %v4629
        %v4707 = vadd.f32 %v4461, %v4631
        %v4708 = vadd.f32 %v4462, %v4634
        %v4709 = vadd.f32 %v4463, %v4636
        %v4710 = vadd.f32 %v4464, %v4639
        %v4711 = vadd.f32 %v4465, %v4641
        %v4712 = vadd.f32 %v4466, %v4644
        %v4713 = vadd.f32 %v4467, %v4646
        %v4714 = vadd.f32 %v4468, %v4649
        %v4715 = vadd.f32 %v4469, %v4651
        %v4716 = vpack.c.bf16 %v4685, %v4684
        %v4717 = vpack.c.bf16 %v4687, %v4686
        %v4718 = vpack.c.bf16 %v4689, %v4688
        %v4719 = vpack.c.bf16 %v4691, %v4690
        %v4720 = vpack.c.bf16 %v4693, %v4692
        %v4721 = vpack.c.bf16 %v4695, %v4694
        %v4722 = vpack.c.bf16 %v4697, %v4696
        %v4723 = vpack.c.bf16 %v4699, %v4698
        %v4724 = vpack.c.bf16 %v4701, %v4700
        %v4725 = vpack.c.bf16 %v4703, %v4702
        %v4726 = vpack.c.bf16 %v4705, %v4704
        %v4727 = vpack.c.bf16 %v4707, %v4706
        %v4728 = vpack.c.bf16 %v4709, %v4708
        %v4729 = vpack.c.bf16 %v4711, %v4710
        %v4730 = vpack.c.bf16 %v4713, %v4712
        %v4731 = vpack.c.bf16 %v4715, %v4714
        %v4732 = vld [vmem:[#allocation13] sm:$0xf]
        %v4733 = vld [vmem:[#allocation13 + $0x4] sm:$0xf]
        %v4734 = vld [vmem:[#allocation13 + $0x8] sm:$0xf]
        %v4735 = vld [vmem:[#allocation13 + $0xc] sm:$0xf]
        %v4736 = vld [vmem:[#allocation13 + $0x10] sm:$0xf]
        %v4737 = vld [vmem:[#allocation13 + $0x14] sm:$0xf]
        %v4738 = vld [vmem:[#allocation13 + $0x18] sm:$0xf]
        %v4739 = vld [vmem:[#allocation13 + $0x1c] sm:$0xf]
        %v4740 = vld [vmem:[#allocation13 + $0x20] sm:$0xf]
        %v4741 = vld [vmem:[#allocation13 + $0x24] sm:$0xf]
        %v4742 = vld [vmem:[#allocation13 + $0x28] sm:$0xf]
        %v4743 = vld [vmem:[#allocation13 + $0x2c] sm:$0xf]
        %v4744 = vld [vmem:[#allocation13 + $0x30] sm:$0xf]
        %v4745 = vld [vmem:[#allocation13 + $0x34] sm:$0xf]
        %v4746 = vld [vmem:[#allocation13 + $0x38] sm:$0xf]
        %v4747 = vld [vmem:[#allocation13 + $0x3c] sm:$0xf]
        %v4764 = vunpack.c.l.b16 %v4732
        %v4765 = vunpack.c.l.b16 %v4733
        %v4766 = vunpack.c.l.b16 %v4734
        %v4767 = vunpack.c.l.b16 %v4735
        %v4768 = vunpack.c.l.b16 %v4736
        %v4769 = vunpack.c.l.b16 %v4737
        %v4770 = vunpack.c.l.b16 %v4738
        %v4771 = vunpack.c.l.b16 %v4739
        %v4772 = vunpack.c.l.b16 %v4740
        %v4773 = vunpack.c.l.b16 %v4741
        %v4774 = vunpack.c.l.b16 %v4742
        %v4775 = vunpack.c.l.b16 %v4743
        %v4776 = vunpack.c.l.b16 %v4744
        %v4777 = vunpack.c.l.b16 %v4745
        %v4778 = vunpack.c.l.b16 %v4746
        %v4779 = vunpack.c.l.b16 %v4747
        %v4780 = vpack.c.b16 %v4765, %v4764
        %v4781 = vpack.c.b16 %v4767, %v4766
        %v4782 = vpack.c.b16 %v4769, %v4768
        %v4783 = vpack.c.b16 %v4771, %v4770
        %v4784 = vpack.c.b16 %v4773, %v4772
        %v4785 = vpack.c.b16 %v4775, %v4774
        %v4786 = vpack.c.b16 %v4777, %v4776
        %v4787 = vpack.c.b16 %v4779, %v4778
        %4796 = vmatprep.subr.bf16.mxu0 0
        %4797 = vmatpush1.bf16.msra.mxu0 %v4780
        %4798 = vmatprep.subr.bf16.mxu0 0
        %4799 = vmatpush1.bf16.msra.mxu0 %v4781
        %4800 = vmatprep.subr.bf16.mxu0 0
        %4801 = vmatpush1.bf16.msra.mxu0 %v4782
        %4802 = vmatprep.subr.bf16.mxu0 0
        %4803 = vmatpush1.bf16.msra.mxu0 %v4783
        %4804 = vmatprep.subr.bf16.mxu0 0
        %4805 = vmatpush1.bf16.msra.mxu0 %v4784
        %4806 = vmatprep.subr.bf16.mxu0 0
        %4807 = vmatpush1.bf16.msra.mxu0 %v4785
        %4808 = vmatprep.subr.bf16.mxu0 0
        %4809 = vmatpush1.bf16.msra.mxu0 %v4786
        %4810 = vmatprep.subr.bf16.mxu0 0
        %4811 = vmatpush1.bf16.msra.mxu0 %v4787
        %4812 = vmatprep.subr.bf16.mxu0 0
        %4813 = vmatpush1.bf16.msra.mxu0 0
        %4814 = vmatprep.subr.bf16.mxu0 0
        %4815 = vmatpush1.bf16.msra.mxu0 0
        %4816 = vmatprep.subr.bf16.mxu0 0
        %4817 = vmatpush1.bf16.msra.mxu0 0
        %4818 = vmatprep.subr.bf16.mxu0 0
        %4819 = vmatpush1.bf16.msra.mxu0 0
        %4820 = vmatprep.subr.bf16.mxu0 0
        %4821 = vmatpush1.bf16.msra.mxu0 0
        %4822 = vmatprep.subr.bf16.mxu0 0
        %4823 = vmatpush1.bf16.msra.mxu0 0
        %4824 = vmatprep.subr.bf16.mxu0 0
        %4825 = vmatpush1.bf16.msra.mxu0 0
        %4826 = vmatprep.subr.bf16.mxu0 0
        %4827 = vmatpush1.bf16.msra.mxu0 0
        %4828 = vmatprep.mubr.bf16.mxu0 0
        %4829 = vmatmul.mubr.bf16.gmra.mrb[0].mxu0 %v4716
        %v4830 = vpop.f32.mrb[0].mxu0
        %v4831 = vadd.f32 0.0, %v4830
        %v4832 = vpop.f32.mrb[0].mxu0
        %v4833 = vpop.f32.mrb[0].mxu0
        %v4834 = vadd.f32 0.0, %v4833
        %v4835 = vpop.f32.mrb[0].mxu0
        %4836 = vmatprep.mubr.bf16.mxu0 0
        %4837 = vmatmul.mubr.bf16.gmra.mrb[0].mxu0 %v4717
        %v4838 = vpop.f32.mrb[0].mxu0
        %v4839 = vadd.f32 0.0, %v4838
        %v4840 = vpop.f32.mrb[0].mxu0
        %v4841 = vpop.f32.mrb[0].mxu0
        %v4842 = vadd.f32 0.0, %v4841
        %v4843 = vpop.f32.mrb[0].mxu0
        %4844 = vmatprep.mubr.bf16.mxu0 0
        %4845 = vmatmul.mubr.bf16.gmra.mrb[0].mxu0 %v4718
        %v4846 = vpop.f32.mrb[0].mxu0
        %v4847 = vadd.f32 0.0, %v4846
        %v4848 = vpop.f32.mrb[0].mxu0
        %v4849 = vpop.f32.mrb[0].mxu0
        %v4850 = vadd.f32 0.0, %v4849
        %v4851 = vpop.f32.mrb[0].mxu0
        %4852 = vmatprep.mubr.bf16.mxu0 0
        %4853 = vmatmul.mubr.bf16.gmra.mrb[0].mxu0 %v4719
        %v4854 = vpop.f32.mrb[0].mxu0
        %v4855 = vadd.f32 0.0, %v4854
        %v4856 = vpop.f32.mrb[0].mxu0
        %v4857 = vpop.f32.mrb[0].mxu0
        %v4858 = vadd.f32 0.0, %v4857
        %v4859 = vpop.f32.mrb[0].mxu0
        %4860 = vmatprep.mubr.bf16.mxu0 0
        %4861 = vmatmul.mubr.bf16.gmra.mrb[0].mxu0 %v4720
        %v4862 = vpop.f32.mrb[0].mxu0
        %v4863 = vadd.f32 0.0, %v4862
        %v4864 = vpop.f32.mrb[0].mxu0
        %v4865 = vpop.f32.mrb[0].mxu0
        %v4866 = vadd.f32 0.0, %v4865
        %v4867 = vpop.f32.mrb[0].mxu0
        %4868 = vmatprep.mubr.bf16.mxu0 0
        %4869 = vmatmul.mubr.bf16.gmra.mrb[0].mxu0 %v4721
        %v4870 = vpop.f32.mrb[0].mxu0
        %v4871 = vadd.f32 0.0, %v4870
        %v4872 = vpop.f32.mrb[0].mxu0
        %v4873 = vpop.f32.mrb[0].mxu0
        %v4874 = vadd.f32 0.0, %v4873
        %v4875 = vpop.f32.mrb[0].mxu0
        %4876 = vmatprep.mubr.bf16.mxu0 0
        %4877 = vmatmul.mubr.bf16.gmra.mrb[0].mxu0 %v4722
        %v4878 = vpop.f32.mrb[0].mxu0
        %v4879 = vadd.f32 0.0, %v4878
        %v4880 = vpop.f32.mrb[0].mxu0
        %v4881 = vpop.f32.mrb[0].mxu0
        %v4882 = vadd.f32 0.0, %v4881
        %v4883 = vpop.f32.mrb[0].mxu0
        %4884 = vmatprep.mubr.bf16.mxu0 0
        %4885 = vmatmul.mubr.bf16.gmra.mrb[0].mxu0 %v4723
        %v4886 = vpop.f32.mrb[0].mxu0
        %v4887 = vadd.f32 0.0, %v4886
        %v4888 = vpop.f32.mrb[0].mxu0
        %v4889 = vpop.f32.mrb[0].mxu0
        %v4890 = vadd.f32 0.0, %v4889
        %v4891 = vpop.f32.mrb[0].mxu0
        %4892 = vmatprep.mubr.bf16.mxu0 0
        %4893 = vmatmul.mubr.bf16.gmra.mrb[0].mxu0 %v4724
        %v4894 = vpop.f32.mrb[0].mxu0
        %v4895 = vadd.f32 0.0, %v4894
        %v4896 = vpop.f32.mrb[0].mxu0
        %v4897 = vpop.f32.mrb[0].mxu0
        %v4898 = vadd.f32 0.0, %v4897
        %v4899 = vpop.f32.mrb[0].mxu0
        %4900 = vmatprep.mubr.bf16.mxu0 0
        %4901 = vmatmul.mubr.bf16.gmra.mrb[0].mxu0 %v4725
        %v4902 = vpop.f32.mrb[0].mxu0
        %v4903 = vadd.f32 0.0, %v4902
        %v4904 = vpop.f32.mrb[0].mxu0
        %v4905 = vpop.f32.mrb[0].mxu0
        %v4906 = vadd.f32 0.0, %v4905
        %v4907 = vpop.f32.mrb[0].mxu0
        %4908 = vmatprep.mubr.bf16.mxu0 0
        %4909 = vmatmul.mubr.bf16.gmra.mrb[0].mxu0 %v4726
        %v4910 = vpop.f32.mrb[0].mxu0
        %v4911 = vadd.f32 0.0, %v4910
        %v4912 = vpop.f32.mrb[0].mxu0
        %v4913 = vpop.f32.mrb[0].mxu0
        %v4914 = vadd.f32 0.0, %v4913
        %v4915 = vpop.f32.mrb[0].mxu0
        %4916 = vmatprep.mubr.bf16.mxu0 0
        %4917 = vmatmul.mubr.bf16.gmra.mrb[0].mxu0 %v4727
        %v4918 = vpop.f32.mrb[0].mxu0
        %v4919 = vadd.f32 0.0, %v4918
        %v4920 = vpop.f32.mrb[0].mxu0
        %v4921 = vpop.f32.mrb[0].mxu0
        %v4922 = vadd.f32 0.0, %v4921
        %v4923 = vpop.f32.mrb[0].mxu0
        %4924 = vmatprep.mubr.bf16.mxu0 0
        %4925 = vmatmul.mubr.bf16.gmra.mrb[0].mxu0 %v4728
        %v4926 = vpop.f32.mrb[0].mxu0
        %v4927 = vadd.f32 0.0, %v4926
        %v4928 = vpop.f32.mrb[0].mxu0
        %v4929 = vpop.f32.mrb[0].mxu0
        %v4930 = vadd.f32 0.0, %v4929
        %v4931 = vpop.f32.mrb[0].mxu0
        %4932 = vmatprep.mubr.bf16.mxu0 0
        %4933 = vmatmul.mubr.bf16.gmra.mrb[0].mxu0 %v4729
        %v4934 = vpop.f32.mrb[0].mxu0
        %v4935 = vadd.f32 0.0, %v4934
        %v4936 = vpop.f32.mrb[0].mxu0
        %v4937 = vpop.f32.mrb[0].mxu0
        %v4938 = vadd.f32 0.0, %v4937
        %v4939 = vpop.f32.mrb[0].mxu0
        %4940 = vmatprep.mubr.bf16.mxu0 0
        %4941 = vmatmul.mubr.bf16.gmra.mrb[0].mxu0 %v4730
        %v4942 = vpop.f32.mrb[0].mxu0
        %v4943 = vadd.f32 0.0, %v4942
        %v4944 = vpop.f32.mrb[0].mxu0
        %v4945 = vpop.f32.mrb[0].mxu0
        %v4946 = vadd.f32 0.0, %v4945
        %v4947 = vpop.f32.mrb[0].mxu0
        %4948 = vmatprep.mubr.bf16.mxu0 0
        %4949 = vmatmul.mubr.bf16.gmra.mrb[0].mxu0 %v4731
        %v4950 = vpop.f32.mrb[0].mxu0
        %v4951 = vadd.f32 0.0, %v4950
        %v4952 = vpop.f32.mrb[0].mxu0
        %v4953 = vpop.f32.mrb[0].mxu0
        %v4954 = vadd.f32 0.0, %v4953
        %v4955 = vpop.f32.mrb[0].mxu0
        %4956 = vdwg.mxu0
        %v4957 = vld [vmem:[#allocation14] sm:$0x1]
        %v4959 = vlaneseq
        %v4960 = vshrl.u32 %v4959, 7
        %v4961 = vsub.s32 0, %v4960
        %v4962 = vrot.slane %v4957, %v4961
        %v4964 = vmul.f32 %v4831, %v4962
        %v4965 = vmul.f32 %v4834, %v4962
        %v4966 = vmul.f32 %v4839, %v4962
        %v4967 = vmul.f32 %v4842, %v4962
        %v4968 = vmul.f32 %v4847, %v4962
        %v4969 = vmul.f32 %v4850, %v4962
        %v4970 = vmul.f32 %v4855, %v4962
        %v4971 = vmul.f32 %v4858, %v4962
        %v4972 = vmul.f32 %v4863, %v4962
        %v4973 = vmul.f32 %v4866, %v4962
        %v4974 = vmul.f32 %v4871, %v4962
        %v4975 = vmul.f32 %v4874, %v4962
        %v4976 = vmul.f32 %v4879, %v4962
        %v4977 = vmul.f32 %v4882, %v4962
        %v4978 = vmul.f32 %v4887, %v4962
        %v4979 = vmul.f32 %v4890, %v4962
        %v4980 = vmul.f32 %v4895, %v4962
        %v4981 = vmul.f32 %v4898, %v4962
        %v4982 = vmul.f32 %v4903, %v4962
        %v4983 = vmul.f32 %v4906, %v4962
        %v4984 = vmul.f32 %v4911, %v4962
        %v4985 = vmul.f32 %v4914, %v4962
        %v4986 = vmul.f32 %v4919, %v4962
        %v4987 = vmul.f32 %v4922, %v4962
        %v4988 = vmul.f32 %v4927, %v4962
        %v4989 = vmul.f32 %v4930, %v4962
        %v4990 = vmul.f32 %v4935, %v4962
        %v4991 = vmul.f32 %v4938, %v4962
        %v4992 = vmul.f32 %v4943, %v4962
        %v4993 = vmul.f32 %v4946, %v4962
        %v4994 = vmul.f32 %v4951, %v4962
        %v4995 = vmul.f32 %v4954, %v4962
        %v4996 = vld [vmem:[#allocation16] sm:$0x1]
        %v4998 = vlaneseq
        %v4999 = vshrl.u32 %v4998, 7
        %v5000 = vsub.s32 0, %v4999
        %v5001 = vrot.slane %v4996, %v5000
        %v5003 = vadd.f32 %v4964, %v5001
        %v5004 = vadd.f32 %v4965, %v5001
        %v5005 = vadd.f32 %v4966, %v5001
        %v5006 = vadd.f32 %v4967, %v5001
        %v5007 = vadd.f32 %v4968, %v5001
        %v5008 = vadd.f32 %v4969, %v5001
        %v5009 = vadd.f32 %v4970, %v5001
        %v5010 = vadd.f32 %v4971, %v5001
        %v5011 = vadd.f32 %v4972, %v5001
        %v5012 = vadd.f32 %v4973, %v5001
        %v5013 = vadd.f32 %v4974, %v5001
        %v5014 = vadd.f32 %v4975, %v5001
        %v5015 = vadd.f32 %v4976, %v5001
        %v5016 = vadd.f32 %v4977, %v5001
        %v5017 = vadd.f32 %v4978, %v5001
        %v5018 = vadd.f32 %v4979, %v5001
        %v5019 = vadd.f32 %v4980, %v5001
        %v5020 = vadd.f32 %v4981, %v5001
        %v5021 = vadd.f32 %v4982, %v5001
        %v5022 = vadd.f32 %v4983, %v5001
        %v5023 = vadd.f32 %v4984, %v5001
        %v5024 = vadd.f32 %v4985, %v5001
        %v5025 = vadd.f32 %v4986, %v5001
        %v5026 = vadd.f32 %v4987, %v5001
        %v5027 = vadd.f32 %v4988, %v5001
        %v5028 = vadd.f32 %v4989, %v5001
        %v5029 = vadd.f32 %v4990, %v5001
        %v5030 = vadd.f32 %v4991, %v5001
        %v5031 = vadd.f32 %v4992, %v5001
        %v5032 = vadd.f32 %v4993, %v5001
        %v5033 = vadd.f32 %v4994, %v5001
        %v5034 = vadd.f32 %v4995, %v5001
        %v5068 = vrot.slane -inf, 7
        %v5069 = vsel %vm678, %v5068, %v5068
        %v5070 = vrot.slane %v5003, 7
        %v5071 = vrot.slane %v5004, 7
        %v5072 = vsel %vm678, %v5070, %v5071
        %v5073 = vrot.slane %v5005, 7
        %v5074 = vrot.slane %v5006, 7
        %v5075 = vsel %vm678, %v5073, %v5074
        %v5076 = vrot.slane %v5007, 7
        %v5077 = vrot.slane %v5008, 7
        %v5078 = vsel %vm678, %v5076, %v5077
        %v5079 = vrot.slane %v5009, 7
        %v5080 = vrot.slane %v5010, 7
        %v5081 = vsel %vm678, %v5079, %v5080
        %v5082 = vrot.slane %v5011, 7
        %v5083 = vrot.slane %v5012, 7
        %v5084 = vsel %vm678, %v5082, %v5083
        %v5085 = vrot.slane %v5013, 7
        %v5086 = vrot.slane %v5014, 7
        %v5087 = vsel %vm678, %v5085, %v5086
        %v5088 = vrot.slane %v5015, 7
        %v5089 = vrot.slane %v5016, 7
        %v5090 = vsel %vm678, %v5088, %v5089
        %v5091 = vrot.slane %v5017, 7
        %v5092 = vrot.slane %v5018, 7
        %v5093 = vsel %vm678, %v5091, %v5092
        %v5094 = vrot.slane %v5019, 7
        %v5095 = vrot.slane %v5020, 7
        %v5096 = vsel %vm678, %v5094, %v5095
        %v5097 = vrot.slane %v5021, 7
        %v5098 = vrot.slane %v5022, 7
        %v5099 = vsel %vm678, %v5097, %v5098
        %v5100 = vrot.slane %v5023, 7
        %v5101 = vrot.slane %v5024, 7
        %v5102 = vsel %vm678, %v5100, %v5101
        %v5103 = vrot.slane %v5025, 7
        %v5104 = vrot.slane %v5026, 7
        %v5105 = vsel %vm678, %v5103, %v5104
        %v5106 = vrot.slane %v5027, 7
        %v5107 = vrot.slane %v5028, 7
        %v5108 = vsel %vm678, %v5106, %v5107
        %v5109 = vrot.slane %v5029, 7
        %v5110 = vrot.slane %v5030, 7
        %v5111 = vsel %vm678, %v5109, %v5110
        %v5112 = vrot.slane %v5031, 7
        %v5113 = vrot.slane %v5032, 7
        %v5114 = vsel %vm678, %v5112, %v5113
        %v5115 = vrot.slane %v5033, 7
        %v5116 = vrot.slane %v5034, 7
        %v5117 = vsel %vm678, %v5115, %v5116
        %v5168 = vsel %vm678, -inf, %v5068
        %v5169 = vsel %vm678, -inf, %v5070
        %v5170 = vsel %vm678, -inf, %v5073
        %v5171 = vsel %vm678, -inf, %v5076
        %v5172 = vsel %vm678, -inf, %v5079
        %v5173 = vsel %vm678, -inf, %v5082
        %v5174 = vsel %vm678, -inf, %v5085
        %v5175 = vsel %vm678, -inf, %v5088
        %v5176 = vsel %vm678, -inf, %v5091
        %v5177 = vsel %vm678, -inf, %v5094
        %v5178 = vsel %vm678, -inf, %v5097
        %v5179 = vsel %vm678, -inf, %v5100
        %v5180 = vsel %vm678, -inf, %v5103
        %v5181 = vsel %vm678, -inf, %v5106
        %v5182 = vsel %vm678, -inf, %v5109
        %v5183 = vsel %vm678, -inf, %v5112
        %v5184 = vsel %vm678, -inf, %v5115
        %v5185 = vsel %vm678, %v5068, -inf
        %v5186 = vsel %vm678, %v5071, -inf
        %v5187 = vsel %vm678, %v5074, -inf
        %v5188 = vsel %vm678, %v5077, -inf
        %v5189 = vsel %vm678, %v5080, -inf
        %v5190 = vsel %vm678, %v5083, -inf
        %v5191 = vsel %vm678, %v5086, -inf
        %v5192 = vsel %vm678, %v5089, -inf
        %v5193 = vsel %vm678, %v5092, -inf
        %v5194 = vsel %vm678, %v5095, -inf
        %v5195 = vsel %vm678, %v5098, -inf
        %v5196 = vsel %vm678, %v5101, -inf
        %v5197 = vsel %vm678, %v5104, -inf
        %v5198 = vsel %vm678, %v5107, -inf
        %v5199 = vsel %vm678, %v5110, -inf
        %v5200 = vsel %vm678, %v5113, -inf
        %v5201 = vsel %vm678, %v5116, -inf
        %v5236 = vrot.slane %v5168, 1
        %v5237 = vrot.slane %v5069, 1
        %v5238 = vsel %vm1134, %v5236, %v5237
        %v5239 = vrot.slane %v5185, 1
        %v5240 = vsel %vm1134, %v5237, %v5239
        %v5241 = vrot.slane %v5169, 1
        %v5242 = vrot.slane %v5072, 1
        %v5243 = vsel %vm1134, %v5241, %v5242
        %v5244 = vrot.slane %v5186, 1
        %v5245 = vsel %vm1134, %v5242, %v5244
        %v5246 = vrot.slane %v5170, 1
        %v5247 = vrot.slane %v5075, 1
        %v5248 = vsel %vm1134, %v5246, %v5247
        %v5249 = vrot.slane %v5187, 1
        %v5250 = vsel %vm1134, %v5247, %v5249
        %v5251 = vrot.slane %v5171, 1
        %v5252 = vrot.slane %v5078, 1
        %v5253 = vsel %vm1134, %v5251, %v5252
        %v5254 = vrot.slane %v5188, 1
        %v5255 = vsel %vm1134, %v5252, %v5254
        %v5256 = vrot.slane %v5172, 1
        %v5257 = vrot.slane %v5081, 1
        %v5258 = vsel %vm1134, %v5256, %v5257
        %v5259 = vrot.slane %v5189, 1
        %v5260 = vsel %vm1134, %v5257, %v5259
        %v5261 = vrot.slane %v5173, 1
        %v5262 = vrot.slane %v5084, 1
        %v5263 = vsel %vm1134, %v5261, %v5262
        %v5264 = vrot.slane %v5190, 1
        %v5265 = vsel %vm1134, %v5262, %v5264
        %v5266 = vrot.slane %v5174, 1
        %v5267 = vrot.slane %v5087, 1
        %v5268 = vsel %vm1134, %v5266, %v5267
        %v5269 = vrot.slane %v5191, 1
        %v5270 = vsel %vm1134, %v5267, %v5269
        %v5271 = vrot.slane %v5175, 1
        %v5272 = vrot.slane %v5090, 1
        %v5273 = vsel %vm1134, %v5271, %v5272
        %v5274 = vrot.slane %v5192, 1
        %v5275 = vsel %vm1134, %v5272, %v5274
        %v5276 = vrot.slane %v5176, 1
        %v5277 = vrot.slane %v5093, 1
        %v5278 = vsel %vm1134, %v5276, %v5277
        %v5279 = vrot.slane %v5193, 1
        %v5280 = vsel %vm1134, %v5277, %v5279
        %v5281 = vrot.slane %v5177, 1
        %v5282 = vrot.slane %v5096, 1
        %v5283 = vsel %vm1134, %v5281, %v5282
        %v5284 = vrot.slane %v5194, 1
        %v5285 = vsel %vm1134, %v5282, %v5284
        %v5286 = vrot.slane %v5178, 1
        %v5287 = vrot.slane %v5099, 1
        %v5288 = vsel %vm1134, %v5286, %v5287
        %v5289 = vrot.slane %v5195, 1
        %v5290 = vsel %vm1134, %v5287, %v5289
        %v5291 = vrot.slane %v5179, 1
        %v5292 = vrot.slane %v5102, 1
        %v5293 = vsel %vm1134, %v5291, %v5292
        %v5294 = vrot.slane %v5196, 1
        %v5295 = vsel %vm1134, %v5292, %v5294
        %v5296 = vrot.slane %v5180, 1
        %v5297 = vrot.slane %v5105, 1
        %v5298 = vsel %vm1134, %v5296, %v5297
        %v5299 = vrot.slane %v5197, 1
        %v5300 = vsel %vm1134, %v5297, %v5299
        %v5301 = vrot.slane %v5181, 1
        %v5302 = vrot.slane %v5108, 1
        %v5303 = vsel %vm1134, %v5301, %v5302
        %v5304 = vrot.slane %v5198, 1
        %v5305 = vsel %vm1134, %v5302, %v5304
        %v5306 = vrot.slane %v5182, 1
        %v5307 = vrot.slane %v5111, 1
        %v5308 = vsel %vm1134, %v5306, %v5307
        %v5309 = vrot.slane %v5199, 1
        %v5310 = vsel %vm1134, %v5307, %v5309
        %v5311 = vrot.slane %v5183, 1
        %v5312 = vrot.slane %v5114, 1
        %v5313 = vsel %vm1134, %v5311, %v5312
        %v5314 = vrot.slane %v5200, 1
        %v5315 = vsel %vm1134, %v5312, %v5314
        %v5316 = vrot.slane %v5184, 1
        %v5317 = vrot.slane %v5117, 1
        %v5318 = vsel %vm1134, %v5316, %v5317
        %v5319 = vrot.slane %v5201, 1
        %v5320 = vsel %vm1134, %v5317, %v5319
        %v5355 = vmax.f32 %v5168, %v5238
        %v5356 = vmax.f32 %v5069, %v5240
        %v5357 = vmax.f32 %v5169, %v5243
        %v5358 = vmax.f32 %v5072, %v5245
        %v5359 = vmax.f32 %v5170, %v5248
        %v5360 = vmax.f32 %v5075, %v5250
        %v5361 = vmax.f32 %v5171, %v5253
        %v5362 = vmax.f32 %v5078, %v5255
        %v5363 = vmax.f32 %v5172, %v5258
        %v5364 = vmax.f32 %v5081, %v5260
        %v5365 = vmax.f32 %v5173, %v5263
        %v5366 = vmax.f32 %v5084, %v5265
        %v5367 = vmax.f32 %v5174, %v5268
        %v5368 = vmax.f32 %v5087, %v5270
        %v5369 = vmax.f32 %v5175, %v5273
        %v5370 = vmax.f32 %v5090, %v5275
        %v5371 = vmax.f32 %v5176, %v5278
        %v5372 = vmax.f32 %v5093, %v5280
        %v5373 = vmax.f32 %v5177, %v5283
        %v5374 = vmax.f32 %v5096, %v5285
        %v5375 = vmax.f32 %v5178, %v5288
        %v5376 = vmax.f32 %v5099, %v5290
        %v5377 = vmax.f32 %v5179, %v5293
        %v5378 = vmax.f32 %v5102, %v5295
        %v5379 = vmax.f32 %v5180, %v5298
        %v5380 = vmax.f32 %v5105, %v5300
        %v5381 = vmax.f32 %v5181, %v5303
        %v5382 = vmax.f32 %v5108, %v5305
        %v5383 = vmax.f32 %v5182, %v5308
        %v5384 = vmax.f32 %v5111, %v5310
        %v5385 = vmax.f32 %v5183, %v5313
        %v5386 = vmax.f32 %v5114, %v5315
        %v5387 = vmax.f32 %v5184, %v5318
        %v5388 = vmax.f32 %v5117, %v5320
        %v5389 = vrot.slane %v5168, 2
        %v5390 = vrot.slane %v5069, 2
        %v5391 = vsel %vm1873, %v5389, %v5390
        %v5392 = vrot.slane %v5185, 2
        %v5393 = vsel %vm1873, %v5390, %v5392
        %v5394 = vrot.slane %v5169, 2
        %v5395 = vrot.slane %v5072, 2
        %v5396 = vsel %vm1873, %v5394, %v5395
        %v5397 = vrot.slane %v5186, 2
        %v5398 = vsel %vm1873, %v5395, %v5397
        %v5399 = vrot.slane %v5170, 2
        %v5400 = vrot.slane %v5075, 2
        %v5401 = vsel %vm1873, %v5399, %v5400
        %v5402 = vrot.slane %v5187, 2
        %v5403 = vsel %vm1873, %v5400, %v5402
        %v5404 = vrot.slane %v5171, 2
        %v5405 = vrot.slane %v5078, 2
        %v5406 = vsel %vm1873, %v5404, %v5405
        %v5407 = vrot.slane %v5188, 2
        %v5408 = vsel %vm1873, %v5405, %v5407
        %v5409 = vrot.slane %v5172, 2
        %v5410 = vrot.slane %v5081, 2
        %v5411 = vsel %vm1873, %v5409, %v5410
        %v5412 = vrot.slane %v5189, 2
        %v5413 = vsel %vm1873, %v5410, %v5412
        %v5414 = vrot.slane %v5173, 2
        %v5415 = vrot.slane %v5084, 2
        %v5416 = vsel %vm1873, %v5414, %v5415
        %v5417 = vrot.slane %v5190, 2
        %v5418 = vsel %vm1873, %v5415, %v5417
        %v5419 = vrot.slane %v5174, 2
        %v5420 = vrot.slane %v5087, 2
        %v5421 = vsel %vm1873, %v5419, %v5420
        %v5422 = vrot.slane %v5191, 2
        %v5423 = vsel %vm1873, %v5420, %v5422
        %v5424 = vrot.slane %v5175, 2
        %v5425 = vrot.slane %v5090, 2
        %v5426 = vsel %vm1873, %v5424, %v5425
        %v5427 = vrot.slane %v5192, 2
        %v5428 = vsel %vm1873, %v5425, %v5427
        %v5429 = vrot.slane %v5176, 2
        %v5430 = vrot.slane %v5093, 2
        %v5431 = vsel %vm1873, %v5429, %v5430
        %v5432 = vrot.slane %v5193, 2
        %v5433 = vsel %vm1873, %v5430, %v5432
        %v5434 = vrot.slane %v5177, 2
        %v5435 = vrot.slane %v5096, 2
        %v5436 = vsel %vm1873, %v5434, %v5435
        %v5437 = vrot.slane %v5194, 2
        %v5438 = vsel %vm1873, %v5435, %v5437
        %v5439 = vrot.slane %v5178, 2
        %v5440 = vrot.slane %v5099, 2
        %v5441 = vsel %vm1873, %v5439, %v5440
        %v5442 = vrot.slane %v5195, 2
        %v5443 = vsel %vm1873, %v5440, %v5442
        %v5444 = vrot.slane %v5179, 2
        %v5445 = vrot.slane %v5102, 2
        %v5446 = vsel %vm1873, %v5444, %v5445
        %v5447 = vrot.slane %v5196, 2
        %v5448 = vsel %vm1873, %v5445, %v5447
        %v5449 = vrot.slane %v5180, 2
        %v5450 = vrot.slane %v5105, 2
        %v5451 = vsel %vm1873, %v5449, %v5450
        %v5452 = vrot.slane %v5197, 2
        %v5453 = vsel %vm1873, %v5450, %v5452
        %v5454 = vrot.slane %v5181, 2
        %v5455 = vrot.slane %v5108, 2
        %v5456 = vsel %vm1873, %v5454, %v5455
        %v5457 = vrot.slane %v5198, 2
        %v5458 = vsel %vm1873, %v5455, %v5457
        %v5459 = vrot.slane %v5182, 2
        %v5460 = vrot.slane %v5111, 2
        %v5461 = vsel %vm1873, %v5459, %v5460
        %v5462 = vrot.slane %v5199, 2
        %v5463 = vsel %vm1873, %v5460, %v5462
        %v5464 = vrot.slane %v5183, 2
        %v5465 = vrot.slane %v5114, 2
        %v5466 = vsel %vm1873, %v5464, %v5465
        %v5467 = vrot.slane %v5200, 2
        %v5468 = vsel %vm1873, %v5465, %v5467
        %v5469 = vrot.slane %v5184, 2
        %v5470 = vrot.slane %v5117, 2
        %v5471 = vsel %vm1873, %v5469, %v5470
        %v5472 = vrot.slane %v5201, 2
        %v5473 = vsel %vm1873, %v5470, %v5472
        %v5508 = vmax.f32 %v5355, %v5391
        %v5509 = vmax.f32 %v5356, %v5393
        %v5510 = vmax.f32 %v5357, %v5396
        %v5511 = vmax.f32 %v5358, %v5398
        %v5512 = vmax.f32 %v5359, %v5401
        %v5513 = vmax.f32 %v5360, %v5403
        %v5514 = vmax.f32 %v5361, %v5406
        %v5515 = vmax.f32 %v5362, %v5408
        %v5516 = vmax.f32 %v5363, %v5411
        %v5517 = vmax.f32 %v5364, %v5413
        %v5518 = vmax.f32 %v5365, %v5416
        %v5519 = vmax.f32 %v5366, %v5418
        %v5520 = vmax.f32 %v5367, %v5421
        %v5521 = vmax.f32 %v5368, %v5423
        %v5522 = vmax.f32 %v5369, %v5426
        %v5523 = vmax.f32 %v5370, %v5428
        %v5524 = vmax.f32 %v5371, %v5431
        %v5525 = vmax.f32 %v5372, %v5433
        %v5526 = vmax.f32 %v5373, %v5436
        %v5527 = vmax.f32 %v5374, %v5438
        %v5528 = vmax.f32 %v5375, %v5441
        %v5529 = vmax.f32 %v5376, %v5443
        %v5530 = vmax.f32 %v5377, %v5446
        %v5531 = vmax.f32 %v5378, %v5448
        %v5532 = vmax.f32 %v5379, %v5451
        %v5533 = vmax.f32 %v5380, %v5453
        %v5534 = vmax.f32 %v5381, %v5456
        %v5535 = vmax.f32 %v5382, %v5458
        %v5536 = vmax.f32 %v5383, %v5461
        %v5537 = vmax.f32 %v5384, %v5463
        %v5538 = vmax.f32 %v5385, %v5466
        %v5539 = vmax.f32 %v5386, %v5468
        %v5540 = vmax.f32 %v5387, %v5471
        %v5541 = vmax.f32 %v5388, %v5473
        %v5542 = vmax.f32 %v5508, %v5510
        %v5543 = vmax.f32 %v5509, %v5511
        %v5544 = vmax.f32 %v5512, %v5514
        %v5545 = vmax.f32 %v5513, %v5515
        %v5546 = vmax.f32 %v5516, %v5518
        %v5547 = vmax.f32 %v5517, %v5519
        %v5548 = vmax.f32 %v5520, %v5522
        %v5549 = vmax.f32 %v5521, %v5523
        %v5550 = vmax.f32 %v5524, %v5526
        %v5551 = vmax.f32 %v5525, %v5527
        %v5552 = vmax.f32 %v5528, %v5530
        %v5553 = vmax.f32 %v5529, %v5531
        %v5554 = vmax.f32 %v5532, %v5534
        %v5555 = vmax.f32 %v5533, %v5535
        %v5556 = vmax.f32 %v5536, %v5538
        %v5557 = vmax.f32 %v5537, %v5539
        %v5558 = vmax.f32 %v5542, %v5512
        %v5559 = vmax.f32 %v5543, %v5513
        %v5560 = vmax.f32 %v5544, %v5516
        %v5561 = vmax.f32 %v5545, %v5517
        %v5562 = vmax.f32 %v5546, %v5520
        %v5563 = vmax.f32 %v5547, %v5521
        %v5564 = vmax.f32 %v5548, %v5524
        %v5565 = vmax.f32 %v5549, %v5525
        %v5566 = vmax.f32 %v5550, %v5528
        %v5567 = vmax.f32 %v5551, %v5529
        %v5568 = vmax.f32 %v5552, %v5532
        %v5569 = vmax.f32 %v5553, %v5533
        %v5570 = vmax.f32 %v5554, %v5536
        %v5571 = vmax.f32 %v5555, %v5537
        %v5572 = vmax.f32 %v5556, %v5540
        %v5573 = vmax.f32 %v5557, %v5541
        %v5590 = vcombine.high %v5558, %v5558
        %v5592 = vunpack.c.l.s4 1983009808
        %v5593 = vunpack.c.0.s8 %v5592
        %v5594 = vlaneseq
        %v5595 = vshrl.u32 %v5594, 7
        %v5596 = vsub.s32 %v5593, %v5595
        %v5597 = vrot.slane %v5558, %v5596
        %v5599 = vunpack.c.l.s4 1983009808
        %v5600 = vunpack.c.0.s8 %v5599
        %v5601 = vlaneseq
        %v5602 = vshrl.u32 %v5601, 7
        %v5603 = vsub.s32 %v5600, %v5602
        %v5604 = vrot.slane %v5590, %v5603
        %v5605 = vcombine.high %v5597, %v5597
        %v5606 = vcombine.high %v5604, %v5604
        %v5607 = vcombine.high %v5559, %v5559
        %v5609 = vunpack.c.l.s4 1983009808
        %v5610 = vunpack.c.0.s8 %v5609
        %v5611 = vlaneseq
        %v5612 = vshrl.u32 %v5611, 7
        %v5613 = vsub.s32 %v5610, %v5612
        %v5614 = vrot.slane %v5559, %v5613
        %v5616 = vunpack.c.l.s4 1983009808
        %v5617 = vunpack.c.0.s8 %v5616
        %v5618 = vlaneseq
        %v5619 = vshrl.u32 %v5618, 7
        %v5620 = vsub.s32 %v5617, %v5619
        %v5621 = vrot.slane %v5607, %v5620
        %v5622 = vcombine.high %v5614, %v5614
        %v5623 = vcombine.high %v5621, %v5621
        %v5624 = vcombine.high %v5560, %v5560
        %v5626 = vunpack.c.l.s4 1983009808
        %v5627 = vunpack.c.0.s8 %v5626
        %v5628 = vlaneseq
        %v5629 = vshrl.u32 %v5628, 7
        %v5630 = vsub.s32 %v5627, %v5629
        %v5631 = vrot.slane %v5560, %v5630
        %v5633 = vunpack.c.l.s4 1983009808
        %v5634 = vunpack.c.0.s8 %v5633
        %v5635 = vlaneseq
        %v5636 = vshrl.u32 %v5635, 7
        %v5637 = vsub.s32 %v5634, %v5636
        %v5638 = vrot.slane %v5624, %v5637
        %v5639 = vcombine.high %v5631, %v5631
        %v5640 = vcombine.high %v5638, %v5638
        %v5641 = vcombine.high %v5561, %v5561
        %v5643 = vunpack.c.l.s4 1983009808
        %v5644 = vunpack.c.0.s8 %v5643
        %v5645 = vlaneseq
        %v5646 = vshrl.u32 %v5645, 7
        %v5647 = vsub.s32 %v5644, %v5646
        %v5648 = vrot.slane %v5561, %v5647
        %v5650 = vunpack.c.l.s4 1983009808
        %v5651 = vunpack.c.0.s8 %v5650
        %v5652 = vlaneseq
        %v5653 = vshrl.u32 %v5652, 7
        %v5654 = vsub.s32 %v5651, %v5653
        %v5655 = vrot.slane %v5641, %v5654
        %v5656 = vcombine.high %v5648, %v5648
        %v5657 = vcombine.high %v5655, %v5655
        %v5658 = vcombine.high %v5562, %v5562
        %v5660 = vunpack.c.l.s4 1983009808
        %v5661 = vunpack.c.0.s8 %v5660
        %v5662 = vlaneseq
        %v5663 = vshrl.u32 %v5662, 7
        %v5664 = vsub.s32 %v5661, %v5663
        %v5665 = vrot.slane %v5562, %v5664
        %v5667 = vunpack.c.l.s4 1983009808
        %v5668 = vunpack.c.0.s8 %v5667
        %v5669 = vlaneseq
        %v5670 = vshrl.u32 %v5669, 7
        %v5671 = vsub.s32 %v5668, %v5670
        %v5672 = vrot.slane %v5658, %v5671
        %v5673 = vcombine.high %v5665, %v5665
        %v5674 = vcombine.high %v5672, %v5672
        %v5675 = vcombine.high %v5563, %v5563
        %v5677 = vunpack.c.l.s4 1983009808
        %v5678 = vunpack.c.0.s8 %v5677
        %v5679 = vlaneseq
        %v5680 = vshrl.u32 %v5679, 7
        %v5681 = vsub.s32 %v5678, %v5680
        %v5682 = vrot.slane %v5563, %v5681
        %v5684 = vunpack.c.l.s4 1983009808
        %v5685 = vunpack.c.0.s8 %v5684
        %v5686 = vlaneseq
        %v5687 = vshrl.u32 %v5686, 7
        %v5688 = vsub.s32 %v5685, %v5687
        %v5689 = vrot.slane %v5675, %v5688
        %v5690 = vcombine.high %v5682, %v5682
        %v5691 = vcombine.high %v5689, %v5689
        %v5692 = vcombine.high %v5564, %v5564
        %v5694 = vunpack.c.l.s4 1983009808
        %v5695 = vunpack.c.0.s8 %v5694
        %v5696 = vlaneseq
        %v5697 = vshrl.u32 %v5696, 7
        %v5698 = vsub.s32 %v5695, %v5697
        %v5699 = vrot.slane %v5564, %v5698
        %v5701 = vunpack.c.l.s4 1983009808
        %v5702 = vunpack.c.0.s8 %v5701
        %v5703 = vlaneseq
        %v5704 = vshrl.u32 %v5703, 7
        %v5705 = vsub.s32 %v5702, %v5704
        %v5706 = vrot.slane %v5692, %v5705
        %v5707 = vcombine.high %v5699, %v5699
        %v5708 = vcombine.high %v5706, %v5706
        %v5709 = vcombine.high %v5565, %v5565
        %v5711 = vunpack.c.l.s4 1983009808
        %v5712 = vunpack.c.0.s8 %v5711
        %v5713 = vlaneseq
        %v5714 = vshrl.u32 %v5713, 7
        %v5715 = vsub.s32 %v5712, %v5714
        %v5716 = vrot.slane %v5565, %v5715
        %v5718 = vunpack.c.l.s4 1983009808
        %v5719 = vunpack.c.0.s8 %v5718
        %v5720 = vlaneseq
        %v5721 = vshrl.u32 %v5720, 7
        %v5722 = vsub.s32 %v5719, %v5721
        %v5723 = vrot.slane %v5709, %v5722
        %v5724 = vcombine.high %v5716, %v5716
        %v5725 = vcombine.high %v5723, %v5723
        %v5726 = vcombine.high %v5566, %v5566
        %v5728 = vunpack.c.l.s4 1983009808
        %v5729 = vunpack.c.0.s8 %v5728
        %v5730 = vlaneseq
        %v5731 = vshrl.u32 %v5730, 7
        %v5732 = vsub.s32 %v5729, %v5731
        %v5733 = vrot.slane %v5566, %v5732
        %v5735 = vunpack.c.l.s4 1983009808
        %v5736 = vunpack.c.0.s8 %v5735
        %v5737 = vlaneseq
        %v5738 = vshrl.u32 %v5737, 7
        %v5739 = vsub.s32 %v5736, %v5738
        %v5740 = vrot.slane %v5726, %v5739
        %v5741 = vcombine.high %v5733, %v5733
        %v5742 = vcombine.high %v5740, %v5740
        %v5743 = vcombine.high %v5567, %v5567
        %v5745 = vunpack.c.l.s4 1983009808
        %v5746 = vunpack.c.0.s8 %v5745
        %v5747 = vlaneseq
        %v5748 = vshrl.u32 %v5747, 7
        %v5749 = vsub.s32 %v5746, %v5748
        %v5750 = vrot.slane %v5567, %v5749
        %v5752 = vunpack.c.l.s4 1983009808
        %v5753 = vunpack.c.0.s8 %v5752
        %v5754 = vlaneseq
        %v5755 = vshrl.u32 %v5754, 7
        %v5756 = vsub.s32 %v5753, %v5755
        %v5757 = vrot.slane %v5743, %v5756
        %v5758 = vcombine.high %v5750, %v5750
        %v5759 = vcombine.high %v5757, %v5757
        %v5760 = vcombine.high %v5568, %v5568
        %v5762 = vunpack.c.l.s4 1983009808
        %v5763 = vunpack.c.0.s8 %v5762
        %v5764 = vlaneseq
        %v5765 = vshrl.u32 %v5764, 7
        %v5766 = vsub.s32 %v5763, %v5765
        %v5767 = vrot.slane %v5568, %v5766
        %v5769 = vunpack.c.l.s4 1983009808
        %v5770 = vunpack.c.0.s8 %v5769
        %v5771 = vlaneseq
        %v5772 = vshrl.u32 %v5771, 7
        %v5773 = vsub.s32 %v5770, %v5772
        %v5774 = vrot.slane %v5760, %v5773
        %v5775 = vcombine.high %v5767, %v5767
        %v5776 = vcombine.high %v5774, %v5774
        %v5777 = vcombine.high %v5569, %v5569
        %v5779 = vunpack.c.l.s4 1983009808
        %v5780 = vunpack.c.0.s8 %v5779
        %v5781 = vlaneseq
        %v5782 = vshrl.u32 %v5781, 7
        %v5783 = vsub.s32 %v5780, %v5782
        %v5784 = vrot.slane %v5569, %v5783
        %v5786 = vunpack.c.l.s4 1983009808
        %v5787 = vunpack.c.0.s8 %v5786
        %v5788 = vlaneseq
        %v5789 = vshrl.u32 %v5788, 7
        %v5790 = vsub.s32 %v5787, %v5789
        %v5791 = vrot.slane %v5777, %v5790
        %v5792 = vcombine.high %v5784, %v5784
        %v5793 = vcombine.high %v5791, %v5791
        %v5794 = vcombine.high %v5570, %v5570
        %v5796 = vunpack.c.l.s4 1983009808
        %v5797 = vunpack.c.0.s8 %v5796
        %v5798 = vlaneseq
        %v5799 = vshrl.u32 %v5798, 7
        %v5800 = vsub.s32 %v5797, %v5799
        %v5801 = vrot.slane %v5570, %v5800
        %v5803 = vunpack.c.l.s4 1983009808
        %v5804 = vunpack.c.0.s8 %v5803
        %v5805 = vlaneseq
        %v5806 = vshrl.u32 %v5805, 7
        %v5807 = vsub.s32 %v5804, %v5806
        %v5808 = vrot.slane %v5794, %v5807
        %v5809 = vcombine.high %v5801, %v5801
        %v5810 = vcombine.high %v5808, %v5808
        %v5811 = vcombine.high %v5571, %v5571
        %v5813 = vunpack.c.l.s4 1983009808
        %v5814 = vunpack.c.0.s8 %v5813
        %v5815 = vlaneseq
        %v5816 = vshrl.u32 %v5815, 7
        %v5817 = vsub.s32 %v5814, %v5816
        %v5818 = vrot.slane %v5571, %v5817
        %v5820 = vunpack.c.l.s4 1983009808
        %v5821 = vunpack.c.0.s8 %v5820
        %v5822 = vlaneseq
        %v5823 = vshrl.u32 %v5822, 7
        %v5824 = vsub.s32 %v5821, %v5823
        %v5825 = vrot.slane %v5811, %v5824
        %v5826 = vcombine.high %v5818, %v5818
        %v5827 = vcombine.high %v5825, %v5825
        %v5828 = vcombine.high %v5572, %v5572
        %v5830 = vunpack.c.l.s4 1983009808
        %v5831 = vunpack.c.0.s8 %v5830
        %v5832 = vlaneseq
        %v5833 = vshrl.u32 %v5832, 7
        %v5834 = vsub.s32 %v5831, %v5833
        %v5835 = vrot.slane %v5572, %v5834
        %v5837 = vunpack.c.l.s4 1983009808
        %v5838 = vunpack.c.0.s8 %v5837
        %v5839 = vlaneseq
        %v5840 = vshrl.u32 %v5839, 7
        %v5841 = vsub.s32 %v5838, %v5840
        %v5842 = vrot.slane %v5828, %v5841
        %v5843 = vcombine.high %v5835, %v5835
        %v5844 = vcombine.high %v5842, %v5842
        %v5845 = vcombine.high %v5573, %v5573
        %v5847 = vunpack.c.l.s4 1983009808
        %v5848 = vunpack.c.0.s8 %v5847
        %v5849 = vlaneseq
        %v5850 = vshrl.u32 %v5849, 7
        %v5851 = vsub.s32 %v5848, %v5850
        %v5852 = vrot.slane %v5573, %v5851
        %v5854 = vunpack.c.l.s4 1983009808
        %v5855 = vunpack.c.0.s8 %v5854
        %v5856 = vlaneseq
        %v5857 = vshrl.u32 %v5856, 7
        %v5858 = vsub.s32 %v5855, %v5857
        %v5859 = vrot.slane %v5845, %v5858
        %v5860 = vcombine.high %v5852, %v5852
        %v5861 = vcombine.high %v5859, %v5859
        %v5942 = vcombine.high %v581, %v581
        %v5944 = vunpack.c.l.s4 1983009808
        %v5945 = vunpack.c.0.s8 %v5944
        %v5946 = vlaneseq
        %v5947 = vshrl.u32 %v5946, 7
        %v5948 = vsub.s32 %v5945, %v5947
        %v5949 = vrot.slane %v581, %v5948
        %v5951 = vunpack.c.l.s4 1983009808
        %v5952 = vunpack.c.0.s8 %v5951
        %v5953 = vlaneseq
        %v5954 = vshrl.u32 %v5953, 7
        %v5955 = vsub.s32 %v5952, %v5954
        %v5956 = vrot.slane %v5942, %v5955
        %v5957 = vcombine.high %v5949, %v5949
        %v5958 = vcombine.high %v5956, %v5956
        %v5959 = vcombine.high %v582, %v582
        %v5961 = vunpack.c.l.s4 1983009808
        %v5962 = vunpack.c.0.s8 %v5961
        %v5963 = vlaneseq
        %v5964 = vshrl.u32 %v5963, 7
        %v5965 = vsub.s32 %v5962, %v5964
        %v5966 = vrot.slane %v582, %v5965
        %v5968 = vunpack.c.l.s4 1983009808
        %v5969 = vunpack.c.0.s8 %v5968
        %v5970 = vlaneseq
        %v5971 = vshrl.u32 %v5970, 7
        %v5972 = vsub.s32 %v5969, %v5971
        %v5973 = vrot.slane %v5959, %v5972
        %v5974 = vcombine.high %v5966, %v5966
        %v5975 = vcombine.high %v5973, %v5973
        %v5976 = vcombine.high %v585, %v585
        %v5978 = vunpack.c.l.s4 1983009808
        %v5979 = vunpack.c.0.s8 %v5978
        %v5980 = vlaneseq
        %v5981 = vshrl.u32 %v5980, 7
        %v5982 = vsub.s32 %v5979, %v5981
        %v5983 = vrot.slane %v585, %v5982
        %v5985 = vunpack.c.l.s4 1983009808
        %v5986 = vunpack.c.0.s8 %v5985
        %v5987 = vlaneseq
        %v5988 = vshrl.u32 %v5987, 7
        %v5989 = vsub.s32 %v5986, %v5988
        %v5990 = vrot.slane %v5976, %v5989
        %v5991 = vcombine.high %v5983, %v5983
        %v5992 = vcombine.high %v5990, %v5990
        %v5993 = vcombine.high %v586, %v586
        %v5995 = vunpack.c.l.s4 1983009808
        %v5996 = vunpack.c.0.s8 %v5995
        %v5997 = vlaneseq
        %v5998 = vshrl.u32 %v5997, 7
        %v5999 = vsub.s32 %v5996, %v5998
        %v6000 = vrot.slane %v586, %v5999
        %v6002 = vunpack.c.l.s4 1983009808
        %v6003 = vunpack.c.0.s8 %v6002
        %v6004 = vlaneseq
        %v6005 = vshrl.u32 %v6004, 7
        %v6006 = vsub.s32 %v6003, %v6005
        %v6007 = vrot.slane %v5993, %v6006
        %v6008 = vcombine.high %v6000, %v6000
        %v6009 = vcombine.high %v6007, %v6007
        %v6010 = vcombine.high %v589, %v589
        %v6012 = vunpack.c.l.s4 1983009808
        %v6013 = vunpack.c.0.s8 %v6012
        %v6014 = vlaneseq
        %v6015 = vshrl.u32 %v6014, 7
        %v6016 = vsub.s32 %v6013, %v6015
        %v6017 = vrot.slane %v589, %v6016
        %v6019 = vunpack.c.l.s4 1983009808
        %v6020 = vunpack.c.0.s8 %v6019
        %v6021 = vlaneseq
        %v6022 = vshrl.u32 %v6021, 7
        %v6023 = vsub.s32 %v6020, %v6022
        %v6024 = vrot.slane %v6010, %v6023
        %v6025 = vcombine.high %v6017, %v6017
        %v6026 = vcombine.high %v6024, %v6024
        %v6027 = vcombine.high %v590, %v590
        %v6029 = vunpack.c.l.s4 1983009808
        %v6030 = vunpack.c.0.s8 %v6029
        %v6031 = vlaneseq
        %v6032 = vshrl.u32 %v6031, 7
        %v6033 = vsub.s32 %v6030, %v6032
        %v6034 = vrot.slane %v590, %v6033
        %v6036 = vunpack.c.l.s4 1983009808
        %v6037 = vunpack.c.0.s8 %v6036
        %v6038 = vlaneseq
        %v6039 = vshrl.u32 %v6038, 7
        %v6040 = vsub.s32 %v6037, %v6039
        %v6041 = vrot.slane %v6027, %v6040
        %v6042 = vcombine.high %v6034, %v6034
        %v6043 = vcombine.high %v6041, %v6041
        %v6044 = vcombine.high %v593, %v593
        %v6046 = vunpack.c.l.s4 1983009808
        %v6047 = vunpack.c.0.s8 %v6046
        %v6048 = vlaneseq
        %v6049 = vshrl.u32 %v6048, 7
        %v6050 = vsub.s32 %v6047, %v6049
        %v6051 = vrot.slane %v593, %v6050
        %v6053 = vunpack.c.l.s4 1983009808
        %v6054 = vunpack.c.0.s8 %v6053
        %v6055 = vlaneseq
        %v6056 = vshrl.u32 %v6055, 7
        %v6057 = vsub.s32 %v6054, %v6056
        %v6058 = vrot.slane %v6044, %v6057
        %v6059 = vcombine.high %v6051, %v6051
        %v6060 = vcombine.high %v6058, %v6058
        %v6061 = vcombine.high %v594, %v594
        %v6063 = vunpack.c.l.s4 1983009808
        %v6064 = vunpack.c.0.s8 %v6063
        %v6065 = vlaneseq
        %v6066 = vshrl.u32 %v6065, 7
        %v6067 = vsub.s32 %v6064, %v6066
        %v6068 = vrot.slane %v594, %v6067
        %v6070 = vunpack.c.l.s4 1983009808
        %v6071 = vunpack.c.0.s8 %v6070
        %v6072 = vlaneseq
        %v6073 = vshrl.u32 %v6072, 7
        %v6074 = vsub.s32 %v6071, %v6073
        %v6075 = vrot.slane %v6061, %v6074
        %v6076 = vcombine.high %v6068, %v6068
        %v6077 = vcombine.high %v6075, %v6075
        %v6078 = vcombine.high %v597, %v597
        %v6080 = vunpack.c.l.s4 1983009808
        %v6081 = vunpack.c.0.s8 %v6080
        %v6082 = vlaneseq
        %v6083 = vshrl.u32 %v6082, 7
        %v6084 = vsub.s32 %v6081, %v6083
        %v6085 = vrot.slane %v597, %v6084
        %v6087 = vunpack.c.l.s4 1983009808
        %v6088 = vunpack.c.0.s8 %v6087
        %v6089 = vlaneseq
        %v6090 = vshrl.u32 %v6089, 7
        %v6091 = vsub.s32 %v6088, %v6090
        %v6092 = vrot.slane %v6078, %v6091
        %v6093 = vcombine.high %v6085, %v6085
        %v6094 = vcombine.high %v6092, %v6092
        %v6095 = vcombine.high %v598, %v598
        %v6097 = vunpack.c.l.s4 1983009808
        %v6098 = vunpack.c.0.s8 %v6097
        %v6099 = vlaneseq
        %v6100 = vshrl.u32 %v6099, 7
        %v6101 = vsub.s32 %v6098, %v6100
        %v6102 = vrot.slane %v598, %v6101
        %v6104 = vunpack.c.l.s4 1983009808
        %v6105 = vunpack.c.0.s8 %v6104
        %v6106 = vlaneseq
        %v6107 = vshrl.u32 %v6106, 7
        %v6108 = vsub.s32 %v6105, %v6107
        %v6109 = vrot.slane %v6095, %v6108
        %v6110 = vcombine.high %v6102, %v6102
        %v6111 = vcombine.high %v6109, %v6109
        %v6112 = vcombine.high %v601, %v601
        %v6114 = vunpack.c.l.s4 1983009808
        %v6115 = vunpack.c.0.s8 %v6114
        %v6116 = vlaneseq
        %v6117 = vshrl.u32 %v6116, 7
        %v6118 = vsub.s32 %v6115, %v6117
        %v6119 = vrot.slane %v601, %v6118
        %v6121 = vunpack.c.l.s4 1983009808
        %v6122 = vunpack.c.0.s8 %v6121
        %v6123 = vlaneseq
        %v6124 = vshrl.u32 %v6123, 7
        %v6125 = vsub.s32 %v6122, %v6124
        %v6126 = vrot.slane %v6112, %v6125
        %v6127 = vcombine.high %v6119, %v6119
        %v6128 = vcombine.high %v6126, %v6126
        %v6129 = vcombine.high %v602, %v602
        %v6131 = vunpack.c.l.s4 1983009808
        %v6132 = vunpack.c.0.s8 %v6131
        %v6133 = vlaneseq
        %v6134 = vshrl.u32 %v6133, 7
        %v6135 = vsub.s32 %v6132, %v6134
        %v6136 = vrot.slane %v602, %v6135
        %v6138 = vunpack.c.l.s4 1983009808
        %v6139 = vunpack.c.0.s8 %v6138
        %v6140 = vlaneseq
        %v6141 = vshrl.u32 %v6140, 7
        %v6142 = vsub.s32 %v6139, %v6141
        %v6143 = vrot.slane %v6129, %v6142
        %v6144 = vcombine.high %v6136, %v6136
        %v6145 = vcombine.high %v6143, %v6143
        %v6146 = vcombine.high %v605, %v605
        %v6148 = vunpack.c.l.s4 1983009808
        %v6149 = vunpack.c.0.s8 %v6148
        %v6150 = vlaneseq
        %v6151 = vshrl.u32 %v6150, 7
        %v6152 = vsub.s32 %v6149, %v6151
        %v6153 = vrot.slane %v605, %v6152
        %v6155 = vunpack.c.l.s4 1983009808
        %v6156 = vunpack.c.0.s8 %v6155
        %v6157 = vlaneseq
        %v6158 = vshrl.u32 %v6157, 7
        %v6159 = vsub.s32 %v6156, %v6158
        %v6160 = vrot.slane %v6146, %v6159
        %v6161 = vcombine.high %v6153, %v6153
        %v6162 = vcombine.high %v6160, %v6160
        %v6163 = vcombine.high %v606, %v606
        %v6165 = vunpack.c.l.s4 1983009808
        %v6166 = vunpack.c.0.s8 %v6165
        %v6167 = vlaneseq
        %v6168 = vshrl.u32 %v6167, 7
        %v6169 = vsub.s32 %v6166, %v6168
        %v6170 = vrot.slane %v606, %v6169
        %v6172 = vunpack.c.l.s4 1983009808
        %v6173 = vunpack.c.0.s8 %v6172
        %v6174 = vlaneseq
        %v6175 = vshrl.u32 %v6174, 7
        %v6176 = vsub.s32 %v6173, %v6175
        %v6177 = vrot.slane %v6163, %v6176
        %v6178 = vcombine.high %v6170, %v6170
        %v6179 = vcombine.high %v6177, %v6177
        %v6180 = vcombine.high %v609, %v609
        %v6182 = vunpack.c.l.s4 1983009808
        %v6183 = vunpack.c.0.s8 %v6182
        %v6184 = vlaneseq
        %v6185 = vshrl.u32 %v6184, 7
        %v6186 = vsub.s32 %v6183, %v6185
        %v6187 = vrot.slane %v609, %v6186
        %v6189 = vunpack.c.l.s4 1983009808
        %v6190 = vunpack.c.0.s8 %v6189
        %v6191 = vlaneseq
        %v6192 = vshrl.u32 %v6191, 7
        %v6193 = vsub.s32 %v6190, %v6192
        %v6194 = vrot.slane %v6180, %v6193
        %v6195 = vcombine.high %v6187, %v6187
        %v6196 = vcombine.high %v6194, %v6194
        %v6197 = vcombine.high %v610, %v610
        %v6199 = vunpack.c.l.s4 1983009808
        %v6200 = vunpack.c.0.s8 %v6199
        %v6201 = vlaneseq
        %v6202 = vshrl.u32 %v6201, 7
        %v6203 = vsub.s32 %v6200, %v6202
        %v6204 = vrot.slane %v610, %v6203
        %v6206 = vunpack.c.l.s4 1983009808
        %v6207 = vunpack.c.0.s8 %v6206
        %v6208 = vlaneseq
        %v6209 = vshrl.u32 %v6208, 7
        %v6210 = vsub.s32 %v6207, %v6209
        %v6211 = vrot.slane %v6197, %v6210
        %v6212 = vcombine.high %v6204, %v6204
        %v6213 = vcombine.high %v6211, %v6211
        %v6278 = vpack.c.bf16 %v5949, %v5949
        %v6279 = vpack.c.bf16 %v5957, %v5957
        %v6280 = vpack.c.bf16 %v5956, %v5956
        %v6281 = vpack.c.bf16 %v5958, %v5958
        %v6282 = vpack.c.bf16 %v5966, %v5966
        %v6283 = vpack.c.bf16 %v5974, %v5974
        %v6284 = vpack.c.bf16 %v5973, %v5973
        %v6285 = vpack.c.bf16 %v5975, %v5975
        %v6286 = vpack.c.bf16 %v5983, %v5983
        %v6287 = vpack.c.bf16 %v5991, %v5991
        %v6288 = vpack.c.bf16 %v5990, %v5990
        %v6289 = vpack.c.bf16 %v5992, %v5992
        %v6290 = vpack.c.bf16 %v6000, %v6000
        %v6291 = vpack.c.bf16 %v6008, %v6008
        %v6292 = vpack.c.bf16 %v6007, %v6007
        %v6293 = vpack.c.bf16 %v6009, %v6009
        %v6294 = vpack.c.bf16 %v6017, %v6017
        %v6295 = vpack.c.bf16 %v6025, %v6025
        %v6296 = vpack.c.bf16 %v6024, %v6024
        %v6297 = vpack.c.bf16 %v6026, %v6026
        %v6298 = vpack.c.bf16 %v6034, %v6034
        %v6299 = vpack.c.bf16 %v6042, %v6042
        %v6300 = vpack.c.bf16 %v6041, %v6041
        %v6301 = vpack.c.bf16 %v6043, %v6043
        %v6302 = vpack.c.bf16 %v6051, %v6051
        %v6303 = vpack.c.bf16 %v6059, %v6059
        %v6304 = vpack.c.bf16 %v6058, %v6058
        %v6305 = vpack.c.bf16 %v6060, %v6060
        %v6306 = vpack.c.bf16 %v6068, %v6068
        %v6307 = vpack.c.bf16 %v6076, %v6076
        %v6308 = vpack.c.bf16 %v6075, %v6075
        %v6309 = vpack.c.bf16 %v6077, %v6077
        %v6310 = vpack.c.bf16 %v6085, %v6085
        %v6311 = vpack.c.bf16 %v6093, %v6093
        %v6312 = vpack.c.bf16 %v6092, %v6092
        %v6313 = vpack.c.bf16 %v6094, %v6094
        %v6314 = vpack.c.bf16 %v6102, %v6102
        %v6315 = vpack.c.bf16 %v6110, %v6110
        %v6316 = vpack.c.bf16 %v6109, %v6109
        %v6317 = vpack.c.bf16 %v6111, %v6111
        %v6318 = vpack.c.bf16 %v6119, %v6119
        %v6319 = vpack.c.bf16 %v6127, %v6127
        %v6320 = vpack.c.bf16 %v6126, %v6126
        %v6321 = vpack.c.bf16 %v6128, %v6128
        %v6322 = vpack.c.bf16 %v6136, %v6136
        %v6323 = vpack.c.bf16 %v6144, %v6144
        %v6324 = vpack.c.bf16 %v6143, %v6143
        %v6325 = vpack.c.bf16 %v6145, %v6145
        %v6326 = vpack.c.bf16 %v6153, %v6153
        %v6327 = vpack.c.bf16 %v6161, %v6161
        %v6328 = vpack.c.bf16 %v6160, %v6160
        %v6329 = vpack.c.bf16 %v6162, %v6162
        %v6330 = vpack.c.bf16 %v6170, %v6170
        %v6331 = vpack.c.bf16 %v6178, %v6178
        %v6332 = vpack.c.bf16 %v6177, %v6177
        %v6333 = vpack.c.bf16 %v6179, %v6179
        %v6334 = vpack.c.bf16 %v6187, %v6187
        %v6335 = vpack.c.bf16 %v6195, %v6195
        %v6336 = vpack.c.bf16 %v6194, %v6194
        %v6337 = vpack.c.bf16 %v6196, %v6196
        %v6338 = vpack.c.bf16 %v6204, %v6204
        %v6339 = vpack.c.bf16 %v6212, %v6212
        %v6340 = vpack.c.bf16 %v6211, %v6211
        %v6341 = vpack.c.bf16 %v6213, %v6213
        %v6342 = vld [vmem:[#allocation17] sm:$0xf]
        %v6343 = vld [vmem:[#allocation17 + $0x4] sm:$0xf]
        %v6344 = vld [vmem:[#allocation17 + $0x8] sm:$0xf]
        %v6345 = vld [vmem:[#allocation17 + $0xc] sm:$0xf]
        %v6346 = vld [vmem:[#allocation17 + $0x10] sm:$0xf]
        %v6347 = vld [vmem:[#allocation17 + $0x14] sm:$0xf]
        %v6348 = vld [vmem:[#allocation17 + $0x18] sm:$0xf]
        %v6349 = vld [vmem:[#allocation17 + $0x1c] sm:$0xf]
        %v6350 = vld [vmem:[#allocation17 + $0x20] sm:$0xf]
        %v6351 = vld [vmem:[#allocation17 + $0x24] sm:$0xf]
        %v6352 = vld [vmem:[#allocation17 + $0x28] sm:$0xf]
        %v6353 = vld [vmem:[#allocation17 + $0x2c] sm:$0xf]
        %v6354 = vld [vmem:[#allocation17 + $0x30] sm:$0xf]
        %v6355 = vld [vmem:[#allocation17 + $0x34] sm:$0xf]
        %v6356 = vld [vmem:[#allocation17 + $0x38] sm:$0xf]
        %v6357 = vld [vmem:[#allocation17 + $0x3c] sm:$0xf]
        %v6422 = vunpack.c.l.b16 %v6278
        %v6423 = vunpack.c.l.b16 %v6279
        %v6424 = vunpack.c.l.b16 %v6280
        %v6425 = vunpack.c.l.b16 %v6281
        %v6426 = vunpack.c.l.b16 %v6282
        %v6427 = vunpack.c.l.b16 %v6283
        %v6428 = vunpack.c.l.b16 %v6284
        %v6429 = vunpack.c.l.b16 %v6285
        %v6430 = vunpack.c.l.b16 %v6286
        %v6431 = vunpack.c.l.b16 %v6287
        %v6432 = vunpack.c.l.b16 %v6288
        %v6433 = vunpack.c.l.b16 %v6289
        %v6434 = vunpack.c.l.b16 %v6290
        %v6435 = vunpack.c.l.b16 %v6291
        %v6436 = vunpack.c.l.b16 %v6292
        %v6437 = vunpack.c.l.b16 %v6293
        %v6438 = vunpack.c.l.b16 %v6294
        %v6439 = vunpack.c.l.b16 %v6295
        %v6440 = vunpack.c.l.b16 %v6296
        %v6441 = vunpack.c.l.b16 %v6297
        %v6442 = vunpack.c.l.b16 %v6298
        %v6443 = vunpack.c.l.b16 %v6299
        %v6444 = vunpack.c.l.b16 %v6300
        %v6445 = vunpack.c.l.b16 %v6301
        %v6446 = vunpack.c.l.b16 %v6302
        %v6447 = vunpack.c.l.b16 %v6303
        %v6448 = vunpack.c.l.b16 %v6304
        %v6449 = vunpack.c.l.b16 %v6305
        %v6450 = vunpack.c.l.b16 %v6306
        %v6451 = vunpack.c.l.b16 %v6307
        %v6452 = vunpack.c.l.b16 %v6308
        %v6453 = vunpack.c.l.b16 %v6309
        %v6454 = vunpack.c.l.b16 %v6310
        %v6455 = vunpack.c.l.b16 %v6311
        %v6456 = vunpack.c.l.b16 %v6312
        %v6457 = vunpack.c.l.b16 %v6313
        %v6458 = vunpack.c.l.b16 %v6314
        %v6459 = vunpack.c.l.b16 %v6315
        %v6460 = vunpack.c.l.b16 %v6316
        %v6461 = vunpack.c.l.b16 %v6317
        %v6462 = vunpack.c.l.b16 %v6318
        %v6463 = vunpack.c.l.b16 %v6319
        %v6464 = vunpack.c.l.b16 %v6320
        %v6465 = vunpack.c.l.b16 %v6321
        %v6466 = vunpack.c.l.b16 %v6322
        %v6467 = vunpack.c.l.b16 %v6323
        %v6468 = vunpack.c.l.b16 %v6324
        %v6469 = vunpack.c.l.b16 %v6325
        %v6470 = vunpack.c.l.b16 %v6326
        %v6471 = vunpack.c.l.b16 %v6327
        %v6472 = vunpack.c.l.b16 %v6328
        %v6473 = vunpack.c.l.b16 %v6329
        %v6474 = vunpack.c.l.b16 %v6330
        %v6475 = vunpack.c.l.b16 %v6331
        %v6476 = vunpack.c.l.b16 %v6332
        %v6477 = vunpack.c.l.b16 %v6333
        %v6478 = vunpack.c.l.b16 %v6334
        %v6479 = vunpack.c.l.b16 %v6335
        %v6480 = vunpack.c.l.b16 %v6336
        %v6481 = vunpack.c.l.b16 %v6337
        %v6482 = vunpack.c.l.b16 %v6338
        %v6483 = vunpack.c.l.b16 %v6339
        %v6484 = vunpack.c.l.b16 %v6340
        %v6485 = vunpack.c.l.b16 %v6341
        %v6486 = vrot.slane %v6423, 7
        %vm6487 = vcmask 1041409
        %v6488 = vsel %vm6487, %v6486, %v6422
        %v6489 = vrot.slane %v6424, 6
        %vm6490 = vcmask 1042434
        %v6491 = vsel %vm6490, %v6489, %v6488
        %v6492 = vrot.slane %v6425, 5
        %vm6493 = vcmask 1043459
        %v6494 = vsel %vm6493, %v6492, %v6491
        %v6495 = vrot.slane %v6426, 4
        %vm6496 = vcmask 1044484
        %v6497 = vsel %vm6496, %v6495, %v6494
        %v6498 = vrot.slane %v6427, 3
        %vm6499 = vcmask 1045509
        %v6500 = vsel %vm6499, %v6498, %v6497
        %v6501 = vrot.slane %v6428, 2
        %vm6502 = vcmask 1046534
        %v6503 = vsel %vm6502, %v6501, %v6500
        %v6504 = vrot.slane %v6429, 1
        %vm6505 = vcmask 1047559
        %v6506 = vsel %vm6505, %v6504, %v6503
        %v6507 = vrot.slane %v6431, 7
        %v6508 = vsel %vm6487, %v6507, %v6430
        %v6509 = vrot.slane %v6432, 6
        %v6510 = vsel %vm6490, %v6509, %v6508
        %v6511 = vrot.slane %v6433, 5
        %v6512 = vsel %vm6493, %v6511, %v6510
        %v6513 = vrot.slane %v6434, 4
        %v6514 = vsel %vm6496, %v6513, %v6512
        %v6515 = vrot.slane %v6435, 3
        %v6516 = vsel %vm6499, %v6515, %v6514
        %v6517 = vrot.slane %v6436, 2
        %v6518 = vsel %vm6502, %v6517, %v6516
        %v6519 = vrot.slane %v6437, 1
        %v6520 = vsel %vm6505, %v6519, %v6518
        %v6521 = vrot.slane %v6439, 7
        %v6522 = vsel %vm6487, %v6521, %v6438
        %v6523 = vrot.slane %v6440, 6
        %v6524 = vsel %vm6490, %v6523, %v6522
        %v6525 = vrot.slane %v6441, 5
        %v6526 = vsel %vm6493, %v6525, %v6524
        %v6527 = vrot.slane %v6442, 4
        %v6528 = vsel %vm6496, %v6527, %v6526
        %v6529 = vrot.slane %v6443, 3
        %v6530 = vsel %vm6499, %v6529, %v6528
        %v6531 = vrot.slane %v6444, 2
        %v6532 = vsel %vm6502, %v6531, %v6530
        %v6533 = vrot.slane %v6445, 1
        %v6534 = vsel %vm6505, %v6533, %v6532
        %v6535 = vrot.slane %v6447, 7
        %v6536 = vsel %vm6487, %v6535, %v6446
        %v6537 = vrot.slane %v6448, 6
        %v6538 = vsel %vm6490, %v6537, %v6536
        %v6539 = vrot.slane %v6449, 5
        %v6540 = vsel %vm6493, %v6539, %v6538
        %v6541 = vrot.slane %v6450, 4
        %v6542 = vsel %vm6496, %v6541, %v6540
        %v6543 = vrot.slane %v6451, 3
        %v6544 = vsel %vm6499, %v6543, %v6542
        %v6545 = vrot.slane %v6452, 2
        %v6546 = vsel %vm6502, %v6545, %v6544
        %v6547 = vrot.slane %v6453, 1
        %v6548 = vsel %vm6505, %v6547, %v6546
        %v6549 = vrot.slane %v6455, 7
        %v6550 = vsel %vm6487, %v6549, %v6454
        %v6551 = vrot.slane %v6456, 6
        %v6552 = vsel %vm6490, %v6551, %v6550
        %v6553 = vrot.slane %v6457, 5
        %v6554 = vsel %vm6493, %v6553, %v6552
        %v6555 = vrot.slane %v6458, 4
        %v6556 = vsel %vm6496, %v6555, %v6554
        %v6557 = vrot.slane %v6459, 3
        %v6558 = vsel %vm6499, %v6557, %v6556
        %v6559 = vrot.slane %v6460, 2
        %v6560 = vsel %vm6502, %v6559, %v6558
        %v6561 = vrot.slane %v6461, 1
        %v6562 = vsel %vm6505, %v6561, %v6560
        %v6563 = vrot.slane %v6463, 7
        %v6564 = vsel %vm6487, %v6563, %v6462
        %v6565 = vrot.slane %v6464, 6
        %v6566 = vsel %vm6490, %v6565, %v6564
        %v6567 = vrot.slane %v6465, 5
        %v6568 = vsel %vm6493, %v6567, %v6566
        %v6569 = vrot.slane %v6466, 4
        %v6570 = vsel %vm6496, %v6569, %v6568
        %v6571 = vrot.slane %v6467, 3
        %v6572 = vsel %vm6499, %v6571, %v6570
        %v6573 = vrot.slane %v6468, 2
        %v6574 = vsel %vm6502, %v6573, %v6572
        %v6575 = vrot.slane %v6469, 1
        %v6576 = vsel %vm6505, %v6575, %v6574
        %v6577 = vrot.slane %v6471, 7
        %v6578 = vsel %vm6487, %v6577, %v6470
        %v6579 = vrot.slane %v6472, 6
        %v6580 = vsel %vm6490, %v6579, %v6578
        %v6581 = vrot.slane %v6473, 5
        %v6582 = vsel %vm6493, %v6581, %v6580
        %v6583 = vrot.slane %v6474, 4
        %v6584 = vsel %vm6496, %v6583, %v6582
        %v6585 = vrot.slane %v6475, 3
        %v6586 = vsel %vm6499, %v6585, %v6584
        %v6587 = vrot.slane %v6476, 2
        %v6588 = vsel %vm6502, %v6587, %v6586
        %v6589 = vrot.slane %v6477, 1
        %v6590 = vsel %vm6505, %v6589, %v6588
        %v6591 = vrot.slane %v6479, 7
        %v6592 = vsel %vm6487, %v6591, %v6478
        %v6593 = vrot.slane %v6480, 6
        %v6594 = vsel %vm6490, %v6593, %v6592
        %v6595 = vrot.slane %v6481, 5
        %v6596 = vsel %vm6493, %v6595, %v6594
        %v6597 = vrot.slane %v6482, 4
        %v6598 = vsel %vm6496, %v6597, %v6596
        %v6599 = vrot.slane %v6483, 3
        %v6600 = vsel %vm6499, %v6599, %v6598
        %v6601 = vrot.slane %v6484, 2
        %v6602 = vsel %vm6502, %v6601, %v6600
        %v6603 = vrot.slane %v6485, 1
        %v6604 = vsel %vm6505, %v6603, %v6602
        %v6605 = vpack.c.b16 %v6520, %v6506
        %v6606 = vpack.c.b16 %v6548, %v6534
        %v6607 = vpack.c.b16 %v6576, %v6562
        %v6608 = vpack.c.b16 %v6604, %v6590
        %v6629 = vunpack.c.l.b16 %v6342
        %v6630 = vunpack.c.l.b16 %v6343
        %v6631 = vunpack.c.l.b16 %v6344
        %v6632 = vunpack.c.l.b16 %v6345
        %v6633 = vunpack.c.l.b16 %v6346
        %v6634 = vunpack.c.l.b16 %v6347
        %v6635 = vunpack.c.l.b16 %v6348
        %v6636 = vunpack.c.l.b16 %v6349
        %v6637 = vunpack.c.l.b16 %v6350
        %v6638 = vunpack.c.l.b16 %v6351
        %v6639 = vunpack.c.l.b16 %v6352
        %v6640 = vunpack.c.l.b16 %v6353
        %v6641 = vunpack.c.l.b16 %v6354
        %v6642 = vunpack.c.l.b16 %v6355
        %v6643 = vunpack.c.l.b16 %v6356
        %v6644 = vunpack.c.l.b16 %v6357
        %v6645 = vpack.c.b16 %v6630, %v6629
        %v6646 = vpack.c.b16 %v6632, %v6631
        %v6647 = vpack.c.b16 %v6634, %v6633
        %v6648 = vpack.c.b16 %v6636, %v6635
        %v6649 = vpack.c.b16 %v6638, %v6637
        %v6650 = vpack.c.b16 %v6640, %v6639
        %v6651 = vpack.c.b16 %v6642, %v6641
        %v6652 = vpack.c.b16 %v6644, %v6643
        %6661 = vmatprep.subr.bf16.mxu0 0
        %6662 = vmatpush1.bf16.msra.mxu0 %v6645
        %6663 = vmatprep.subr.bf16.mxu0 0
        %6664 = vmatpush1.bf16.msra.mxu0 %v6646
        %6665 = vmatprep.subr.bf16.mxu0 0
        %6666 = vmatpush1.bf16.msra.mxu0 %v6647
        %6667 = vmatprep.subr.bf16.mxu0 0
        %6668 = vmatpush1.bf16.msra.mxu0 %v6648
        %6669 = vmatprep.subr.bf16.mxu0 0
        %6670 = vmatpush1.bf16.msra.mxu0 %v6649
        %6671 = vmatprep.subr.bf16.mxu0 0
        %6672 = vmatpush1.bf16.msra.mxu0 %v6650
        %6673 = vmatprep.subr.bf16.mxu0 0
        %6674 = vmatpush1.bf16.msra.mxu0 %v6651
        %6675 = vmatprep.subr.bf16.mxu0 0
        %6676 = vmatpush1.bf16.msra.mxu0 %v6652
        %6677 = vmatprep.subr.bf16.mxu0 0
        %6678 = vmatpush1.bf16.msra.mxu0 0
        %6679 = vmatprep.subr.bf16.mxu0 0
        %6680 = vmatpush1.bf16.msra.mxu0 0
        %6681 = vmatprep.subr.bf16.mxu0 0
        %6682 = vmatpush1.bf16.msra.mxu0 0
        %6683 = vmatprep.subr.bf16.mxu0 0
        %6684 = vmatpush1.bf16.msra.mxu0 0
        %6685 = vmatprep.subr.bf16.mxu0 0
        %6686 = vmatpush1.bf16.msra.mxu0 0
        %6687 = vmatprep.subr.bf16.mxu0 0
        %6688 = vmatpush1.bf16.msra.mxu0 0
        %6689 = vmatprep.subr.bf16.mxu0 0
        %6690 = vmatpush1.bf16.msra.mxu0 0
        %6691 = vmatprep.subr.bf16.mxu0 0
        %6692 = vmatpush1.bf16.msra.mxu0 0
        %6693 = vmatprep.mubr.bf16.mxu0 0
        %6694 = vmatmul.mubr.bf16.gmra.mrb[0].mxu0 %v6605
        %v6695 = vpop.f32.mrb[0].mxu0
        %v6696 = vadd.f32 0.0, %v6695
        %v6697 = vpop.f32.mrb[0].mxu0
        %v6698 = vpop.f32.mrb[0].mxu0
        %v6699 = vadd.f32 0.0, %v6698
        %v6700 = vpop.f32.mrb[0].mxu0
        %6701 = vmatprep.mubr.bf16.mxu0 0
        %6702 = vmatmul.mubr.bf16.gmra.mrb[0].mxu0 %v6606
        %v6703 = vpop.f32.mrb[0].mxu0
        %v6704 = vadd.f32 0.0, %v6703
        %v6705 = vpop.f32.mrb[0].mxu0
        %v6706 = vpop.f32.mrb[0].mxu0
        %v6707 = vadd.f32 0.0, %v6706
        %v6708 = vpop.f32.mrb[0].mxu0
        %6709 = vmatprep.mubr.bf16.mxu0 0
        %6710 = vmatmul.mubr.bf16.gmra.mrb[0].mxu0 %v6607
        %v6711 = vpop.f32.mrb[0].mxu0
        %v6712 = vadd.f32 0.0, %v6711
        %v6713 = vpop.f32.mrb[0].mxu0
        %v6714 = vpop.f32.mrb[0].mxu0
        %v6715 = vadd.f32 0.0, %v6714
        %v6716 = vpop.f32.mrb[0].mxu0
        %6717 = vmatprep.mubr.bf16.mxu0 0
        %6718 = vmatmul.mubr.bf16.gmra.mrb[0].mxu0 %v6608
        %v6719 = vpop.f32.mrb[0].mxu0
        %v6720 = vadd.f32 0.0, %v6719
        %v6721 = vpop.f32.mrb[0].mxu0
        %v6722 = vpop.f32.mrb[0].mxu0
        %v6723 = vadd.f32 0.0, %v6722
        %v6724 = vpop.f32.mrb[0].mxu0
        %6725 = vdwg.mxu0
        %v6726 = vld [vmem:[#allocation19] sm:$0x1]
        %v6728 = vlaneseq
        %v6729 = vshrl.u32 %v6728, 7
        %v6730 = vsub.s32 0, %v6729
        %v6731 = vrot.slane %v6726, %v6730
        %v6733 = vmul.f32 %v6696, %v6731
        %v6734 = vmul.f32 %v6699, %v6731
        %v6735 = vmul.f32 %v6704, %v6731
        %v6736 = vmul.f32 %v6707, %v6731
        %v6737 = vmul.f32 %v6712, %v6731
        %v6738 = vmul.f32 %v6715, %v6731
        %v6739 = vmul.f32 %v6720, %v6731
        %v6740 = vmul.f32 %v6723, %v6731
        %v6741 = vld [vmem:[#allocation20] sm:$0x1]
        %v6743 = vlaneseq
        %v6744 = vshrl.u32 %v6743, 7
        %v6745 = vsub.s32 0, %v6744
        %v6746 = vrot.slane %v6741, %v6745
        %v6748 = vadd.f32 %v6733, %v6746
        %v6749 = vadd.f32 %v6734, %v6746
        %v6750 = vadd.f32 %v6735, %v6746
        %v6751 = vadd.f32 %v6736, %v6746
        %v6752 = vadd.f32 %v6737, %v6746
        %v6753 = vadd.f32 %v6738, %v6746
        %v6754 = vadd.f32 %v6739, %v6746
        %v6755 = vadd.f32 %v6740, %v6746
        %v6764 = vcombine.high %v6748, %v6748
        %v6766 = vunpack.c.l.s4 1983009808
        %v6767 = vunpack.c.0.s8 %v6766
        %v6768 = vlaneseq
        %v6769 = vshrl.u32 %v6768, 7
        %v6770 = vsub.s32 %v6767, %v6769
        %v6771 = vrot.slane %v6748, %v6770
        %v6773 = vunpack.c.l.s4 1983009808
        %v6774 = vunpack.c.0.s8 %v6773
        %v6775 = vlaneseq
        %v6776 = vshrl.u32 %v6775, 7
        %v6777 = vsub.s32 %v6774, %v6776
        %v6778 = vrot.slane %v6764, %v6777
        %v6779 = vcombine.high %v6771, %v6771
        %v6780 = vcombine.high %v6778, %v6778
        %v6781 = vcombine.high %v6749, %v6749
        %v6783 = vunpack.c.l.s4 1983009808
        %v6784 = vunpack.c.0.s8 %v6783
        %v6785 = vlaneseq
        %v6786 = vshrl.u32 %v6785, 7
        %v6787 = vsub.s32 %v6784, %v6786
        %v6788 = vrot.slane %v6749, %v6787
        %v6790 = vunpack.c.l.s4 1983009808
        %v6791 = vunpack.c.0.s8 %v6790
        %v6792 = vlaneseq
        %v6793 = vshrl.u32 %v6792, 7
        %v6794 = vsub.s32 %v6791, %v6793
        %v6795 = vrot.slane %v6781, %v6794
        %v6796 = vcombine.high %v6788, %v6788
        %v6797 = vcombine.high %v6795, %v6795
        %v6798 = vcombine.high %v6750, %v6750
        %v6800 = vunpack.c.l.s4 1983009808
        %v6801 = vunpack.c.0.s8 %v6800
        %v6802 = vlaneseq
        %v6803 = vshrl.u32 %v6802, 7
        %v6804 = vsub.s32 %v6801, %v6803
        %v6805 = vrot.slane %v6750, %v6804
        %v6807 = vunpack.c.l.s4 1983009808
        %v6808 = vunpack.c.0.s8 %v6807
        %v6809 = vlaneseq
        %v6810 = vshrl.u32 %v6809, 7
        %v6811 = vsub.s32 %v6808, %v6810
        %v6812 = vrot.slane %v6798, %v6811
        %v6813 = vcombine.high %v6805, %v6805
        %v6814 = vcombine.high %v6812, %v6812
        %v6815 = vcombine.high %v6751, %v6751
        %v6817 = vunpack.c.l.s4 1983009808
        %v6818 = vunpack.c.0.s8 %v6817
        %v6819 = vlaneseq
        %v6820 = vshrl.u32 %v6819, 7
        %v6821 = vsub.s32 %v6818, %v6820
        %v6822 = vrot.slane %v6751, %v6821
        %v6824 = vunpack.c.l.s4 1983009808
        %v6825 = vunpack.c.0.s8 %v6824
        %v6826 = vlaneseq
        %v6827 = vshrl.u32 %v6826, 7
        %v6828 = vsub.s32 %v6825, %v6827
        %v6829 = vrot.slane %v6815, %v6828
        %v6830 = vcombine.high %v6822, %v6822
        %v6831 = vcombine.high %v6829, %v6829
        %v6832 = vcombine.high %v6752, %v6752
        %v6834 = vunpack.c.l.s4 1983009808
        %v6835 = vunpack.c.0.s8 %v6834
        %v6836 = vlaneseq
        %v6837 = vshrl.u32 %v6836, 7
        %v6838 = vsub.s32 %v6835, %v6837
        %v6839 = vrot.slane %v6752, %v6838
        %v6841 = vunpack.c.l.s4 1983009808
        %v6842 = vunpack.c.0.s8 %v6841
        %v6843 = vlaneseq
        %v6844 = vshrl.u32 %v6843, 7
        %v6845 = vsub.s32 %v6842, %v6844
        %v6846 = vrot.slane %v6832, %v6845
        %v6847 = vcombine.high %v6839, %v6839
        %v6848 = vcombine.high %v6846, %v6846
        %v6849 = vcombine.high %v6753, %v6753
        %v6851 = vunpack.c.l.s4 1983009808
        %v6852 = vunpack.c.0.s8 %v6851
        %v6853 = vlaneseq
        %v6854 = vshrl.u32 %v6853, 7
        %v6855 = vsub.s32 %v6852, %v6854
        %v6856 = vrot.slane %v6753, %v6855
        %v6858 = vunpack.c.l.s4 1983009808
        %v6859 = vunpack.c.0.s8 %v6858
        %v6860 = vlaneseq
        %v6861 = vshrl.u32 %v6860, 7
        %v6862 = vsub.s32 %v6859, %v6861
        %v6863 = vrot.slane %v6849, %v6862
        %v6864 = vcombine.high %v6856, %v6856
        %v6865 = vcombine.high %v6863, %v6863
        %v6866 = vcombine.high %v6754, %v6754
        %v6868 = vunpack.c.l.s4 1983009808
        %v6869 = vunpack.c.0.s8 %v6868
        %v6870 = vlaneseq
        %v6871 = vshrl.u32 %v6870, 7
        %v6872 = vsub.s32 %v6869, %v6871
        %v6873 = vrot.slane %v6754, %v6872
        %v6875 = vunpack.c.l.s4 1983009808
        %v6876 = vunpack.c.0.s8 %v6875
        %v6877 = vlaneseq
        %v6878 = vshrl.u32 %v6877, 7
        %v6879 = vsub.s32 %v6876, %v6878
        %v6880 = vrot.slane %v6866, %v6879
        %v6881 = vcombine.high %v6873, %v6873
        %v6882 = vcombine.high %v6880, %v6880
        %v6883 = vcombine.high %v6755, %v6755
        %v6885 = vunpack.c.l.s4 1983009808
        %v6886 = vunpack.c.0.s8 %v6885
        %v6887 = vlaneseq
        %v6888 = vshrl.u32 %v6887, 7
        %v6889 = vsub.s32 %v6886, %v6888
        %v6890 = vrot.slane %v6755, %v6889
        %v6892 = vunpack.c.l.s4 1983009808
        %v6893 = vunpack.c.0.s8 %v6892
        %v6894 = vlaneseq
        %v6895 = vshrl.u32 %v6894, 7
        %v6896 = vsub.s32 %v6893, %v6895
        %v6897 = vrot.slane %v6883, %v6896
        %v6898 = vcombine.high %v6890, %v6890
        %v6899 = vcombine.high %v6897, %v6897
        %v6900 = vrot.slane %v6771, 1
        %v6901 = vrot.slane %v6779, 1
        %v6902 = vrot.slane %v6778, 1
        %v6903 = vrot.slane %v6780, 1
        %v6904 = vrot.slane %v6788, 1
        %v6905 = vrot.slane %v6796, 1
        %v6906 = vrot.slane %v6795, 1
        %v6907 = vrot.slane %v6797, 1
        %v6908 = vrot.slane %v6805, 1
        %v6909 = vrot.slane %v6813, 1
        %v6910 = vrot.slane %v6812, 1
        %v6911 = vrot.slane %v6814, 1
        %v6912 = vrot.slane %v6822, 1
        %v6913 = vrot.slane %v6830, 1
        %v6914 = vrot.slane %v6829, 1
        %v6915 = vrot.slane %v6831, 1
        %v6916 = vrot.slane %v6839, 1
        %v6917 = vrot.slane %v6847, 1
        %v6918 = vrot.slane %v6846, 1
        %v6919 = vrot.slane %v6848, 1
        %v6920 = vrot.slane %v6856, 1
        %v6921 = vrot.slane %v6864, 1
        %v6922 = vrot.slane %v6863, 1
        %v6923 = vrot.slane %v6865, 1
        %v6924 = vrot.slane %v6873, 1
        %v6925 = vrot.slane %v6881, 1
        %v6926 = vrot.slane %v6880, 1
        %v6927 = vrot.slane %v6882, 1
        %v6928 = vrot.slane %v6890, 1
        %v6929 = vrot.slane %v6898, 1
        %v6930 = vrot.slane %v6897, 1
        %v6931 = vrot.slane %v6899, 1
        %v6996 = vadd.f32 %v5597, %v6771
        %v6997 = vadd.f32 %v5605, %v6900
        %v6998 = vadd.f32 %v5604, %v6779
        %v6999 = vadd.f32 %v5606, %v6901
        %v7000 = vadd.f32 %v5614, %v6778
        %v7001 = vadd.f32 %v5622, %v6902
        %v7002 = vadd.f32 %v5621, %v6780
        %v7003 = vadd.f32 %v5623, %v6903
        %v7004 = vadd.f32 %v5631, %v6788
        %v7005 = vadd.f32 %v5639, %v6904
        %v7006 = vadd.f32 %v5638, %v6796
        %v7007 = vadd.f32 %v5640, %v6905
        %v7008 = vadd.f32 %v5648, %v6795
        %v7009 = vadd.f32 %v5656, %v6906
        %v7010 = vadd.f32 %v5655, %v6797
        %v7011 = vadd.f32 %v5657, %v6907
        %v7012 = vadd.f32 %v5665, %v6805
        %v7013 = vadd.f32 %v5673, %v6908
        %v7014 = vadd.f32 %v5672, %v6813
        %v7015 = vadd.f32 %v5674, %v6909
        %v7016 = vadd.f32 %v5682, %v6812
        %v7017 = vadd.f32 %v5690, %v6910
        %v7018 = vadd.f32 %v5689, %v6814
        %v7019 = vadd.f32 %v5691, %v6911
        %v7020 = vadd.f32 %v5699, %v6822
        %v7021 = vadd.f32 %v5707, %v6912
        %v7022 = vadd.f32 %v5706, %v6830
        %v7023 = vadd.f32 %v5708, %v6913
        %v7024 = vadd.f32 %v5716, %v6829
        %v7025 = vadd.f32 %v5724, %v6914
        %v7026 = vadd.f32 %v5723, %v6831
        %v7027 = vadd.f32 %v5725, %v6915
        %v7028 = vadd.f32 %v5733, %v6839
        %v7029 = vadd.f32 %v5741, %v6916
        %v7030 = vadd.f32 %v5740, %v6847
        %v7031 = vadd.f32 %v5742, %v6917
        %v7032 = vadd.f32 %v5750, %v6846
        %v7033 = vadd.f32 %v5758, %v6918
        %v7034 = vadd.f32 %v5757, %v6848
        %v7035 = vadd.f32 %v5759, %v6919
        %v7036 = vadd.f32 %v5767, %v6856
        %v7037 = vadd.f32 %v5775, %v6920
        %v7038 = vadd.f32 %v5774, %v6864
        %v7039 = vadd.f32 %v5776, %v6921
        %v7040 = vadd.f32 %v5784, %v6863
        %v7041 = vadd.f32 %v5792, %v6922
        %v7042 = vadd.f32 %v5791, %v6865
        %v7043 = vadd.f32 %v5793, %v6923
        %v7044 = vadd.f32 %v5801, %v6873
        %v7045 = vadd.f32 %v5809, %v6924
        %v7046 = vadd.f32 %v5808, %v6881
        %v7047 = vadd.f32 %v5810, %v6925
        %v7048 = vadd.f32 %v5818, %v6880
        %v7049 = vadd.f32 %v5826, %v6926
        %v7050 = vadd.f32 %v5825, %v6882
        %v7051 = vadd.f32 %v5827, %v6927
        %v7052 = vadd.f32 %v5835, %v6890
        %v7053 = vadd.f32 %v5843, %v6928
        %v7054 = vadd.f32 %v5842, %v6898
        %v7055 = vadd.f32 %v5844, %v6929
        %v7056 = vadd.f32 %v5852, %v6897
        %v7057 = vadd.f32 %v5860, %v6930
        %v7058 = vadd.f32 %v5859, %v6899
        %v7059 = vadd.f32 %v5861, %v6931
        %v7124 = vlaneseq
        %v7125 = vshrl.u32 %v7124, 7
        %v7126 = vsub.s32 0, %v7125
        %v7127 = vrot.slane %v6996, %v7126
        %v7128 = vlaneseq
        %v7129 = vshrl.u32 %v7128, 7
        %v7130 = vsub.s32 0, %v7129
        %v7131 = vrot.slane %v6997, %v7130
        %v7132 = vlaneseq
        %v7133 = vshrl.u32 %v7132, 7
        %v7134 = vsub.s32 0, %v7133
        %v7135 = vrot.slane %v6998, %v7134
        %v7136 = vlaneseq
        %v7137 = vshrl.u32 %v7136, 7
        %v7138 = vsub.s32 0, %v7137
        %v7139 = vrot.slane %v6999, %v7138
        %v7140 = vlaneseq
        %v7141 = vshrl.u32 %v7140, 7
        %v7142 = vsub.s32 0, %v7141
        %v7143 = vrot.slane %v7000, %v7142
        %v7144 = vlaneseq
        %v7145 = vshrl.u32 %v7144, 7
        %v7146 = vsub.s32 0, %v7145
        %v7147 = vrot.slane %v7001, %v7146
        %v7148 = vlaneseq
        %v7149 = vshrl.u32 %v7148, 7
        %v7150 = vsub.s32 0, %v7149
        %v7151 = vrot.slane %v7002, %v7150
        %v7152 = vlaneseq
        %v7153 = vshrl.u32 %v7152, 7
        %v7154 = vsub.s32 0, %v7153
        %v7155 = vrot.slane %v7003, %v7154
        %v7156 = vlaneseq
        %v7157 = vshrl.u32 %v7156, 7
        %v7158 = vsub.s32 0, %v7157
        %v7159 = vrot.slane %v7004, %v7158
        %v7160 = vlaneseq
        %v7161 = vshrl.u32 %v7160, 7
        %v7162 = vsub.s32 0, %v7161
        %v7163 = vrot.slane %v7005, %v7162
        %v7164 = vlaneseq
        %v7165 = vshrl.u32 %v7164, 7
        %v7166 = vsub.s32 0, %v7165
        %v7167 = vrot.slane %v7006, %v7166
        %v7168 = vlaneseq
        %v7169 = vshrl.u32 %v7168, 7
        %v7170 = vsub.s32 0, %v7169
        %v7171 = vrot.slane %v7007, %v7170
        %v7172 = vlaneseq
        %v7173 = vshrl.u32 %v7172, 7
        %v7174 = vsub.s32 0, %v7173
        %v7175 = vrot.slane %v7008, %v7174
        %v7176 = vlaneseq
        %v7177 = vshrl.u32 %v7176, 7
        %v7178 = vsub.s32 0, %v7177
        %v7179 = vrot.slane %v7009, %v7178
        %v7180 = vlaneseq
        %v7181 = vshrl.u32 %v7180, 7
        %v7182 = vsub.s32 0, %v7181
        %v7183 = vrot.slane %v7010, %v7182
        %v7184 = vlaneseq
        %v7185 = vshrl.u32 %v7184, 7
        %v7186 = vsub.s32 0, %v7185
        %v7187 = vrot.slane %v7011, %v7186
        %v7188 = vlaneseq
        %v7189 = vshrl.u32 %v7188, 7
        %v7190 = vsub.s32 0, %v7189
        %v7191 = vrot.slane %v7012, %v7190
        %v7192 = vlaneseq
        %v7193 = vshrl.u32 %v7192, 7
        %v7194 = vsub.s32 0, %v7193
        %v7195 = vrot.slane %v7013, %v7194
        %v7196 = vlaneseq
        %v7197 = vshrl.u32 %v7196, 7
        %v7198 = vsub.s32 0, %v7197
        %v7199 = vrot.slane %v7014, %v7198
        %v7200 = vlaneseq
        %v7201 = vshrl.u32 %v7200, 7
        %v7202 = vsub.s32 0, %v7201
        %v7203 = vrot.slane %v7015, %v7202
        %v7204 = vlaneseq
        %v7205 = vshrl.u32 %v7204, 7
        %v7206 = vsub.s32 0, %v7205
        %v7207 = vrot.slane %v7016, %v7206
        %v7208 = vlaneseq
        %v7209 = vshrl.u32 %v7208, 7
        %v7210 = vsub.s32 0, %v7209
        %v7211 = vrot.slane %v7017, %v7210
        %v7212 = vlaneseq
        %v7213 = vshrl.u32 %v7212, 7
        %v7214 = vsub.s32 0, %v7213
        %v7215 = vrot.slane %v7018, %v7214
        %v7216 = vlaneseq
        %v7217 = vshrl.u32 %v7216, 7
        %v7218 = vsub.s32 0, %v7217
        %v7219 = vrot.slane %v7019, %v7218
        %v7220 = vlaneseq
        %v7221 = vshrl.u32 %v7220, 7
        %v7222 = vsub.s32 0, %v7221
        %v7223 = vrot.slane %v7020, %v7222
        %v7224 = vlaneseq
        %v7225 = vshrl.u32 %v7224, 7
        %v7226 = vsub.s32 0, %v7225
        %v7227 = vrot.slane %v7021, %v7226
        %v7228 = vlaneseq
        %v7229 = vshrl.u32 %v7228, 7
        %v7230 = vsub.s32 0, %v7229
        %v7231 = vrot.slane %v7022, %v7230
        %v7232 = vlaneseq
        %v7233 = vshrl.u32 %v7232, 7
        %v7234 = vsub.s32 0, %v7233
        %v7235 = vrot.slane %v7023, %v7234
        %v7236 = vlaneseq
        %v7237 = vshrl.u32 %v7236, 7
        %v7238 = vsub.s32 0, %v7237
        %v7239 = vrot.slane %v7024, %v7238
        %v7240 = vlaneseq
        %v7241 = vshrl.u32 %v7240, 7
        %v7242 = vsub.s32 0, %v7241
        %v7243 = vrot.slane %v7025, %v7242
        %v7244 = vlaneseq
        %v7245 = vshrl.u32 %v7244, 7
        %v7246 = vsub.s32 0, %v7245
        %v7247 = vrot.slane %v7026, %v7246
        %v7248 = vlaneseq
        %v7249 = vshrl.u32 %v7248, 7
        %v7250 = vsub.s32 0, %v7249
        %v7251 = vrot.slane %v7027, %v7250
        %v7252 = vlaneseq
        %v7253 = vshrl.u32 %v7252, 7
        %v7254 = vsub.s32 0, %v7253
        %v7255 = vrot.slane %v7028, %v7254
        %v7256 = vlaneseq
        %v7257 = vshrl.u32 %v7256, 7
        %v7258 = vsub.s32 0, %v7257
        %v7259 = vrot.slane %v7029, %v7258
        %v7260 = vlaneseq
        %v7261 = vshrl.u32 %v7260, 7
        %v7262 = vsub.s32 0, %v7261
        %v7263 = vrot.slane %v7030, %v7262
        %v7264 = vlaneseq
        %v7265 = vshrl.u32 %v7264, 7
        %v7266 = vsub.s32 0, %v7265
        %v7267 = vrot.slane %v7031, %v7266
        %v7268 = vlaneseq
        %v7269 = vshrl.u32 %v7268, 7
        %v7270 = vsub.s32 0, %v7269
        %v7271 = vrot.slane %v7032, %v7270
        %v7272 = vlaneseq
        %v7273 = vshrl.u32 %v7272, 7
        %v7274 = vsub.s32 0, %v7273
        %v7275 = vrot.slane %v7033, %v7274
        %v7276 = vlaneseq
        %v7277 = vshrl.u32 %v7276, 7
        %v7278 = vsub.s32 0, %v7277
        %v7279 = vrot.slane %v7034, %v7278
        %v7280 = vlaneseq
        %v7281 = vshrl.u32 %v7280, 7
        %v7282 = vsub.s32 0, %v7281
        %v7283 = vrot.slane %v7035, %v7282
        %v7284 = vlaneseq
        %v7285 = vshrl.u32 %v7284, 7
        %v7286 = vsub.s32 0, %v7285
        %v7287 = vrot.slane %v7036, %v7286
        %v7288 = vlaneseq
        %v7289 = vshrl.u32 %v7288, 7
        %v7290 = vsub.s32 0, %v7289
        %v7291 = vrot.slane %v7037, %v7290
        %v7292 = vlaneseq
        %v7293 = vshrl.u32 %v7292, 7
        %v7294 = vsub.s32 0, %v7293
        %v7295 = vrot.slane %v7038, %v7294
        %v7296 = vlaneseq
        %v7297 = vshrl.u32 %v7296, 7
        %v7298 = vsub.s32 0, %v7297
        %v7299 = vrot.slane %v7039, %v7298
        %v7300 = vlaneseq
        %v7301 = vshrl.u32 %v7300, 7
        %v7302 = vsub.s32 0, %v7301
        %v7303 = vrot.slane %v7040, %v7302
        %v7304 = vlaneseq
        %v7305 = vshrl.u32 %v7304, 7
        %v7306 = vsub.s32 0, %v7305
        %v7307 = vrot.slane %v7041, %v7306
        %v7308 = vlaneseq
        %v7309 = vshrl.u32 %v7308, 7
        %v7310 = vsub.s32 0, %v7309
        %v7311 = vrot.slane %v7042, %v7310
        %v7312 = vlaneseq
        %v7313 = vshrl.u32 %v7312, 7
        %v7314 = vsub.s32 0, %v7313
        %v7315 = vrot.slane %v7043, %v7314
        %v7316 = vlaneseq
        %v7317 = vshrl.u32 %v7316, 7
        %v7318 = vsub.s32 0, %v7317
        %v7319 = vrot.slane %v7044, %v7318
        %v7320 = vlaneseq
        %v7321 = vshrl.u32 %v7320, 7
        %v7322 = vsub.s32 0, %v7321
        %v7323 = vrot.slane %v7045, %v7322
        %v7324 = vlaneseq
        %v7325 = vshrl.u32 %v7324, 7
        %v7326 = vsub.s32 0, %v7325
        %v7327 = vrot.slane %v7046, %v7326
        %v7328 = vlaneseq
        %v7329 = vshrl.u32 %v7328, 7
        %v7330 = vsub.s32 0, %v7329
        %v7331 = vrot.slane %v7047, %v7330
        %v7332 = vlaneseq
        %v7333 = vshrl.u32 %v7332, 7
        %v7334 = vsub.s32 0, %v7333
        %v7335 = vrot.slane %v7048, %v7334
        %v7336 = vlaneseq
        %v7337 = vshrl.u32 %v7336, 7
        %v7338 = vsub.s32 0, %v7337
        %v7339 = vrot.slane %v7049, %v7338
        %v7340 = vlaneseq
        %v7341 = vshrl.u32 %v7340, 7
        %v7342 = vsub.s32 0, %v7341
        %v7343 = vrot.slane %v7050, %v7342
        %v7344 = vlaneseq
        %v7345 = vshrl.u32 %v7344, 7
        %v7346 = vsub.s32 0, %v7345
        %v7347 = vrot.slane %v7051, %v7346
        %v7348 = vlaneseq
        %v7349 = vshrl.u32 %v7348, 7
        %v7350 = vsub.s32 0, %v7349
        %v7351 = vrot.slane %v7052, %v7350
        %v7352 = vlaneseq
        %v7353 = vshrl.u32 %v7352, 7
        %v7354 = vsub.s32 0, %v7353
        %v7355 = vrot.slane %v7053, %v7354
        %v7356 = vlaneseq
        %v7357 = vshrl.u32 %v7356, 7
        %v7358 = vsub.s32 0, %v7357
        %v7359 = vrot.slane %v7054, %v7358
        %v7360 = vlaneseq
        %v7361 = vshrl.u32 %v7360, 7
        %v7362 = vsub.s32 0, %v7361
        %v7363 = vrot.slane %v7055, %v7362
        %v7364 = vlaneseq
        %v7365 = vshrl.u32 %v7364, 7
        %v7366 = vsub.s32 0, %v7365
        %v7367 = vrot.slane %v7056, %v7366
        %v7368 = vlaneseq
        %v7369 = vshrl.u32 %v7368, 7
        %v7370 = vsub.s32 0, %v7369
        %v7371 = vrot.slane %v7057, %v7370
        %v7372 = vlaneseq
        %v7373 = vshrl.u32 %v7372, 7
        %v7374 = vsub.s32 0, %v7373
        %v7375 = vrot.slane %v7058, %v7374
        %v7376 = vlaneseq
        %v7377 = vshrl.u32 %v7376, 7
        %v7378 = vsub.s32 0, %v7377
        %v7379 = vrot.slane %v7059, %v7378
        %v7380 = vsel %vm6487, %v7131, %v7127
        %v7381 = vsel %vm6490, %v7135, %v7380
        %v7382 = vsel %vm6493, %v7139, %v7381
        %v7383 = vsel %vm6496, %v7143, %v7382
        %v7384 = vsel %vm6499, %v7147, %v7383
        %v7385 = vsel %vm6502, %v7151, %v7384
        %v7386 = vsel %vm6505, %v7155, %v7385
        %v7387 = vsel %vm6487, %v7163, %v7159
        %v7388 = vsel %vm6490, %v7167, %v7387
        %v7389 = vsel %vm6493, %v7171, %v7388
        %v7390 = vsel %vm6496, %v7175, %v7389
        %v7391 = vsel %vm6499, %v7179, %v7390
        %v7392 = vsel %vm6502, %v7183, %v7391
        %v7393 = vsel %vm6505, %v7187, %v7392
        %v7394 = vsel %vm6487, %v7195, %v7191
        %v7395 = vsel %vm6490, %v7199, %v7394
        %v7396 = vsel %vm6493, %v7203, %v7395
        %v7397 = vsel %vm6496, %v7207, %v7396
        %v7398 = vsel %vm6499, %v7211, %v7397
        %v7399 = vsel %vm6502, %v7215, %v7398
        %v7400 = vsel %vm6505, %v7219, %v7399
        %v7401 = vsel %vm6487, %v7227, %v7223
        %v7402 = vsel %vm6490, %v7231, %v7401
        %v7403 = vsel %vm6493, %v7235, %v7402
        %v7404 = vsel %vm6496, %v7239, %v7403
        %v7405 = vsel %vm6499, %v7243, %v7404
        %v7406 = vsel %vm6502, %v7247, %v7405
        %v7407 = vsel %vm6505, %v7251, %v7406
        %v7408 = vsel %vm6487, %v7259, %v7255
        %v7409 = vsel %vm6490, %v7263, %v7408
        %v7410 = vsel %vm6493, %v7267, %v7409
        %v7411 = vsel %vm6496, %v7271, %v7410
        %v7412 = vsel %vm6499, %v7275, %v7411
        %v7413 = vsel %vm6502, %v7279, %v7412
        %v7414 = vsel %vm6505, %v7283, %v7413
        %v7415 = vsel %vm6487, %v7291, %v7287
        %v7416 = vsel %vm6490, %v7295, %v7415
        %v7417 = vsel %vm6493, %v7299, %v7416
        %v7418 = vsel %vm6496, %v7303, %v7417
        %v7419 = vsel %vm6499, %v7307, %v7418
        %v7420 = vsel %vm6502, %v7311, %v7419
        %v7421 = vsel %vm6505, %v7315, %v7420
        %v7422 = vsel %vm6487, %v7323, %v7319
        %v7423 = vsel %vm6490, %v7327, %v7422
        %v7424 = vsel %vm6493, %v7331, %v7423
        %v7425 = vsel %vm6496, %v7335, %v7424
        %v7426 = vsel %vm6499, %v7339, %v7425
        %v7427 = vsel %vm6502, %v7343, %v7426
        %v7428 = vsel %vm6505, %v7347, %v7427
        %v7429 = vsel %vm6487, %v7355, %v7351
        %v7430 = vsel %vm6490, %v7359, %v7429
        %v7431 = vsel %vm6493, %v7363, %v7430
        %v7432 = vsel %vm6496, %v7367, %v7431
        %v7433 = vsel %vm6499, %v7371, %v7432
        %v7434 = vsel %vm6502, %v7375, %v7433
        %v7435 = vsel %vm6505, %v7379, %v7434
        %7444 = vst [vmem:[%s579] sm:$0xff] %v7386
        %7445 = vst [vmem:[%s579 + $0x8] sm:$0xff] %v7393
        %7446 = vst [vmem:[%s579 + $0x10] sm:$0xff] %v7400
        %7447 = vst [vmem:[%s579 + $0x18] sm:$0xff] %v7407
        %7448 = vst [vmem:[%s579 + $0x20] sm:$0xff] %v7414
        %7449 = vst [vmem:[%s579 + $0x28] sm:$0xff] %v7421
        %7450 = vst [vmem:[%s579 + $0x30] sm:$0xff] %v7428
        %7451 = vst [vmem:[%s579 + $0x38] sm:$0xff] %v7435
        %s7452 = sand.u32 %s300, 1
        %s7453 = scalar_lea.sflag [#allocation4], %s7452
        %s7454 = sand.u32 %s300, 1
        %s7455 = smul.addr %s7454, 64
        %s7456 = scalar_lea.vmem [#allocation22], %s7455
        // Predicated region
        $region117: #{_forward.1} parent=67 // pred_check
          %p7457 = pneg %p310
        $region118: #{_forward.1} parent=67 // pred_check_branch
          %7459 = sbr.rel (%p7457) target = $region120
        $region119: #{_forward.1} parent=67 // pred_region
          %s7461 = ssub.s32 1024, 1024
          %7462 = vsyncadd %s7453, %s7461
          %s7463 = smul.addr %s35, 8
          %s7464 = smul.addr %s7463, 128
          %s7465 = scalar_lea.hbm %s12, %s7464
          %s7466 = sshll.u32 %s7456, 4
          %s7467 = int_to_ptr.vmem [resolvable:$true] %s7466
          %7472 = dma.vmem_to_hbm [thread:$0]  %s7467, 1024, %s7465, %s7453, 128, 128, 8
        $region120: #{_forward.1} parent=67 // pred_fallthru
          _
      $region68: #{_forward.1} parent=5 // pred_fallthru
        _
      %p7473 = scmp.le.s32.totalorder 2, %s30
      // Predicated region
      $region121: #{_forward.1} parent=5 // pred_check
        %p7474 = pneg %p7473
      $region122: #{_forward.1} parent=5 // pred_check_branch
        %7476 = sbr.rel (%p7474) target = $region124
      $region123: #{_forward.1} parent=5 // pred_region
        %s7477 = ssub.s32 %s30, 2
        // Predicated region
        $region125: #{_forward.1} parent=123 // pred_check
          %p7478 = pneg %p316
        $region126: #{_forward.1} parent=123 // pred_check_branch
          %7480 = sbr.rel (%p7478) target = $region128
        $region127: #{_forward.1} parent=123 // pred_region
          %s7481 = sand.u32 %s301, 1
          %s7482 = scalar_lea.sflag [#allocation4], %s7481
          %s7483 = sand.u32 %s301, 1
          %s7484 = smul.addr %s7483, 64
          %s7485 = scalar_lea.vmem [#allocation22], %s7484
          %7486 = dma.done %s7482, 1024
        $region128: #{_forward.1} parent=123 // pred_fallthru
          _
      $region124: #{_forward.1} parent=5 // pred_fallthru
        _
    $region6: #{_forward.1} parent=1 // loop_footer
      %s34 = sadd.s32 1, %s30
    $region7: #{_forward.1} parent=1 // loop_footer_branch
      %29 = sbr.rel target = $region3
    $region8: #{_forward.1} parent=1 // loop_exit
      _
    %7487 = vsyncpa [#allocation3], 1
    %s7488 = scalar_lea.sflag [#allocation3], 1
    %7489 = vsyncpa %s7488, 1
    %7490 = vsyncpa [#allocation6], 1
    %7491 = vsyncpa [#allocation9], 1
    %7492 = vsyncpa [#allocation12], 1
    %7493 = vsyncpa [#allocation15], 1
    %7494 = vsyncpa [#allocation18], 1
    %7495 = vsyncpa [#allocation21], 1
    %7496 = vsyncpa [#allocation4], 1
    %s7497 = scalar_lea.sflag [#allocation4], 1
    %7498 = vsyncpa %s7497, 1

</llo_original>
